<compile_context>
chip_gen: v6e
topology: v6e:2x2x1
jax: 0.10.0
libtpu: 0.0.40
codegen_flags: <defaults>
</compile_context>

<pallas_src>
import functools
import math

import jax
import jax.numpy as jnp
from jax import lax
from jax.experimental import pallas as pl
from jax.experimental.pallas import tpu as pltpu

_EPS = 1e-5          # channel-wise LayerNorm epsilon
_MASK_VALUE = -1e4   # masked_fill value used by the reference attention


def _layer_kernel(n_heads, dk, window, q_tile, eps,
                  xq_ref, xkv_ref, mq_ref, mk_ref,
                  relk_ref, relv_ref,
                  wq_ref, bq_ref, wk_ref, bk_ref, wv_ref, bv_ref,
                  wo_ref, bo_ref, g1_ref, be1_ref, g2_ref, be2_ref,
                  o_ref, k_cache, v_cache):
    """One transformer block (rel-pos MHA + norm1 + norm2) for one query tile."""
    H, W = n_heads, window
    R = 2 * W + 1
    xq = xq_ref[...]                       # [TQ, C] f32   query rows (residual/LN path)
    mq = mq_ref[...]                       # [TQ, 1] f32
    mk = mk_ref[...]                       # [1,  T] f32
    TQ, C = xq.shape
    T = mk.shape[1]

    def split_heads(flat):                 # [N, H*dk] -> [H, N, dk] bf16 MXU operand
        return jnp.stack([flat[:, h * dk:(h + 1) * dk] for h in range(H)],
                         axis=0).astype(jnp.bfloat16)

    # ---- K/V projections: full sequence, computed once per batch element and
    #      cached in persistent VMEM scratch (query-tile axis is "arbitrary").
    @pl.when(pl.program_id(1) == 0)
    def _compute_kv():
        xkv = xkv_ref[...]                 # [T, C] bf16 (pre-cast in the wrapper)
        kf = jnp.dot(xkv, wk_ref[...], preferred_element_type=jnp.float32) + bk_ref[...]
        vf = jnp.dot(xkv, wv_ref[...], preferred_element_type=jnp.float32) + bv_ref[...]
        k_cache[...] = split_heads(kf)     # [H, T, dk] bf16
        v_cache[...] = split_heads(vf)

    k = k_cache[...]                       # [H, T, dk] bf16
    v = v_cache[...]                       # [H, T, dk] bf16

    # ---- Q projection (1/sqrt(dk) pre-folded into wq/bq): one wide matmul.
    qf = jnp.dot(xq.astype(jnp.bfloat16), wq_ref[...],
                 preferred_element_type=jnp.float32) + bq_ref[...]       # [TQ, H*dk]
    qs = split_heads(qf)                                                 # [H, TQ, dk]

    # ---- content logits (batched over heads on the MXU)
    scores = jnp.einsum('hqd,hkd->hqk', qs, k,
                        preferred_element_type=jnp.float32)              # [H, TQ, T]

    # ---- relative key logits: tiny MXU matmul q @ emb_rel_k^T -> [H,TQ,2w+1],
    #      then rel->abs diagonal scatter via 2w+1 masked adds.
    relk = jnp.broadcast_to(relk_ref[...][None], (H, R, dk))             # bf16
    rel_small = jnp.einsum('hqd,hrd->hqr', qs, relk,
                           preferred_element_type=jnp.float32)           # [H, TQ, R]

    q_start = pl.program_id(1) * q_tile
    row = q_start + lax.broadcasted_iota(jnp.int32, (TQ, T), 0)
    col = lax.broadcasted_iota(jnp.int32, (TQ, T), 1)
    delta = col - row                                                    # j - i
    band = [delta == (r - W) for r in range(R)]   # built once, reused by both loops
    for r in range(R):
        scores = scores + jnp.where(band[r][None], rel_small[:, :, r:r + 1], 0.0)

    # ---- attention mask built in-kernel: attn_mask[i,j] = x_mask[i] * x_mask[j]
    valid = (mq != 0.0) & (mk != 0.0)                                    # [TQ, T] bool
    scores = jnp.where(valid[None], scores, jnp.float32(_MASK_VALUE))

    # ---- softmax over keys (f32 stats, EUP reciprocal for the normalization)
    m = jnp.max(scores, axis=-1, keepdims=True)
    e = jnp.exp(scores - m)
    p = e * pl.reciprocal(jnp.sum(e, axis=-1, keepdims=True), approx=True)

    o_heads = jnp.einsum('hqk,hkd->hqd', p.astype(jnp.bfloat16), v,
                         preferred_element_type=jnp.float32)             # [H, TQ, dk]

    # ---- relative value term: abs->rel band reduction of p (reusing the band
    #      masks), combined with emb_rel_v per offset (small [H,TQ,dk] FMAs).
    relv = relv_ref[...]                                                 # [R, dk] f32
    for r in range(R):
        w_r = jnp.sum(jnp.where(band[r][None], p, 0.0), axis=-1, keepdims=True)
        o_heads = o_heads + w_r * relv[None, r:r + 1, :]

    # ---- output projection: per-head matmuls (N = hidden is full MXU width).
    hidden = wo_ref.shape[2]
    attn_b = o_heads.astype(jnp.bfloat16)
    y = jnp.zeros((TQ, hidden), jnp.float32)
    for h in range(H):
        y = y + jnp.dot(attn_b[h], wo_ref[h], preferred_element_type=jnp.float32)
    y = y + bo_ref[...]

    # ---- x = norm1(x + y)   (channel-wise LayerNorm, f32)
    h1 = xq + y
    mu1 = jnp.mean(h1, axis=-1, keepdims=True)
    var1 = jnp.mean((h1 - mu1) ** 2, axis=-1, keepdims=True)
    xn = (h1 - mu1) * lax.rsqrt(var1 + eps) * g1_ref[...] + be1_ref[...]

    # Reference forward: `y = self.drop(x)` (dropout=0) — the FFN output is
    # discarded, so the FFN matmuls are dead work and skipped entirely.
    # TODO(synk): wire the FFN back into the residual if the reference's
    # `y = self.drop(x)` line is a bug rather than intended behavior.
    h2 = xn + xn

    # ---- x = norm2(x + y)
    mu2 = jnp.mean(h2, axis=-1, keepdims=True)
    var2 = jnp.mean((h2 - mu2) ** 2, axis=-1, keepdims=True)
    out = (h2 - mu2) * lax.rsqrt(var2 + eps) * g2_ref[...] + be2_ref[...]

    o_ref[...] = out.astype(o_ref.dtype)


def _run_layer(x_f32, x_bf16, mask_q, mask_k, lp, *, n_heads, window_size):
    """x: [B, T, C] -> [B, T, hidden] via one pallas_call, grid (batch, q-tile)."""
    B, T, C = x_f32.shape
    H = n_heads
    HD = lp["wq"].shape[1]
    dk = HD // H
    hidden = lp["wo"].shape[-1]

    # Big query tiles amortize per-step overhead; cap them so the f32 [H,TQ,T]
    # softmax temporaries stay inside VMEM on v7x (64 MiB/TC).
    if T <= 256:
        TQ = T
    elif T > 2048:
        TQ = 128
    else:
        TQ = 256
    NQ = pl.cdiv(T, TQ)

    kernel = functools.partial(_layer_kernel, H, dk, window_size, TQ, _EPS)

    # bf16 for MXU operands; biases / LayerNorm params / rel-value table stay f32.
    # The 1/sqrt(dk) attention scale is folded into the query projection here.
    scale = 1.0 / math.sqrt(dk)
    wq = (lp["wq"] * scale).astype(jnp.bfloat16)
    bq = lp["bq"] * scale
    wk = lp["wk"].astype(jnp.bfloat16)
    wv = lp["wv"].astype(jnp.bfloat16)
    wo = lp["wo"].astype(jnp.bfloat16)
    relk = lp["emb_rel_k"].astype(jnp.bfloat16)

    const_inputs = (relk, lp["emb_rel_v"], wq, bq, wk, lp["bk"], wv, lp["bv"],
                    wo, lp["bo"], lp["g1"], lp["be1"], lp["g2"], lp["be2"])

    def const_spec(a):
        nd = a.ndim
        return pl.BlockSpec(a.shape, lambda b, qi, nd=nd: (0,) * nd)

    in_specs = [
        pl.BlockSpec((None, TQ, C), lambda b, qi: (b, qi, 0)),   # x, query rows (f32)
        pl.BlockSpec((None, T, C), lambda b, qi: (b, 0, 0)),     # x, keys/values (bf16)
        pl.BlockSpec((None, TQ, 1), lambda b, qi: (b, qi, 0)),   # mask, query rows
        pl.BlockSpec((None, 1, T), lambda b, qi: (b, 0, 0)),     # mask, key rows
    ] + [const_spec(a) for a in const_inputs]

    return pl.pallas_call(
        kernel,
        grid=(B, NQ),
        in_specs=in_specs,
        out_specs=pl.BlockSpec((None, TQ, hidden), lambda b, qi: (b, qi, 0)),
        out_shape=jax.ShapeDtypeStruct((B, T, hidden), jnp.float32),
        scratch_shapes=[pltpu.VMEM((H, T, dk), jnp.bfloat16),    # K cache (per batch)
                        pltpu.VMEM((H, T, dk), jnp.bfloat16)],   # V cache (per batch)
        compiler_params=pltpu.CompilerParams(
            # batch axis stays "parallel" (megacore sharding on v7x); the q-tile
            # axis must be "arbitrary" because K/V are cached in scratch at qi==0.
            dimension_semantics=("parallel", "arbitrary"),
            vmem_limit_bytes=40 * 1024 * 1024),
    )(x_f32, x_bf16, mask_q, mask_k, *const_inputs)


def relative_position_transformer(x, x_mask, params, *, n_heads, window_size):
    """Forward pass.  x: [B, C, T], x_mask: [B, 1, T]  ->  [B, C, T]."""
    xt = jnp.transpose(x, (0, 2, 1)).astype(jnp.float32)        # [B, T, C]
    mq = jnp.transpose(x_mask, (0, 2, 1)).astype(jnp.float32)   # [B, T, 1]
    mk = x_mask.astype(jnp.float32)                             # [B, 1, T]

    xt = xt * mq                                                # x = x * x_mask
    # TODO(synk): speaker (g) / language conditioning skipped (gin_channels=0, g=None).
    for lp in params["layers"]:
        xkv = xt.astype(jnp.bfloat16)      # keys/values copy, halves the big DMA
        xt = _run_layer(xt, xkv, mq, mk, lp, n_heads=n_heads, window_size=window_size)
    xt = xt * mq                                                # final x = x * x_mask
    return jnp.transpose(xt, (0, 2, 1))                         # back to [B, C, T]


def init_params(key, in_channels, hidden, ffn_hidden, n_heads, n_layers, window_size):
    layers = []
    for i in range(n_layers):
        c = in_channels if i == 0 else hidden
        dk = c // n_heads
        key, *ks = jax.random.split(key, 16)
        ks = iter(ks)
        w = lambda k, shape, s: jax.random.normal(k, shape, jnp.float32) * s
        lp = dict(
            # q/k/v projections fused over heads: [C_in, H*dk]; output proj per head.
            wq=w(next(ks), (c, n_heads * dk), c ** -0.5),
            bq=w(next(ks), (1, n_heads * dk), 0.01),
            wk=w(next(ks), (c, n_heads * dk), c ** -0.5),
            bk=w(next(ks), (1, n_heads * dk), 0.01),
            wv=w(next(ks), (c, n_heads * dk), c ** -0.5),
            bv=w(next(ks), (1, n_heads * dk), 0.01),
            wo=w(next(ks), (n_heads, dk, hidden), c ** -0.5),
            bo=w(next(ks), (1, hidden), 0.01),
            g1=jnp.ones((1, hidden), jnp.float32),
            be1=jnp.zeros((1, hidden), jnp.float32),
            g2=jnp.ones((1, hidden), jnp.float32),
            be2=jnp.zeros((1, hidden), jnp.float32),
            # FFN parameters exist in the module but the reference forward
            # discards the FFN output (`y = self.drop(x)`), so they are unused.
            w1=w(next(ks), (hidden, ffn_hidden), hidden ** -0.5),
            bf1=w(next(ks), (1, ffn_hidden), 0.01),
            w2=w(next(ks), (ffn_hidden, hidden), ffn_hidden ** -0.5),
            bf2=w(next(ks), (1, hidden), 0.01),
            # relative-position embeddings shared across heads: [2w+1, dk]
            emb_rel_k=w(next(ks), (2 * window_size + 1, dk), dk ** -0.5),
            emb_rel_v=w(next(ks), (2 * window_size + 1, dk), dk ** -0.5),
        )
        layers.append(lp)
    return {"layers": layers}


if __name__ == "__main__":
    # Small synthetic config: in_channels == hidden_channels (required by the residuals).
    B, C, T = 2, 32, 16
    n_heads, n_layers = 2, 2
    ffn_hidden = 64
    window_size = 4

    key = jax.random.PRNGKey(0)
    kx, kp = jax.random.split(key)
    x = jax.random.normal(kx, (B, C, T), jnp.float32)           # [B, C, T] (PyTorch NCT)
    lengths = jnp.array([T, 12])
    x_mask = (jnp.arange(T)[None, :] < lengths[:, None]).astype(jnp.float32)[:, None, :]

    params = init_params(kp, C, C, ffn_hidden, n_heads, n_layers, window_size)

    out = relative_position_transformer(x, x_mask, params,
                                        n_heads=n_heads, window_size=window_size)
    out = jax.block_until_ready(out)

    assert out.shape == (B, C, T), out.shape
    assert bool(jnp.all(jnp.isfinite(out)))
    # masked time steps must be exactly zero after the final x * x_mask
    assert bool(jnp.all(out[1, :, 12:] == 0.0))
    print("KERNEL_OK")
</pallas_src>

<mosaic_0001>
module attributes {stable_mosaic.version = 11 : i64} {
  func.func @_layer_kernel(%arg0: i32, %arg1: i32, %arg2: memref<1x16x32xf32, #tpu.memory_space<vmem>>, %arg3: memref<1x16x32xbf16, #tpu.memory_space<vmem>>, %arg4: memref<1x16x1xf32, #tpu.memory_space<vmem>>, %arg5: memref<1x1x16xf32, #tpu.memory_space<vmem>>, %arg6: memref<9x16xbf16, #tpu.memory_space<vmem>>, %arg7: memref<9x16xf32, #tpu.memory_space<vmem>>, %arg8: memref<32x32xbf16, #tpu.memory_space<vmem>>, %arg9: memref<1x32xf32, #tpu.memory_space<vmem>>, %arg10: memref<32x32xbf16, #tpu.memory_space<vmem>>, %arg11: memref<1x32xf32, #tpu.memory_space<vmem>>, %arg12: memref<32x32xbf16, #tpu.memory_space<vmem>>, %arg13: memref<1x32xf32, #tpu.memory_space<vmem>>, %arg14: memref<2x16x32xbf16, #tpu.memory_space<vmem>>, %arg15: memref<1x32xf32, #tpu.memory_space<vmem>>, %arg16: memref<1x32xf32, #tpu.memory_space<vmem>>, %arg17: memref<1x32xf32, #tpu.memory_space<vmem>>, %arg18: memref<1x32xf32, #tpu.memory_space<vmem>>, %arg19: memref<1x32xf32, #tpu.memory_space<vmem>>, %arg20: memref<1x16x32xf32, #tpu.memory_space<vmem>>, %arg21: memref<2x16x16xbf16, #tpu.memory_space<vmem>>, %arg22: memref<2x16x16xbf16, #tpu.memory_space<vmem>>) attributes {dimension_semantics = [#tpu.dimension_semantics<parallel>, #tpu.dimension_semantics<arbitrary>], iteration_bounds = array<i64: 2, 1>, scalar_prefetch = 0 : i64, scratch_operands = 2 : i64, tpu.core_type = #tpu.core_type<tc>, window_params = [{transform_indices = @transform_0, window_bounds = array<i64: 1, 16, 32>}, {transform_indices = @transform_1, window_bounds = array<i64: 1, 16, 32>}, {transform_indices = @transform_2, window_bounds = array<i64: 1, 16, 1>}, {transform_indices = @transform_3, window_bounds = array<i64: 1, 1, 16>}, {pipeline_mode = #tpu.pipeline_mode<synchronous>, transform_indices = @transform_4, window_bounds = array<i64: 9, 16>}, {pipeline_mode = #tpu.pipeline_mode<synchronous>, transform_indices = @transform_5, window_bounds = array<i64: 9, 16>}, {pipeline_mode = #tpu.pipeline_mode<synchronous>, transform_indices = @transform_6, window_bounds = array<i64: 32, 32>}, {pipeline_mode = #tpu.pipeline_mode<synchronous>, transform_indices = @transform_7, window_bounds = array<i64: 1, 32>}, {pipeline_mode = #tpu.pipeline_mode<synchronous>, transform_indices = @transform_8, window_bounds = array<i64: 32, 32>}, {pipeline_mode = #tpu.pipeline_mode<synchronous>, transform_indices = @transform_9, window_bounds = array<i64: 1, 32>}, {pipeline_mode = #tpu.pipeline_mode<synchronous>, transform_indices = @transform_10, window_bounds = array<i64: 32, 32>}, {pipeline_mode = #tpu.pipeline_mode<synchronous>, transform_indices = @transform_11, window_bounds = array<i64: 1, 32>}, {pipeline_mode = #tpu.pipeline_mode<synchronous>, transform_indices = @transform_12, window_bounds = array<i64: 2, 16, 32>}, {pipeline_mode = #tpu.pipeline_mode<synchronous>, transform_indices = @transform_13, window_bounds = array<i64: 1, 32>}, {pipeline_mode = #tpu.pipeline_mode<synchronous>, transform_indices = @transform_14, window_bounds = array<i64: 1, 32>}, {pipeline_mode = #tpu.pipeline_mode<synchronous>, transform_indices = @transform_15, window_bounds = array<i64: 1, 32>}, {pipeline_mode = #tpu.pipeline_mode<synchronous>, transform_indices = @transform_16, window_bounds = array<i64: 1, 32>}, {pipeline_mode = #tpu.pipeline_mode<synchronous>, transform_indices = @transform_17, window_bounds = array<i64: 1, 32>}, {transform_indices = @transform_18, window_bounds = array<i64: 1, 16, 32>}]} {
    %c0 = arith.constant 0 : index
    %c0_0 = arith.constant 0 : index
    %c0_1 = arith.constant 0 : index
    %0 = vector.load %arg2[%c0, %c0_0, %c0_1] : memref<1x16x32xf32, #tpu.memory_space<vmem>>, vector<1x16x32xf32>
    %1 = vector.shape_cast %0 : vector<1x16x32xf32> to vector<16x32xf32>
    %c0_2 = arith.constant 0 : index
    %c0_3 = arith.constant 0 : index
    %c0_4 = arith.constant 0 : index
    %2 = vector.load %arg4[%c0_2, %c0_3, %c0_4] : memref<1x16x1xf32, #tpu.memory_space<vmem>>, vector<1x16x1xf32>
    %3 = vector.shape_cast %2 : vector<1x16x1xf32> to vector<16x1xf32>
    %c0_5 = arith.constant 0 : index
    %c0_6 = arith.constant 0 : index
    %c0_7 = arith.constant 0 : index
    %4 = vector.load %arg5[%c0_5, %c0_6, %c0_7] : memref<1x1x16xf32, #tpu.memory_space<vmem>>, vector<1x1x16xf32>
    %5 = vector.shape_cast %4 : vector<1x1x16xf32> to vector<1x16xf32>
    %c0_i32 = arith.constant 0 : i32
    %6 = arith.cmpi eq, %arg1, %c0_i32 : i32
    %7 = arith.extui %6 : i1 to i32
    %c0_i32_8 = arith.constant 0 : i32
    %8 = arith.cmpi ne, %7, %c0_i32_8 : i32
    scf.if %8 {
      %c0_90 = arith.constant 0 : index
      %c0_91 = arith.constant 0 : index
      %c0_92 = arith.constant 0 : index
      %346 = vector.load %arg3[%c0_90, %c0_91, %c0_92] : memref<1x16x32xbf16, #tpu.memory_space<vmem>>, vector<1x16x32xbf16>
      %347 = vector.shape_cast %346 : vector<1x16x32xbf16> to vector<16x32xbf16>
      %c0_93 = arith.constant 0 : index
      %c0_94 = arith.constant 0 : index
      %348 = vector.load %arg10[%c0_93, %c0_94] : memref<32x32xbf16, #tpu.memory_space<vmem>>, vector<32x32xbf16>
      %cst_95 = arith.constant dense<0.000000e+00> : vector<16x32xf32>
      %349 = tpu.matmul %347, %348, %cst_95 {dimension_numbers = #tpu.dot_dimension_numbers<[1], [0], [0], [1], [0, 0, 1, 1], [], []>} : vector<16x32xbf16>, vector<32x32xbf16>, vector<16x32xf32> -> vector<16x32xf32>
      %c0_96 = arith.constant 0 : index
      %c0_97 = arith.constant 0 : index
      %350 = vector.load %arg11[%c0_96, %c0_97] : memref<1x32xf32, #tpu.memory_space<vmem>>, vector<1x32xf32>
      %351 = vector.broadcast %350 : vector<1x32xf32> to vector<16x32xf32>
      %352 = arith.addf %349, %351 : vector<16x32xf32>
      %c0_98 = arith.constant 0 : index
      %c0_99 = arith.constant 0 : index
      %353 = vector.load %arg12[%c0_98, %c0_99] : memref<32x32xbf16, #tpu.memory_space<vmem>>, vector<32x32xbf16>
      %cst_100 = arith.constant dense<0.000000e+00> : vector<16x32xf32>
      %354 = tpu.matmul %347, %353, %cst_100 {dimension_numbers = #tpu.dot_dimension_numbers<[1], [0], [0], [1], [0, 0, 1, 1], [], []>} : vector<16x32xbf16>, vector<32x32xbf16>, vector<16x32xf32> -> vector<16x32xf32>
      %c0_101 = arith.constant 0 : index
      %c0_102 = arith.constant 0 : index
      %355 = vector.load %arg13[%c0_101, %c0_102] : memref<1x32xf32, #tpu.memory_space<vmem>>, vector<1x32xf32>
      %356 = vector.broadcast %355 : vector<1x32xf32> to vector<16x32xf32>
      %357 = arith.addf %354, %356 : vector<16x32xf32>
      %358 = vector.extract_strided_slice %352 {offsets = [0, 0], sizes = [16, 16], strides = [1, 1]} : vector<16x32xf32> to vector<16x16xf32>
      %359 = vector.extract_strided_slice %352 {offsets = [0, 16], sizes = [16, 16], strides = [1, 1]} : vector<16x32xf32> to vector<16x16xf32>
      %360 = vector.shape_cast %358 : vector<16x16xf32> to vector<1x16x16xf32>
      %361 = vector.shape_cast %359 : vector<16x16xf32> to vector<1x16x16xf32>
      %362 = tpu.concatenate %360, %361 in 0 : vector<1x16x16xf32>, vector<1x16x16xf32> -> vector<2x16x16xf32>
      %363 = arith.truncf %362 : vector<2x16x16xf32> to vector<2x16x16xbf16>
      %c0_103 = arith.constant 0 : index
      %c0_104 = arith.constant 0 : index
      %c0_105 = arith.constant 0 : index
      %364 = vector.load %arg21[%c0_103, %c0_104, %c0_105] : memref<2x16x16xbf16, #tpu.memory_space<vmem>>, vector<2x16x16xbf16>
      tpu.vector_store %arg21[%c0_103, %c0_104, %c0_105], %363 {strides = array<i32>} : memref<2x16x16xbf16, #tpu.memory_space<vmem>>, vector<2x16x16xbf16>,
      %365 = vector.extract_strided_slice %357 {offsets = [0, 0], sizes = [16, 16], strides = [1, 1]} : vector<16x32xf32> to vector<16x16xf32>
      %366 = vector.extract_strided_slice %357 {offsets = [0, 16], sizes = [16, 16], strides = [1, 1]} : vector<16x32xf32> to vector<16x16xf32>
      %367 = vector.shape_cast %365 : vector<16x16xf32> to vector<1x16x16xf32>
      %368 = vector.shape_cast %366 : vector<16x16xf32> to vector<1x16x16xf32>
      %369 = tpu.concatenate %367, %368 in 0 : vector<1x16x16xf32>, vector<1x16x16xf32> -> vector<2x16x16xf32>
      %370 = arith.truncf %369 : vector<2x16x16xf32> to vector<2x16x16xbf16>
      %c0_106 = arith.constant 0 : index
      %c0_107 = arith.constant 0 : index
      %c0_108 = arith.constant 0 : index
      %371 = vector.load %arg22[%c0_106, %c0_107, %c0_108] : memref<2x16x16xbf16, #tpu.memory_space<vmem>>, vector<2x16x16xbf16>
      tpu.vector_store %arg22[%c0_106, %c0_107, %c0_108], %370 {strides = array<i32>} : memref<2x16x16xbf16, #tpu.memory_space<vmem>>, vector<2x16x16xbf16>,
    } else {
    }
    %c0_9 = arith.constant 0 : index
    %c0_10 = arith.constant 0 : index
    %c0_11 = arith.constant 0 : index
    %9 = vector.load %arg21[%c0_9, %c0_10, %c0_11] : memref<2x16x16xbf16, #tpu.memory_space<vmem>>, vector<2x16x16xbf16>
    %c0_12 = arith.constant 0 : index
    %c0_13 = arith.constant 0 : index
    %c0_14 = arith.constant 0 : index
    %10 = vector.load %arg22[%c0_12, %c0_13, %c0_14] : memref<2x16x16xbf16, #tpu.memory_space<vmem>>, vector<2x16x16xbf16>
    %11 = arith.truncf %1 : vector<16x32xf32> to vector<16x32xbf16>
    %c0_15 = arith.constant 0 : index
    %c0_16 = arith.constant 0 : index
    %12 = vector.load %arg8[%c0_15, %c0_16] : memref<32x32xbf16, #tpu.memory_space<vmem>>, vector<32x32xbf16>
    %cst = arith.constant dense<0.000000e+00> : vector<16x32xf32>
    %13 = tpu.matmul %11, %12, %cst {dimension_numbers = #tpu.dot_dimension_numbers<[1], [0], [0], [1], [0, 0, 1, 1], [], []>} : vector<16x32xbf16>, vector<32x32xbf16>, vector<16x32xf32> -> vector<16x32xf32>
    %c0_17 = arith.constant 0 : index
    %c0_18 = arith.constant 0 : index
    %14 = vector.load %arg9[%c0_17, %c0_18] : memref<1x32xf32, #tpu.memory_space<vmem>>, vector<1x32xf32>
    %15 = vector.broadcast %14 : vector<1x32xf32> to vector<16x32xf32>
    %16 = arith.addf %13, %15 : vector<16x32xf32>
    %17 = vector.extract_strided_slice %16 {offsets = [0, 0], sizes = [16, 16], strides = [1, 1]} : vector<16x32xf32> to vector<16x16xf32>
    %18 = vector.extract_strided_slice %16 {offsets = [0, 16], sizes = [16, 16], strides = [1, 1]} : vector<16x32xf32> to vector<16x16xf32>
    %19 = vector.shape_cast %17 : vector<16x16xf32> to vector<1x16x16xf32>
    %20 = vector.shape_cast %18 : vector<16x16xf32> to vector<1x16x16xf32>
    %21 = tpu.concatenate %19, %20 in 0 : vector<1x16x16xf32>, vector<1x16x16xf32> -> vector<2x16x16xf32>
    %22 = arith.truncf %21 : vector<2x16x16xf32> to vector<2x16x16xbf16>
    "tpu.trace_start"() <{level = 10 : i32, message = "hqd,hkd->hqk"}> : () -> ()
    %cst_19 = arith.constant dense<0.000000e+00> : vector<2x16x16xf32>
    %23 = tpu.matmul %22, %9, %cst_19 {dimension_numbers = #tpu.dot_dimension_numbers<[2], [2], [1], [1], [0, 0, 0, 1, 1, 1], [0], [0]>} : vector<2x16x16xbf16>, vector<2x16x16xbf16>, vector<2x16x16xf32> -> vector<2x16x16xf32>
    "tpu.trace_stop"() : () -> ()
    %c0_20 = arith.constant 0 : index
    %c0_21 = arith.constant 0 : index
    %24 = vector.load %arg6[%c0_20, %c0_21] : memref<9x16xbf16, #tpu.memory_space<vmem>>, vector<9x16xbf16>
    %25 = vector.shape_cast %24 : vector<9x16xbf16> to vector<1x9x16xbf16>
    %26 = vector.shape_cast %25 : vector<1x9x16xbf16> to vector<1x9x16xbf16>
    %27 = vector.broadcast %26 : vector<1x9x16xbf16> to vector<2x9x16xbf16>
    "tpu.trace_start"() <{level = 10 : i32, message = "hqd,hrd->hqr"}> : () -> ()
    %cst_22 = arith.constant dense<0.000000e+00> : vector<2x16x9xf32>
    %28 = tpu.matmul %22, %27, %cst_22 {dimension_numbers = #tpu.dot_dimension_numbers<[2], [2], [1], [1], [0, 0, 0, 1, 1, 1], [0], [0]>} : vector<2x16x16xbf16>, vector<2x9x16xbf16>, vector<2x16x9xf32> -> vector<2x16x9xf32>
    "tpu.trace_stop"() : () -> ()
    %c16_i32 = arith.constant 16 : i32
    %29 = arith.muli %arg1, %c16_i32 : i32
    %30 = tpu.iota {dimensions = array<i32: 0>} : vector<16x16xi32>
    %31 = vector.broadcast %29 : i32 to vector<16x16xi32>
    %32 = arith.addi %31, %30 : vector<16x16xi32>
    %33 = tpu.iota {dimensions = array<i32: 1>} : vector<16x16xi32>
    %34 = arith.subi %33, %32 : vector<16x16xi32>
    %c-4_i32 = arith.constant -4 : i32
    %35 = vector.broadcast %c-4_i32 : i32 to vector<16x16xi32>
    %36 = arith.cmpi eq, %34, %35 : vector<16x16xi32>
    %c-3_i32 = arith.constant -3 : i32
    %37 = vector.broadcast %c-3_i32 : i32 to vector<16x16xi32>
    %38 = arith.cmpi eq, %34, %37 : vector<16x16xi32>
    %c-2_i32 = arith.constant -2 : i32
    %39 = vector.broadcast %c-2_i32 : i32 to vector<16x16xi32>
    %40 = arith.cmpi eq, %34, %39 : vector<16x16xi32>
    %c-1_i32 = arith.constant -1 : i32
    %41 = vector.broadcast %c-1_i32 : i32 to vector<16x16xi32>
    %42 = arith.cmpi eq, %34, %41 : vector<16x16xi32>
    %c0_i32_23 = arith.constant 0 : i32
    %43 = vector.broadcast %c0_i32_23 : i32 to vector<16x16xi32>
    %44 = arith.cmpi eq, %34, %43 : vector<16x16xi32>
    %c1_i32 = arith.constant 1 : i32
    %45 = vector.broadcast %c1_i32 : i32 to vector<16x16xi32>
    %46 = arith.cmpi eq, %34, %45 : vector<16x16xi32>
    %c2_i32 = arith.constant 2 : i32
    %47 = vector.broadcast %c2_i32 : i32 to vector<16x16xi32>
    %48 = arith.cmpi eq, %34, %47 : vector<16x16xi32>
    %c3_i32 = arith.constant 3 : i32
    %49 = vector.broadcast %c3_i32 : i32 to vector<16x16xi32>
    %50 = arith.cmpi eq, %34, %49 : vector<16x16xi32>
    %c4_i32 = arith.constant 4 : i32
    %51 = vector.broadcast %c4_i32 : i32 to vector<16x16xi32>
    %52 = arith.cmpi eq, %34, %51 : vector<16x16xi32>
    %53 = vector.shape_cast %36 : vector<16x16xi1> to vector<1x16x16xi1>
    %54 = vector.extract_strided_slice %28 {offsets = [0, 0, 0], sizes = [2, 16, 1], strides = [1, 1, 1]} : vector<2x16x9xf32> to vector<2x16x1xf32>
    %cst_24 = arith.constant 0.000000e+00 : f32
    %55 = vector.shape_cast %53 : vector<1x16x16xi1> to vector<1x16x16xi1>
    %56 = vector.broadcast %55 : vector<1x16x16xi1> to vector<2x16x16xi1>
    %57 = vector.shape_cast %54 : vector<2x16x1xf32> to vector<2x16x1xf32>
    %58 = vector.broadcast %57 : vector<2x16x1xf32> to vector<2x16x16xf32>
    %59 = vector.broadcast %cst_24 : f32 to vector<2x16x16xf32>
    %60 = arith.select %56, %58, %59 : vector<2x16x16xi1>, vector<2x16x16xf32>
    %61 = arith.addf %23, %60 : vector<2x16x16xf32>
    %62 = vector.shape_cast %38 : vector<16x16xi1> to vector<1x16x16xi1>
    %63 = vector.extract_strided_slice %28 {offsets = [0, 0, 1], sizes = [2, 16, 1], strides = [1, 1, 1]} : vector<2x16x9xf32> to vector<2x16x1xf32>
    %cst_25 = arith.constant 0.000000e+00 : f32
    %64 = vector.shape_cast %62 : vector<1x16x16xi1> to vector<1x16x16xi1>
    %65 = vector.broadcast %64 : vector<1x16x16xi1> to vector<2x16x16xi1>
    %66 = vector.shape_cast %63 : vector<2x16x1xf32> to vector<2x16x1xf32>
    %67 = vector.broadcast %66 : vector<2x16x1xf32> to vector<2x16x16xf32>
    %68 = vector.broadcast %cst_25 : f32 to vector<2x16x16xf32>
    %69 = arith.select %65, %67, %68 : vector<2x16x16xi1>, vector<2x16x16xf32>
    %70 = arith.addf %61, %69 : vector<2x16x16xf32>
    %71 = vector.shape_cast %40 : vector<16x16xi1> to vector<1x16x16xi1>
    %72 = vector.extract_strided_slice %28 {offsets = [0, 0, 2], sizes = [2, 16, 1], strides = [1, 1, 1]} : vector<2x16x9xf32> to vector<2x16x1xf32>
    %cst_26 = arith.constant 0.000000e+00 : f32
    %73 = vector.shape_cast %71 : vector<1x16x16xi1> to vector<1x16x16xi1>
    %74 = vector.broadcast %73 : vector<1x16x16xi1> to vector<2x16x16xi1>
    %75 = vector.shape_cast %72 : vector<2x16x1xf32> to vector<2x16x1xf32>
    %76 = vector.broadcast %75 : vector<2x16x1xf32> to vector<2x16x16xf32>
    %77 = vector.broadcast %cst_26 : f32 to vector<2x16x16xf32>
    %78 = arith.select %74, %76, %77 : vector<2x16x16xi1>, vector<2x16x16xf32>
    %79 = arith.addf %70, %78 : vector<2x16x16xf32>
    %80 = vector.shape_cast %42 : vector<16x16xi1> to vector<1x16x16xi1>
    %81 = vector.extract_strided_slice %28 {offsets = [0, 0, 3], sizes = [2, 16, 1], strides = [1, 1, 1]} : vector<2x16x9xf32> to vector<2x16x1xf32>
    %cst_27 = arith.constant 0.000000e+00 : f32
    %82 = vector.shape_cast %80 : vector<1x16x16xi1> to vector<1x16x16xi1>
    %83 = vector.broadcast %82 : vector<1x16x16xi1> to vector<2x16x16xi1>
    %84 = vector.shape_cast %81 : vector<2x16x1xf32> to vector<2x16x1xf32>
    %85 = vector.broadcast %84 : vector<2x16x1xf32> to vector<2x16x16xf32>
    %86 = vector.broadcast %cst_27 : f32 to vector<2x16x16xf32>
    %87 = arith.select %83, %85, %86 : vector<2x16x16xi1>, vector<2x16x16xf32>
    %88 = arith.addf %79, %87 : vector<2x16x16xf32>
    %89 = vector.shape_cast %44 : vector<16x16xi1> to vector<1x16x16xi1>
    %90 = vector.extract_strided_slice %28 {offsets = [0, 0, 4], sizes = [2, 16, 1], strides = [1, 1, 1]} : vector<2x16x9xf32> to vector<2x16x1xf32>
    %cst_28 = arith.constant 0.000000e+00 : f32
    %91 = vector.shape_cast %89 : vector<1x16x16xi1> to vector<1x16x16xi1>
    %92 = vector.broadcast %91 : vector<1x16x16xi1> to vector<2x16x16xi1>
    %93 = vector.shape_cast %90 : vector<2x16x1xf32> to vector<2x16x1xf32>
    %94 = vector.broadcast %93 : vector<2x16x1xf32> to vector<2x16x16xf32>
    %95 = vector.broadcast %cst_28 : f32 to vector<2x16x16xf32>
    %96 = arith.select %92, %94, %95 : vector<2x16x16xi1>, vector<2x16x16xf32>
    %97 = arith.addf %88, %96 : vector<2x16x16xf32>
    %98 = vector.shape_cast %46 : vector<16x16xi1> to vector<1x16x16xi1>
    %99 = vector.extract_strided_slice %28 {offsets = [0, 0, 5], sizes = [2, 16, 1], strides = [1, 1, 1]} : vector<2x16x9xf32> to vector<2x16x1xf32>
    %cst_29 = arith.constant 0.000000e+00 : f32
    %100 = vector.shape_cast %98 : vector<1x16x16xi1> to vector<1x16x16xi1>
    %101 = vector.broadcast %100 : vector<1x16x16xi1> to vector<2x16x16xi1>
    %102 = vector.shape_cast %99 : vector<2x16x1xf32> to vector<2x16x1xf32>
    %103 = vector.broadcast %102 : vector<2x16x1xf32> to vector<2x16x16xf32>
    %104 = vector.broadcast %cst_29 : f32 to vector<2x16x16xf32>
    %105 = arith.select %101, %103, %104 : vector<2x16x16xi1>, vector<2x16x16xf32>
    %106 = arith.addf %97, %105 : vector<2x16x16xf32>
    %107 = vector.shape_cast %48 : vector<16x16xi1> to vector<1x16x16xi1>
    %108 = vector.extract_strided_slice %28 {offsets = [0, 0, 6], sizes = [2, 16, 1], strides = [1, 1, 1]} : vector<2x16x9xf32> to vector<2x16x1xf32>
    %cst_30 = arith.constant 0.000000e+00 : f32
    %109 = vector.shape_cast %107 : vector<1x16x16xi1> to vector<1x16x16xi1>
    %110 = vector.broadcast %109 : vector<1x16x16xi1> to vector<2x16x16xi1>
    %111 = vector.shape_cast %108 : vector<2x16x1xf32> to vector<2x16x1xf32>
    %112 = vector.broadcast %111 : vector<2x16x1xf32> to vector<2x16x16xf32>
    %113 = vector.broadcast %cst_30 : f32 to vector<2x16x16xf32>
    %114 = arith.select %110, %112, %113 : vector<2x16x16xi1>, vector<2x16x16xf32>
    %115 = arith.addf %106, %114 : vector<2x16x16xf32>
    %116 = vector.shape_cast %50 : vector<16x16xi1> to vector<1x16x16xi1>
    %117 = vector.extract_strided_slice %28 {offsets = [0, 0, 7], sizes = [2, 16, 1], strides = [1, 1, 1]} : vector<2x16x9xf32> to vector<2x16x1xf32>
    %cst_31 = arith.constant 0.000000e+00 : f32
    %118 = vector.shape_cast %116 : vector<1x16x16xi1> to vector<1x16x16xi1>
    %119 = vector.broadcast %118 : vector<1x16x16xi1> to vector<2x16x16xi1>
    %120 = vector.shape_cast %117 : vector<2x16x1xf32> to vector<2x16x1xf32>
    %121 = vector.broadcast %120 : vector<2x16x1xf32> to vector<2x16x16xf32>
    %122 = vector.broadcast %cst_31 : f32 to vector<2x16x16xf32>
    %123 = arith.select %119, %121, %122 : vector<2x16x16xi1>, vector<2x16x16xf32>
    %124 = arith.addf %115, %123 : vector<2x16x16xf32>
    %125 = vector.shape_cast %52 : vector<16x16xi1> to vector<1x16x16xi1>
    %126 = vector.extract_strided_slice %28 {offsets = [0, 0, 8], sizes = [2, 16, 1], strides = [1, 1, 1]} : vector<2x16x9xf32> to vector<2x16x1xf32>
    %cst_32 = arith.constant 0.000000e+00 : f32
    %127 = vector.shape_cast %125 : vector<1x16x16xi1> to vector<1x16x16xi1>
    %128 = vector.broadcast %127 : vector<1x16x16xi1> to vector<2x16x16xi1>
    %129 = vector.shape_cast %126 : vector<2x16x1xf32> to vector<2x16x1xf32>
    %130 = vector.broadcast %129 : vector<2x16x1xf32> to vector<2x16x16xf32>
    %131 = vector.broadcast %cst_32 : f32 to vector<2x16x16xf32>
    %132 = arith.select %128, %130, %131 : vector<2x16x16xi1>, vector<2x16x16xf32>
    %133 = arith.addf %124, %132 : vector<2x16x16xf32>
    %cst_33 = arith.constant 0.000000e+00 : f32
    %134 = vector.broadcast %cst_33 : f32 to vector<16x1xf32>
    %135 = arith.cmpf one, %3, %134 : vector<16x1xf32>
    %cst_34 = arith.constant 0.000000e+00 : f32
    %136 = vector.broadcast %cst_34 : f32 to vector<1x16xf32>
    %137 = arith.cmpf one, %5, %136 : vector<1x16xf32>
    %138 = vector.broadcast %135 : vector<16x1xi1> to vector<16x16xi1>
    %139 = vector.broadcast %137 : vector<1x16xi1> to vector<16x16xi1>
    %140 = arith.andi %138, %139 : vector<16x16xi1>
    %141 = vector.shape_cast %140 : vector<16x16xi1> to vector<1x16x16xi1>
    %cst_35 = arith.constant -1.000000e+04 : f32
    %142 = vector.shape_cast %141 : vector<1x16x16xi1> to vector<1x16x16xi1>
    %143 = vector.broadcast %142 : vector<1x16x16xi1> to vector<2x16x16xi1>
    %144 = vector.broadcast %cst_35 : f32 to vector<2x16x16xf32>
    %145 = arith.select %143, %133, %144 : vector<2x16x16xi1>, vector<2x16x16xf32>
    %cst_36 = arith.constant dense<0xFF800000> : vector<2x16xf32>
    %146 = vector.multi_reduction <maximumf>, %145, %cst_36 [2] : vector<2x16x16xf32> to vector<2x16xf32>
    %147 = vector.shape_cast %146 : vector<2x16xf32> to vector<2x16x1xf32>
    %148 = vector.broadcast %147 : vector<2x16x1xf32> to vector<2x16x16xf32>
    %149 = arith.subf %145, %148 : vector<2x16x16xf32>
    %150 = math.exp %149 : vector<2x16x16xf32>
    %cst_37 = arith.constant dense<0.000000e+00> : vector<2x16xf32>
    %151 = vector.multi_reduction <add>, %150, %cst_37 [2] : vector<2x16x16xf32> to vector<2x16xf32>
    %152 = vector.shape_cast %151 : vector<2x16xf32> to vector<2x16x1xf32>
    %153 = tpu.reciprocal %152 {approx = true} : vector<2x16x1xf32> -> vector<2x16x1xf32>
    %154 = vector.broadcast %153 : vector<2x16x1xf32> to vector<2x16x16xf32>
    %155 = arith.mulf %150, %154 : vector<2x16x16xf32>
    %156 = arith.truncf %155 : vector<2x16x16xf32> to vector<2x16x16xbf16>
    "tpu.trace_start"() <{level = 10 : i32, message = "hqk,hkd->hqd"}> : () -> ()
    %cst_38 = arith.constant dense<0.000000e+00> : vector<2x16x16xf32>
    %157 = tpu.matmul %156, %10, %cst_38 {dimension_numbers = #tpu.dot_dimension_numbers<[2], [1], [1], [2], [0, 0, 0, 1, 1, 2], [0], [0]>} : vector<2x16x16xbf16>, vector<2x16x16xbf16>, vector<2x16x16xf32> -> vector<2x16x16xf32>
    "tpu.trace_stop"() : () -> ()
    %c0_39 = arith.constant 0 : index
    %c0_40 = arith.constant 0 : index
    %158 = vector.load %arg7[%c0_39, %c0_40] : memref<9x16xf32, #tpu.memory_space<vmem>>, vector<9x16xf32>
    %159 = vector.shape_cast %36 : vector<16x16xi1> to vector<1x16x16xi1>
    %cst_41 = arith.constant 0.000000e+00 : f32
    %160 = vector.shape_cast %159 : vector<1x16x16xi1> to vector<1x16x16xi1>
    %161 = vector.broadcast %160 : vector<1x16x16xi1> to vector<2x16x16xi1>
    %162 = vector.broadcast %cst_41 : f32 to vector<2x16x16xf32>
    %163 = arith.select %161, %155, %162 : vector<2x16x16xi1>, vector<2x16x16xf32>
    %cst_42 = arith.constant dense<0.000000e+00> : vector<2x16xf32>
    %164 = vector.multi_reduction <add>, %163, %cst_42 [2] : vector<2x16x16xf32> to vector<2x16xf32>
    %165 = vector.shape_cast %164 : vector<2x16xf32> to vector<2x16x1xf32>
    %166 = vector.extract_strided_slice %158 {offsets = [0, 0], sizes = [1, 16], strides = [1, 1]} : vector<9x16xf32> to vector<1x16xf32>
    %167 = vector.shape_cast %166 : vector<1x16xf32> to vector<1x1x16xf32>
    %168 = vector.broadcast %165 : vector<2x16x1xf32> to vector<2x16x16xf32>
    %169 = vector.broadcast %167 : vector<1x1x16xf32> to vector<2x16x16xf32>
    %170 = arith.mulf %168, %169 : vector<2x16x16xf32>
    %171 = arith.addf %157, %170 : vector<2x16x16xf32>
    %172 = vector.shape_cast %38 : vector<16x16xi1> to vector<1x16x16xi1>
    %cst_43 = arith.constant 0.000000e+00 : f32
    %173 = vector.shape_cast %172 : vector<1x16x16xi1> to vector<1x16x16xi1>
    %174 = vector.broadcast %173 : vector<1x16x16xi1> to vector<2x16x16xi1>
    %175 = vector.broadcast %cst_43 : f32 to vector<2x16x16xf32>
    %176 = arith.select %174, %155, %175 : vector<2x16x16xi1>, vector<2x16x16xf32>
    %cst_44 = arith.constant dense<0.000000e+00> : vector<2x16xf32>
    %177 = vector.multi_reduction <add>, %176, %cst_44 [2] : vector<2x16x16xf32> to vector<2x16xf32>
    %178 = vector.shape_cast %177 : vector<2x16xf32> to vector<2x16x1xf32>
    %179 = vector.extract_strided_slice %158 {offsets = [1, 0], sizes = [1, 16], strides = [1, 1]} : vector<9x16xf32> to vector<1x16xf32>
    %180 = vector.shape_cast %179 : vector<1x16xf32> to vector<1x1x16xf32>
    %181 = vector.broadcast %178 : vector<2x16x1xf32> to vector<2x16x16xf32>
    %182 = vector.broadcast %180 : vector<1x1x16xf32> to vector<2x16x16xf32>
    %183 = arith.mulf %181, %182 : vector<2x16x16xf32>
    %184 = arith.addf %171, %183 : vector<2x16x16xf32>
    %185 = vector.shape_cast %40 : vector<16x16xi1> to vector<1x16x16xi1>
    %cst_45 = arith.constant 0.000000e+00 : f32
    %186 = vector.shape_cast %185 : vector<1x16x16xi1> to vector<1x16x16xi1>
    %187 = vector.broadcast %186 : vector<1x16x16xi1> to vector<2x16x16xi1>
    %188 = vector.broadcast %cst_45 : f32 to vector<2x16x16xf32>
    %189 = arith.select %187, %155, %188 : vector<2x16x16xi1>, vector<2x16x16xf32>
    %cst_46 = arith.constant dense<0.000000e+00> : vector<2x16xf32>
    %190 = vector.multi_reduction <add>, %189, %cst_46 [2] : vector<2x16x16xf32> to vector<2x16xf32>
    %191 = vector.shape_cast %190 : vector<2x16xf32> to vector<2x16x1xf32>
    %192 = vector.extract_strided_slice %158 {offsets = [2, 0], sizes = [1, 16], strides = [1, 1]} : vector<9x16xf32> to vector<1x16xf32>
    %193 = vector.shape_cast %192 : vector<1x16xf32> to vector<1x1x16xf32>
    %194 = vector.broadcast %191 : vector<2x16x1xf32> to vector<2x16x16xf32>
    %195 = vector.broadcast %193 : vector<1x1x16xf32> to vector<2x16x16xf32>
    %196 = arith.mulf %194, %195 : vector<2x16x16xf32>
    %197 = arith.addf %184, %196 : vector<2x16x16xf32>
    %198 = vector.shape_cast %42 : vector<16x16xi1> to vector<1x16x16xi1>
    %cst_47 = arith.constant 0.000000e+00 : f32
    %199 = vector.shape_cast %198 : vector<1x16x16xi1> to vector<1x16x16xi1>
    %200 = vector.broadcast %199 : vector<1x16x16xi1> to vector<2x16x16xi1>
    %201 = vector.broadcast %cst_47 : f32 to vector<2x16x16xf32>
    %202 = arith.select %200, %155, %201 : vector<2x16x16xi1>, vector<2x16x16xf32>
    %cst_48 = arith.constant dense<0.000000e+00> : vector<2x16xf32>
    %203 = vector.multi_reduction <add>, %202, %cst_48 [2] : vector<2x16x16xf32> to vector<2x16xf32>
    %204 = vector.shape_cast %203 : vector<2x16xf32> to vector<2x16x1xf32>
    %205 = vector.extract_strided_slice %158 {offsets = [3, 0], sizes = [1, 16], strides = [1, 1]} : vector<9x16xf32> to vector<1x16xf32>
    %206 = vector.shape_cast %205 : vector<1x16xf32> to vector<1x1x16xf32>
    %207 = vector.broadcast %204 : vector<2x16x1xf32> to vector<2x16x16xf32>
    %208 = vector.broadcast %206 : vector<1x1x16xf32> to vector<2x16x16xf32>
    %209 = arith.mulf %207, %208 : vector<2x16x16xf32>
    %210 = arith.addf %197, %209 : vector<2x16x16xf32>
    %211 = vector.shape_cast %44 : vector<16x16xi1> to vector<1x16x16xi1>
    %cst_49 = arith.constant 0.000000e+00 : f32
    %212 = vector.shape_cast %211 : vector<1x16x16xi1> to vector<1x16x16xi1>
    %213 = vector.broadcast %212 : vector<1x16x16xi1> to vector<2x16x16xi1>
    %214 = vector.broadcast %cst_49 : f32 to vector<2x16x16xf32>
    %215 = arith.select %213, %155, %214 : vector<2x16x16xi1>, vector<2x16x16xf32>
    %cst_50 = arith.constant dense<0.000000e+00> : vector<2x16xf32>
    %216 = vector.multi_reduction <add>, %215, %cst_50 [2] : vector<2x16x16xf32> to vector<2x16xf32>
    %217 = vector.shape_cast %216 : vector<2x16xf32> to vector<2x16x1xf32>
    %218 = vector.extract_strided_slice %158 {offsets = [4, 0], sizes = [1, 16], strides = [1, 1]} : vector<9x16xf32> to vector<1x16xf32>
    %219 = vector.shape_cast %218 : vector<1x16xf32> to vector<1x1x16xf32>
    %220 = vector.broadcast %217 : vector<2x16x1xf32> to vector<2x16x16xf32>
    %221 = vector.broadcast %219 : vector<1x1x16xf32> to vector<2x16x16xf32>
    %222 = arith.mulf %220, %221 : vector<2x16x16xf32>
    %223 = arith.addf %210, %222 : vector<2x16x16xf32>
    %224 = vector.shape_cast %46 : vector<16x16xi1> to vector<1x16x16xi1>
    %cst_51 = arith.constant 0.000000e+00 : f32
    %225 = vector.shape_cast %224 : vector<1x16x16xi1> to vector<1x16x16xi1>
    %226 = vector.broadcast %225 : vector<1x16x16xi1> to vector<2x16x16xi1>
    %227 = vector.broadcast %cst_51 : f32 to vector<2x16x16xf32>
    %228 = arith.select %226, %155, %227 : vector<2x16x16xi1>, vector<2x16x16xf32>
    %cst_52 = arith.constant dense<0.000000e+00> : vector<2x16xf32>
    %229 = vector.multi_reduction <add>, %228, %cst_52 [2] : vector<2x16x16xf32> to vector<2x16xf32>
    %230 = vector.shape_cast %229 : vector<2x16xf32> to vector<2x16x1xf32>
    %231 = vector.extract_strided_slice %158 {offsets = [5, 0], sizes = [1, 16], strides = [1, 1]} : vector<9x16xf32> to vector<1x16xf32>
    %232 = vector.shape_cast %231 : vector<1x16xf32> to vector<1x1x16xf32>
    %233 = vector.broadcast %230 : vector<2x16x1xf32> to vector<2x16x16xf32>
    %234 = vector.broadcast %232 : vector<1x1x16xf32> to vector<2x16x16xf32>
    %235 = arith.mulf %233, %234 : vector<2x16x16xf32>
    %236 = arith.addf %223, %235 : vector<2x16x16xf32>
    %237 = vector.shape_cast %48 : vector<16x16xi1> to vector<1x16x16xi1>
    %cst_53 = arith.constant 0.000000e+00 : f32
    %238 = vector.shape_cast %237 : vector<1x16x16xi1> to vector<1x16x16xi1>
    %239 = vector.broadcast %238 : vector<1x16x16xi1> to vector<2x16x16xi1>
    %240 = vector.broadcast %cst_53 : f32 to vector<2x16x16xf32>
    %241 = arith.select %239, %155, %240 : vector<2x16x16xi1>, vector<2x16x16xf32>
    %cst_54 = arith.constant dense<0.000000e+00> : vector<2x16xf32>
    %242 = vector.multi_reduction <add>, %241, %cst_54 [2] : vector<2x16x16xf32> to vector<2x16xf32>
    %243 = vector.shape_cast %242 : vector<2x16xf32> to vector<2x16x1xf32>
    %244 = vector.extract_strided_slice %158 {offsets = [6, 0], sizes = [1, 16], strides = [1, 1]} : vector<9x16xf32> to vector<1x16xf32>
    %245 = vector.shape_cast %244 : vector<1x16xf32> to vector<1x1x16xf32>
    %246 = vector.broadcast %243 : vector<2x16x1xf32> to vector<2x16x16xf32>
    %247 = vector.broadcast %245 : vector<1x1x16xf32> to vector<2x16x16xf32>
    %248 = arith.mulf %246, %247 : vector<2x16x16xf32>
    %249 = arith.addf %236, %248 : vector<2x16x16xf32>
    %250 = vector.shape_cast %50 : vector<16x16xi1> to vector<1x16x16xi1>
    %cst_55 = arith.constant 0.000000e+00 : f32
    %251 = vector.shape_cast %250 : vector<1x16x16xi1> to vector<1x16x16xi1>
    %252 = vector.broadcast %251 : vector<1x16x16xi1> to vector<2x16x16xi1>
    %253 = vector.broadcast %cst_55 : f32 to vector<2x16x16xf32>
    %254 = arith.select %252, %155, %253 : vector<2x16x16xi1>, vector<2x16x16xf32>
    %cst_56 = arith.constant dense<0.000000e+00> : vector<2x16xf32>
    %255 = vector.multi_reduction <add>, %254, %cst_56 [2] : vector<2x16x16xf32> to vector<2x16xf32>
    %256 = vector.shape_cast %255 : vector<2x16xf32> to vector<2x16x1xf32>
    %257 = vector.extract_strided_slice %158 {offsets = [7, 0], sizes = [1, 16], strides = [1, 1]} : vector<9x16xf32> to vector<1x16xf32>
    %258 = vector.shape_cast %257 : vector<1x16xf32> to vector<1x1x16xf32>
    %259 = vector.broadcast %256 : vector<2x16x1xf32> to vector<2x16x16xf32>
    %260 = vector.broadcast %258 : vector<1x1x16xf32> to vector<2x16x16xf32>
    %261 = arith.mulf %259, %260 : vector<2x16x16xf32>
    %262 = arith.addf %249, %261 : vector<2x16x16xf32>
    %263 = vector.shape_cast %52 : vector<16x16xi1> to vector<1x16x16xi1>
    %cst_57 = arith.constant 0.000000e+00 : f32
    %264 = vector.shape_cast %263 : vector<1x16x16xi1> to vector<1x16x16xi1>
    %265 = vector.broadcast %264 : vector<1x16x16xi1> to vector<2x16x16xi1>
    %266 = vector.broadcast %cst_57 : f32 to vector<2x16x16xf32>
    %267 = arith.select %265, %155, %266 : vector<2x16x16xi1>, vector<2x16x16xf32>
    %cst_58 = arith.constant dense<0.000000e+00> : vector<2x16xf32>
    %268 = vector.multi_reduction <add>, %267, %cst_58 [2] : vector<2x16x16xf32> to vector<2x16xf32>
    %269 = vector.shape_cast %268 : vector<2x16xf32> to vector<2x16x1xf32>
    %270 = vector.extract_strided_slice %158 {offsets = [8, 0], sizes = [1, 16], strides = [1, 1]} : vector<9x16xf32> to vector<1x16xf32>
    %271 = vector.shape_cast %270 : vector<1x16xf32> to vector<1x1x16xf32>
    %272 = vector.broadcast %269 : vector<2x16x1xf32> to vector<2x16x16xf32>
    %273 = vector.broadcast %271 : vector<1x1x16xf32> to vector<2x16x16xf32>
    %274 = arith.mulf %272, %273 : vector<2x16x16xf32>
    %275 = arith.addf %262, %274 : vector<2x16x16xf32>
    %276 = arith.truncf %275 : vector<2x16x16xf32> to vector<2x16x16xbf16>
    %cst_59 = arith.constant 0.000000e+00 : f32
    %277 = vector.broadcast %cst_59 : f32 to vector<16x32xf32>
    %278 = vector.extract_strided_slice %276 {offsets = [0, 0, 0], sizes = [1, 16, 16], strides = [1, 1, 1]} : vector<2x16x16xbf16> to vector<1x16x16xbf16>
    %279 = vector.shape_cast %278 : vector<1x16x16xbf16> to vector<16x16xbf16>
    %c0_60 = arith.constant 0 : index
    %c0_61 = arith.constant 0 : index
    %c0_62 = arith.constant 0 : index
    %280 = vector.load %arg14[%c0_60, %c0_61, %c0_62] : memref<2x16x32xbf16, #tpu.memory_space<vmem>>, vector<1x16x32xbf16>
    %281 = vector.shape_cast %280 : vector<1x16x32xbf16> to vector<16x32xbf16>
    %cst_63 = arith.constant dense<0.000000e+00> : vector<16x32xf32>
    %282 = tpu.matmul %279, %281, %cst_63 {dimension_numbers = #tpu.dot_dimension_numbers<[1], [0], [0], [1], [0, 0, 1, 1], [], []>} : vector<16x16xbf16>, vector<16x32xbf16>, vector<16x32xf32> -> vector<16x32xf32>
    %283 = arith.addf %277, %282 : vector<16x32xf32>
    %284 = vector.extract_strided_slice %276 {offsets = [1, 0, 0], sizes = [1, 16, 16], strides = [1, 1, 1]} : vector<2x16x16xbf16> to vector<1x16x16xbf16>
    %285 = vector.shape_cast %284 : vector<1x16x16xbf16> to vector<16x16xbf16>
    %c1 = arith.constant 1 : index
    %c0_64 = arith.constant 0 : index
    %c0_65 = arith.constant 0 : index
    %286 = vector.load %arg14[%c1, %c0_64, %c0_65] : memref<2x16x32xbf16, #tpu.memory_space<vmem>>, vector<1x16x32xbf16>
    %287 = vector.shape_cast %286 : vector<1x16x32xbf16> to vector<16x32xbf16>
    %cst_66 = arith.constant dense<0.000000e+00> : vector<16x32xf32>
    %288 = tpu.matmul %285, %287, %cst_66 {dimension_numbers = #tpu.dot_dimension_numbers<[1], [0], [0], [1], [0, 0, 1, 1], [], []>} : vector<16x16xbf16>, vector<16x32xbf16>, vector<16x32xf32> -> vector<16x32xf32>
    %289 = arith.addf %283, %288 : vector<16x32xf32>
    %c0_67 = arith.constant 0 : index
    %c0_68 = arith.constant 0 : index
    %290 = vector.load %arg15[%c0_67, %c0_68] : memref<1x32xf32, #tpu.memory_space<vmem>>, vector<1x32xf32>
    %291 = vector.broadcast %290 : vector<1x32xf32> to vector<16x32xf32>
    %292 = arith.addf %289, %291 : vector<16x32xf32>
    %293 = arith.addf %1, %292 : vector<16x32xf32>
    %cst_69 = arith.constant dense<0.000000e+00> : vector<16xf32>
    %294 = vector.multi_reduction <add>, %293, %cst_69 [1] : vector<16x32xf32> to vector<16xf32>
    %295 = vector.shape_cast %294 : vector<16xf32> to vector<16x1xf32>
    %cst_70 = arith.constant 3.200000e+01 : f32
    %296 = vector.broadcast %cst_70 : f32 to vector<16x1xf32>
    %297 = arith.divf %295, %296 : vector<16x1xf32>
    %298 = vector.broadcast %297 : vector<16x1xf32> to vector<16x32xf32>
    %299 = arith.subf %293, %298 : vector<16x32xf32>
    %300 = arith.mulf %299, %299 : vector<16x32xf32>
    %cst_71 = arith.constant dense<0.000000e+00> : vector<16xf32>
    %301 = vector.multi_reduction <add>, %300, %cst_71 [1] : vector<16x32xf32> to vector<16xf32>
    %302 = vector.shape_cast %301 : vector<16xf32> to vector<16x1xf32>
    %cst_72 = arith.constant 3.200000e+01 : f32
    %303 = vector.broadcast %cst_72 : f32 to vector<16x1xf32>
    %304 = arith.divf %302, %303 : vector<16x1xf32>
    %305 = vector.broadcast %297 : vector<16x1xf32> to vector<16x32xf32>
    %306 = arith.subf %293, %305 : vector<16x32xf32>
    %cst_73 = arith.constant 9.99999974E-6 : f32
    %307 = vector.broadcast %cst_73 : f32 to vector<16x1xf32>
    %308 = arith.addf %304, %307 : vector<16x1xf32>
    %309 = math.rsqrt %308 : vector<16x1xf32>
    %310 = vector.broadcast %309 : vector<16x1xf32> to vector<16x32xf32>
    %311 = arith.mulf %306, %310 : vector<16x32xf32>
    %c0_74 = arith.constant 0 : index
    %c0_75 = arith.constant 0 : index
    %312 = vector.load %arg16[%c0_74, %c0_75] : memref<1x32xf32, #tpu.memory_space<vmem>>, vector<1x32xf32>
    %313 = vector.broadcast %312 : vector<1x32xf32> to vector<16x32xf32>
    %314 = arith.mulf %311, %313 : vector<16x32xf32>
    %c0_76 = arith.constant 0 : index
    %c0_77 = arith.constant 0 : index
    %315 = vector.load %arg17[%c0_76, %c0_77] : memref<1x32xf32, #tpu.memory_space<vmem>>, vector<1x32xf32>
    %316 = vector.broadcast %315 : vector<1x32xf32> to vector<16x32xf32>
    %317 = arith.addf %314, %316 : vector<16x32xf32>
    %318 = arith.addf %317, %317 : vector<16x32xf32>
    %cst_78 = arith.constant dense<0.000000e+00> : vector<16xf32>
    %319 = vector.multi_reduction <add>, %318, %cst_78 [1] : vector<16x32xf32> to vector<16xf32>
    %320 = vector.shape_cast %319 : vector<16xf32> to vector<16x1xf32>
    %cst_79 = arith.constant 3.200000e+01 : f32
    %321 = vector.broadcast %cst_79 : f32 to vector<16x1xf32>
    %322 = arith.divf %320, %321 : vector<16x1xf32>
    %323 = vector.broadcast %322 : vector<16x1xf32> to vector<16x32xf32>
    %324 = arith.subf %318, %323 : vector<16x32xf32>
    %325 = arith.mulf %324, %324 : vector<16x32xf32>
    %cst_80 = arith.constant dense<0.000000e+00> : vector<16xf32>
    %326 = vector.multi_reduction <add>, %325, %cst_80 [1] : vector<16x32xf32> to vector<16xf32>
    %327 = vector.shape_cast %326 : vector<16xf32> to vector<16x1xf32>
    %cst_81 = arith.constant 3.200000e+01 : f32
    %328 = vector.broadcast %cst_81 : f32 to vector<16x1xf32>
    %329 = arith.divf %327, %328 : vector<16x1xf32>
    %330 = vector.broadcast %322 : vector<16x1xf32> to vector<16x32xf32>
    %331 = arith.subf %318, %330 : vector<16x32xf32>
    %cst_82 = arith.constant 9.99999974E-6 : f32
    %332 = vector.broadcast %cst_82 : f32 to vector<16x1xf32>
    %333 = arith.addf %329, %332 : vector<16x1xf32>
    %334 = math.rsqrt %333 : vector<16x1xf32>
    %335 = vector.broadcast %334 : vector<16x1xf32> to vector<16x32xf32>
    %336 = arith.mulf %331, %335 : vector<16x32xf32>
    %c0_83 = arith.constant 0 : index
    %c0_84 = arith.constant 0 : index
    %337 = vector.load %arg18[%c0_83, %c0_84] : memref<1x32xf32, #tpu.memory_space<vmem>>, vector<1x32xf32>
    %338 = vector.broadcast %337 : vector<1x32xf32> to vector<16x32xf32>
    %339 = arith.mulf %336, %338 : vector<16x32xf32>
    %c0_85 = arith.constant 0 : index
    %c0_86 = arith.constant 0 : index
    %340 = vector.load %arg19[%c0_85, %c0_86] : memref<1x32xf32, #tpu.memory_space<vmem>>, vector<1x32xf32>
    %341 = vector.broadcast %340 : vector<1x32xf32> to vector<16x32xf32>
    %342 = arith.addf %339, %341 : vector<16x32xf32>
    %c0_87 = arith.constant 0 : index
    %c0_88 = arith.constant 0 : index
    %c0_89 = arith.constant 0 : index
    %343 = vector.load %arg20[%c0_87, %c0_88, %c0_89] : memref<1x16x32xf32, #tpu.memory_space<vmem>>, vector<1x16x32xf32>
    %344 = vector.shape_cast %343 : vector<1x16x32xf32> to vector<16x32xf32>
    %345 = vector.shape_cast %342 : vector<16x32xf32> to vector<1x16x32xf32>
    tpu.vector_store %arg20[%c0_87, %c0_88, %c0_89], %345 {strides = array<i32>} : memref<1x16x32xf32, #tpu.memory_space<vmem>>, vector<1x16x32xf32>,
    return
  }
  func.func @transform_0(%arg0: i32, %arg1: i32) -> (i32, i32, i32) {
    %c0_i32 = arith.constant 0 : i32
    %c0_i32_0 = arith.constant 0 : i32
    return %arg0, %arg1, %c0_i32 : i32, i32, i32
  }
  func.func @transform_1(%arg0: i32, %arg1: i32) -> (i32, i32, i32) {
    %c0_i32 = arith.constant 0 : i32
    %c0_i32_0 = arith.constant 0 : i32
    %c0_i32_1 = arith.constant 0 : i32
    return %arg0, %c0_i32, %c0_i32_0 : i32, i32, i32
  }
  func.func @transform_2(%arg0: i32, %arg1: i32) -> (i32, i32, i32) {
    %c0_i32 = arith.constant 0 : i32
    %c0_i32_0 = arith.constant 0 : i32
    return %arg0, %arg1, %c0_i32 : i32, i32, i32
  }
  func.func @transform_3(%arg0: i32, %arg1: i32) -> (i32, i32, i32) {
    %c0_i32 = arith.constant 0 : i32
    %c0_i32_0 = arith.constant 0 : i32
    %c0_i32_1 = arith.constant 0 : i32
    return %arg0, %c0_i32, %c0_i32_0 : i32, i32, i32
  }
  func.func @transform_4(%arg0: i32, %arg1: i32) -> (i32, i32) {
    %c0_i32 = arith.constant 0 : i32
    %c0_i32_0 = arith.constant 0 : i32
    %c0_i32_1 = arith.constant 0 : i32
    return %c0_i32, %c0_i32_0 : i32, i32
  }
  func.func @transform_5(%arg0: i32, %arg1: i32) -> (i32, i32) {
    %c0_i32 = arith.constant 0 : i32
    %c0_i32_0 = arith.constant 0 : i32
    %c0_i32_1 = arith.constant 0 : i32
    return %c0_i32, %c0_i32_0 : i32, i32
  }
  func.func @transform_6(%arg0: i32, %arg1: i32) -> (i32, i32) {
    %c0_i32 = arith.constant 0 : i32
    %c0_i32_0 = arith.constant 0 : i32
    %c0_i32_1 = arith.constant 0 : i32
    return %c0_i32, %c0_i32_0 : i32, i32
  }
  func.func @transform_7(%arg0: i32, %arg1: i32) -> (i32, i32) {
    %c0_i32 = arith.constant 0 : i32
    %c0_i32_0 = arith.constant 0 : i32
    %c0_i32_1 = arith.constant 0 : i32
    return %c0_i32, %c0_i32_0 : i32, i32
  }
  func.func @transform_8(%arg0: i32, %arg1: i32) -> (i32, i32) {
    %c0_i32 = arith.constant 0 : i32
    %c0_i32_0 = arith.constant 0 : i32
    %c0_i32_1 = arith.constant 0 : i32
    return %c0_i32, %c0_i32_0 : i32, i32
  }
  func.func @transform_9(%arg0: i32, %arg1: i32) -> (i32, i32) {
    %c0_i32 = arith.constant 0 : i32
    %c0_i32_0 = arith.constant 0 : i32
    %c0_i32_1 = arith.constant 0 : i32
    return %c0_i32, %c0_i32_0 : i32, i32
  }
  func.func @transform_10(%arg0: i32, %arg1: i32) -> (i32, i32) {
    %c0_i32 = arith.constant 0 : i32
    %c0_i32_0 = arith.constant 0 : i32
    %c0_i32_1 = arith.constant 0 : i32
    return %c0_i32, %c0_i32_0 : i32, i32
  }
  func.func @transform_11(%arg0: i32, %arg1: i32) -> (i32, i32) {
    %c0_i32 = arith.constant 0 : i32
    %c0_i32_0 = arith.constant 0 : i32
    %c0_i32_1 = arith.constant 0 : i32
    return %c0_i32, %c0_i32_0 : i32, i32
  }
  func.func @transform_12(%arg0: i32, %arg1: i32) -> (i32, i32, i32) {
    %c0_i32 = arith.constant 0 : i32
    %c0_i32_0 = arith.constant 0 : i32
    %c0_i32_1 = arith.constant 0 : i32
    %c0_i32_2 = arith.constant 0 : i32
    return %c0_i32, %c0_i32_0, %c0_i32_1 : i32, i32, i32
  }
  func.func @transform_13(%arg0: i32, %arg1: i32) -> (i32, i32) {
    %c0_i32 = arith.constant 0 : i32
    %c0_i32_0 = arith.constant 0 : i32
    %c0_i32_1 = arith.constant 0 : i32
    return %c0_i32, %c0_i32_0 : i32, i32
  }
  func.func @transform_14(%arg0: i32, %arg1: i32) -> (i32, i32) {
    %c0_i32 = arith.constant 0 : i32
    %c0_i32_0 = arith.constant 0 : i32
    %c0_i32_1 = arith.constant 0 : i32
    return %c0_i32, %c0_i32_0 : i32, i32
  }
  func.func @transform_15(%arg0: i32, %arg1: i32) -> (i32, i32) {
    %c0_i32 = arith.constant 0 : i32
    %c0_i32_0 = arith.constant 0 : i32
    %c0_i32_1 = arith.constant 0 : i32
    return %c0_i32, %c0_i32_0 : i32, i32
  }
  func.func @transform_16(%arg0: i32, %arg1: i32) -> (i32, i32) {
    %c0_i32 = arith.constant 0 : i32
    %c0_i32_0 = arith.constant 0 : i32
    %c0_i32_1 = arith.constant 0 : i32
    return %c0_i32, %c0_i32_0 : i32, i32
  }
  func.func @transform_17(%arg0: i32, %arg1: i32) -> (i32, i32) {
    %c0_i32 = arith.constant 0 : i32
    %c0_i32_0 = arith.constant 0 : i32
    %c0_i32_1 = arith.constant 0 : i32
    return %c0_i32, %c0_i32_0 : i32, i32
  }
  func.func @transform_18(%arg0: i32, %arg1: i32) -> (i32, i32, i32) {
    %c0_i32 = arith.constant 0 : i32
    %c0_i32_0 = arith.constant 0 : i32
    return %arg0, %arg1, %c0_i32 : i32, i32, i32
  }
}

</mosaic_0001>

<llo_original>
// kernel: tpu_custom_call.1
$region0: #{tpu_custom_call.1}
  #allocation0 [shape = 'u32[]', space=smem, size = 0x4, offset = 0x4, fixed_abs, tag = 'smem constant byte address 0x4 - core index']
  #allocation1 [shape = 'u32[144,128]{1,0:T(1,128)}', space=vmem, size = 0x12000, scoped, tag = 'internal scratch']
  #allocation2 [shape = 'bf16[2,16,16]{2,1,0:T(8,128)(2,1)}', space=vmem, size = 0x2000, scoped, tag = 'scratch operand']
  #allocation3 [shape = 'bf16[2,16,16]{2,1,0:T(8,128)(2,1)}', space=vmem, size = 0x2000, scoped, tag = 'scratch operand']
  %s0 = inlined_call_operand.vmem [shape: f32[2,16,32], index: 0, kind: input, shape index: {}]
  %s1 = inlined_call_operand.hbm [shape: bf16[2,16,32], index: 1, kind: input, shape index: {}]
  %s2 = inlined_call_operand.vmem [shape: f32[2,16,1], index: 2, kind: input, shape index: {}]
  %s3 = inlined_call_operand.hbm [shape: f32[2,1,16], index: 3, kind: input, shape index: {}]
  %s4 = inlined_call_operand.hbm [shape: bf16[9,16], index: 4, kind: input, shape index: {}]
  %s5 = inlined_call_operand.hbm [shape: f32[9,16], index: 5, kind: input, shape index: {}]
  %s6 = inlined_call_operand.hbm [shape: bf16[32,32], index: 6, kind: input, shape index: {}]
  %s7 = inlined_call_operand.hbm [shape: f32[1,32], index: 7, kind: input, shape index: {}]
  %s8 = inlined_call_operand.vmem [shape: bf16[32,32], index: 8, kind: input, shape index: {}]
  %s9 = inlined_call_operand.vmem [shape: f32[1,32], index: 9, kind: input, shape index: {}]
  %s10 = inlined_call_operand.hbm [shape: bf16[32,32], index: 10, kind: input, shape index: {}]
  %s11 = inlined_call_operand.vmem [shape: f32[1,32], index: 11, kind: input, shape index: {}]
  %s12 = inlined_call_operand.hbm [shape: bf16[2,16,32], index: 12, kind: input, shape index: {}]
  %s13 = inlined_call_operand.vmem [shape: f32[1,32], index: 13, kind: input, shape index: {}]
  %s14 = inlined_call_operand.vmem [shape: f32[1,32], index: 14, kind: input, shape index: {}]
  %s15 = inlined_call_operand.vmem [shape: f32[1,32], index: 15, kind: input, shape index: {}]
  %s16 = inlined_call_operand.vmem [shape: f32[1,32], index: 16, kind: input, shape index: {}]
  %s17 = inlined_call_operand.vmem [shape: f32[1,32], index: 17, kind: input, shape index: {}]
  %s18 = inlined_call_operand.hbm [shape: f32[2,16,32], index: 18, kind: output, shape index: {}]
  %s19 = sld [smem:[#allocation0]]
  $region141: #{tpu_custom_call.1} parent=0
    _
  %s21 = ssub.s32 1, %s19
  %s22 = scalar_select 0, %s21, %s19
  $region1: #{tpu_custom_call.1} parent=0
    #allocation4 [shape = 'u8[8192]{0}', space=vmem, size = 0x2000, scoped, tag = 'input window, operand 1']
    #allocation5 [shape = 's32[2]{0}', space=sflag, size = 0x8, scoped, tag = 'scoped memory for tpu_custom_call.1']
    #allocation6 [shape = 's32[2]{0}', space=sflag, size = 0x8, scoped, tag = 'scoped memory for tpu_custom_call.1']
    #allocation7 [shape = 'u8[1024]{0}', space=vmem, size = 0x400, scoped, tag = 'input window, operand 3']
    #allocation8 [shape = 's32[2]{0}', space=sflag, size = 0x8, scoped, tag = 'scoped memory for tpu_custom_call.1']
    #allocation9 [shape = 'u8[4096]{0}', space=vmem, size = 0x1000, scoped, tag = 'input window, operand 4, single buffered']
    #allocation10 [shape = 'u8[8192]{0}', space=vmem, size = 0x2000, scoped, tag = 'input window, operand 5, single buffered']
    #allocation11 [shape = 's32[1]{0}', space=sflag, size = 0x4, scoped, tag = 'scoped memory for tpu_custom_call.1']
    #allocation12 [shape = 'u8[8192]{0}', space=vmem, size = 0x2000, scoped, tag = 'input window, operand 6, single buffered']
    #allocation13 [shape = 'u8[512]{0}', space=vmem, size = 0x400, scoped, tag = 'input window, operand 7, single buffered']
    #allocation14 [shape = 's32[1]{0}', space=sflag, size = 0x4, scoped, tag = 'scoped memory for tpu_custom_call.1']
    #allocation15 [shape = 'u8[8192]{0}', space=vmem, size = 0x2000, scoped, tag = 'input window, operand 10, single buffered']
    #allocation16 [shape = 'u8[8192]{0}', space=vmem, size = 0x2000, scoped, tag = 'input window, operand 12, single buffered']
    #allocation17 [shape = 's32[1]{0}', space=sflag, size = 0x4, scoped, tag = 'scoped memory for tpu_custom_call.1']
    #allocation18 [shape = 'u8[16384]{0}', space=vmem, size = 0x4000, scoped, tag = 'output window, operand 0']
    %23 = vsyncpa [#allocation5], 0
    %s24 = scalar_lea.sflag [#allocation5], 1
    %25 = vsyncpa %s24, 0
    %26 = vsyncpa [#allocation8], 0
    %s27 = scalar_lea.sflag [#allocation8], 1
    %28 = vsyncpa %s27, 0
    %29 = vsyncpa [#allocation11], 0
    %30 = vsyncpa [#allocation14], 0
    %31 = vsyncpa [#allocation17], 0
    %32 = vsyncpa [#allocation6], 0
    %s33 = scalar_lea.sflag [#allocation6], 1
    %34 = vsyncpa %s33, 0
    loop: start=0, step=1, limit=4
    $region2: #{tpu_custom_call.1} parent=1 // loop_pre_header
      _
    $region3: #{tpu_custom_call.1} parent=1 // loop_header
      %s36 = sphi 0, %s40
      %p37 = scmp.ge.s32.totalorder %s36, 4
      %s43 = sphi 0, %s55
      %s44 = sphi 0, %s51
      %s45 = sphi 0, %s43
      %s46 = sphi 0, %s44
      %s47 = sphi 0, %s45
      %s48 = sphi 0, %s46
      %s60 = sphi 0, %s62
      %s63 = sphi 0, %s60
      %s64 = sphi 0, %s63
      %s80 = sphi 0, %s64
      %s86 = sphi 0, %s88
      %s89 = sphi 0, %s86
      %s90 = sphi 0, %s89
      %s106 = sphi 0, %s90
      %s114 = sphi 0, %s116
      %s117 = sphi 0, %s114
      %s118 = sphi 0, %s117
      %s134 = sphi 0, %s118
      %s140 = sphi 0, %s142
      %s143 = sphi 0, %s140
      %s144 = sphi 0, %s143
      %s160 = sphi 0, %s144
      %s164 = sphi 0, %s164
      %s166 = sphi 0, %s164
      %s167 = sphi 0, %s166
      %s181 = sphi 0, %s167
      %s185 = sphi 0, %s185
      %s187 = sphi 0, %s185
      %s188 = sphi 0, %s187
      %s202 = sphi 0, %s188
      %s206 = sphi 0, %s206
      %s208 = sphi 0, %s206
      %s209 = sphi 0, %s208
      %s223 = sphi 0, %s209
      %s227 = sphi 0, %s227
      %s229 = sphi 0, %s227
      %s230 = sphi 0, %s229
      %s244 = sphi 0, %s230
      %s248 = sphi 0, %s248
      %s250 = sphi 0, %s248
      %s251 = sphi 0, %s250
      %s265 = sphi 0, %s251
      %s269 = sphi 0, %s269
      %s271 = sphi 0, %s269
      %s272 = sphi 0, %s271
      %s286 = sphi 0, %s272
      %s290 = sphi 0, %s290
      %s292 = sphi 0, %s290
      %s293 = sphi 0, %s292
      %s307 = sphi 0, %s293
      %s311 = sphi 0, %s311
      %s313 = sphi 0, %s311
      %s314 = sphi 0, %s313
      %s328 = sphi 0, %s314
      %s332 = sphi 0, %s332
      %s334 = sphi 0, %s332
      %s335 = sphi 0, %s334
      %s349 = sphi 0, %s335
      %s353 = sphi 0, %s353
      %s355 = sphi 0, %s353
      %s356 = sphi 0, %s355
      %s370 = sphi 0, %s356
      %s374 = sphi 0, %s374
      %s376 = sphi 0, %s374
      %s377 = sphi 0, %s376
      %s391 = sphi 0, %s377
      %s395 = sphi 0, %s395
      %s397 = sphi 0, %s395
      %s398 = sphi 0, %s397
      %s412 = sphi 0, %s398
      %s416 = sphi 0, %s416
      %s418 = sphi 0, %s416
      %s419 = sphi 0, %s418
      %s433 = sphi 0, %s419
      %s437 = sphi 0, %s437
      %s439 = sphi 0, %s437
      %s440 = sphi 0, %s439
      %s454 = sphi 0, %s440
      %s462 = sphi 0, %s464
      %s465 = sphi 0, %s462
      %s466 = sphi 0, %s465
      %s482 = sphi 0, %s466
    $region4: #{tpu_custom_call.1} parent=1 // loop_header_branch
      %39 = sbr.rel (%p37) target = $region8
    $region5: #{tpu_custom_call.1} parent=1 // loop_body
      %s41 = ssub.s32 %s36, 1
      %s42 = ssub.s32 %s36, 2
      %s49 = sadd.s32 1, %s44
      %p50 = scmp.ge.s32.totalorder %s49, 1
      %s51 = scalar_select %p50, 0, %s49
      %s52 = sadd.s32 1, %s43
      %s53 = scalar_select %p50, %s52, %s43
      %p54 = scmp.ge.s32.totalorder %s53, 2
      %s55 = scalar_select %p54, 0, %s53
      %s56 = ssub.s32 %s43, %s55
      %s57 = ssub.s32 %s44, %s51
      %s58 = sor.u32 %s56, %s57
      %p59 = scmp.eq.s32.totalorder %s58, 0
      %s61 = sadd.s32 %s60, 1
      %s62 = scalar_select %p59, %s60, %s61
      %p65 = pneg %p59
      %p66 = scmp.eq.s32.totalorder %s36, 1
      %p67 = por %p65, %p66
      %p68 = scmp.ne.s32.totalorder %s60, %s63
      %p69 = scmp.eq.s32.totalorder %s36, 0
      %p70 = por %p68, %p69
      %p71 = scmp.ne.s32.totalorder %s60, %s63
      %p72 = scmp.eq.s32.totalorder %s41, 1
      %p73 = por %p71, %p72
      %p74 = scmp.ne.s32.totalorder %s63, %s64
      %p75 = scmp.eq.s32.totalorder %s41, 0
      %p76 = por %p74, %p75
      %p77 = scmp.ne.s32.totalorder %s63, %s64
      %p78 = scmp.eq.s32.totalorder %s42, 1
      %p79 = por %p77, %p78
      %p81 = scmp.ne.s32.totalorder %s64, %s80
      %p82 = scmp.eq.s32.totalorder %s42, 0
      %p83 = por %p81, %p82
      %s84 = ssub.s32 %s43, %s55
      %p85 = scmp.eq.s32.totalorder %s84, 0
      %s87 = sadd.s32 %s86, 1
      %s88 = scalar_select %p85, %s86, %s87
      %p91 = pneg %p85
      %p92 = scmp.eq.s32.totalorder %s36, 1
      %p93 = por %p91, %p92
      %p94 = scmp.ne.s32.totalorder %s86, %s89
      %p95 = scmp.eq.s32.totalorder %s36, 0
      %p96 = por %p94, %p95
      %p97 = scmp.ne.s32.totalorder %s86, %s89
      %p98 = scmp.eq.s32.totalorder %s41, 1
      %p99 = por %p97, %p98
      %p100 = scmp.ne.s32.totalorder %s89, %s90
      %p101 = scmp.eq.s32.totalorder %s41, 0
      %p102 = por %p100, %p101
      %p103 = scmp.ne.s32.totalorder %s89, %s90
      %p104 = scmp.eq.s32.totalorder %s42, 1
      %p105 = por %p103, %p104
      %p107 = scmp.ne.s32.totalorder %s90, %s106
      %p108 = scmp.eq.s32.totalorder %s42, 0
      %p109 = por %p107, %p108
      %s110 = ssub.s32 %s43, %s55
      %s111 = ssub.s32 %s44, %s51
      %s112 = sor.u32 %s110, %s111
      %p113 = scmp.eq.s32.totalorder %s112, 0
      %s115 = sadd.s32 %s114, 1
      %s116 = scalar_select %p113, %s114, %s115
      %p119 = pneg %p113
      %p120 = scmp.eq.s32.totalorder %s36, 1
      %p121 = por %p119, %p120
      %p122 = scmp.ne.s32.totalorder %s114, %s117
      %p123 = scmp.eq.s32.totalorder %s36, 0
      %p124 = por %p122, %p123
      %p125 = scmp.ne.s32.totalorder %s114, %s117
      %p126 = scmp.eq.s32.totalorder %s41, 1
      %p127 = por %p125, %p126
      %p128 = scmp.ne.s32.totalorder %s117, %s118
      %p129 = scmp.eq.s32.totalorder %s41, 0
      %p130 = por %p128, %p129
      %p131 = scmp.ne.s32.totalorder %s117, %s118
      %p132 = scmp.eq.s32.totalorder %s42, 1
      %p133 = por %p131, %p132
      %p135 = scmp.ne.s32.totalorder %s118, %s134
      %p136 = scmp.eq.s32.totalorder %s42, 0
      %p137 = por %p135, %p136
      %s138 = ssub.s32 %s43, %s55
      %p139 = scmp.eq.s32.totalorder %s138, 0
      %s141 = sadd.s32 %s140, 1
      %s142 = scalar_select %p139, %s140, %s141
      %p145 = pneg %p139
      %p146 = scmp.eq.s32.totalorder %s36, 1
      %p147 = por %p145, %p146
      %p148 = scmp.ne.s32.totalorder %s140, %s143
      %p149 = scmp.eq.s32.totalorder %s36, 0
      %p150 = por %p148, %p149
      %p151 = scmp.ne.s32.totalorder %s140, %s143
      %p152 = scmp.eq.s32.totalorder %s41, 1
      %p153 = por %p151, %p152
      %p154 = scmp.ne.s32.totalorder %s143, %s144
      %p155 = scmp.eq.s32.totalorder %s41, 0
      %p156 = por %p154, %p155
      %p157 = scmp.ne.s32.totalorder %s143, %s144
      %p158 = scmp.eq.s32.totalorder %s42, 1
      %p159 = por %p157, %p158
      %p161 = scmp.ne.s32.totalorder %s144, %s160
      %p162 = scmp.eq.s32.totalorder %s42, 0
      %p163 = por %p161, %p162
      %s165 = sadd.s32 %s164, 1
      %p168 = scmp.eq.s32.totalorder %s36, 1
      %p169 = scmp.ne.s32.totalorder %s164, %s166
      %p170 = scmp.eq.s32.totalorder %s36, 0
      %p171 = por %p169, %p170
      %p172 = scmp.ne.s32.totalorder %s164, %s166
      %p173 = scmp.eq.s32.totalorder %s41, 1
      %p174 = por %p172, %p173
      %p175 = scmp.ne.s32.totalorder %s166, %s167
      %p176 = scmp.eq.s32.totalorder %s41, 0
      %p177 = por %p175, %p176
      %p178 = scmp.ne.s32.totalorder %s166, %s167
      %p179 = scmp.eq.s32.totalorder %s42, 1
      %p180 = por %p178, %p179
      %p182 = scmp.ne.s32.totalorder %s167, %s181
      %p183 = scmp.eq.s32.totalorder %s42, 0
      %p184 = por %p182, %p183
      %s186 = sadd.s32 %s185, 1
      %p189 = scmp.eq.s32.totalorder %s36, 1
      %p190 = scmp.ne.s32.totalorder %s185, %s187
      %p191 = scmp.eq.s32.totalorder %s36, 0
      %p192 = por %p190, %p191
      %p193 = scmp.ne.s32.totalorder %s185, %s187
      %p194 = scmp.eq.s32.totalorder %s41, 1
      %p195 = por %p193, %p194
      %p196 = scmp.ne.s32.totalorder %s187, %s188
      %p197 = scmp.eq.s32.totalorder %s41, 0
      %p198 = por %p196, %p197
      %p199 = scmp.ne.s32.totalorder %s187, %s188
      %p200 = scmp.eq.s32.totalorder %s42, 1
      %p201 = por %p199, %p200
      %p203 = scmp.ne.s32.totalorder %s188, %s202
      %p204 = scmp.eq.s32.totalorder %s42, 0
      %p205 = por %p203, %p204
      %s207 = sadd.s32 %s206, 1
      %p210 = scmp.eq.s32.totalorder %s36, 1
      %p211 = scmp.ne.s32.totalorder %s206, %s208
      %p212 = scmp.eq.s32.totalorder %s36, 0
      %p213 = por %p211, %p212
      %p214 = scmp.ne.s32.totalorder %s206, %s208
      %p215 = scmp.eq.s32.totalorder %s41, 1
      %p216 = por %p214, %p215
      %p217 = scmp.ne.s32.totalorder %s208, %s209
      %p218 = scmp.eq.s32.totalorder %s41, 0
      %p219 = por %p217, %p218
      %p220 = scmp.ne.s32.totalorder %s208, %s209
      %p221 = scmp.eq.s32.totalorder %s42, 1
      %p222 = por %p220, %p221
      %p224 = scmp.ne.s32.totalorder %s209, %s223
      %p225 = scmp.eq.s32.totalorder %s42, 0
      %p226 = por %p224, %p225
      %s228 = sadd.s32 %s227, 1
      %p231 = scmp.eq.s32.totalorder %s36, 1
      %p232 = scmp.ne.s32.totalorder %s227, %s229
      %p233 = scmp.eq.s32.totalorder %s36, 0
      %p234 = por %p232, %p233
      %p235 = scmp.ne.s32.totalorder %s227, %s229
      %p236 = scmp.eq.s32.totalorder %s41, 1
      %p237 = por %p235, %p236
      %p238 = scmp.ne.s32.totalorder %s229, %s230
      %p239 = scmp.eq.s32.totalorder %s41, 0
      %p240 = por %p238, %p239
      %p241 = scmp.ne.s32.totalorder %s229, %s230
      %p242 = scmp.eq.s32.totalorder %s42, 1
      %p243 = por %p241, %p242
      %p245 = scmp.ne.s32.totalorder %s230, %s244
      %p246 = scmp.eq.s32.totalorder %s42, 0
      %p247 = por %p245, %p246
      %s249 = sadd.s32 %s248, 1
      %p252 = scmp.eq.s32.totalorder %s36, 1
      %p253 = scmp.ne.s32.totalorder %s248, %s250
      %p254 = scmp.eq.s32.totalorder %s36, 0
      %p255 = por %p253, %p254
      %p256 = scmp.ne.s32.totalorder %s248, %s250
      %p257 = scmp.eq.s32.totalorder %s41, 1
      %p258 = por %p256, %p257
      %p259 = scmp.ne.s32.totalorder %s250, %s251
      %p260 = scmp.eq.s32.totalorder %s41, 0
      %p261 = por %p259, %p260
      %p262 = scmp.ne.s32.totalorder %s250, %s251
      %p263 = scmp.eq.s32.totalorder %s42, 1
      %p264 = por %p262, %p263
      %p266 = scmp.ne.s32.totalorder %s251, %s265
      %p267 = scmp.eq.s32.totalorder %s42, 0
      %p268 = por %p266, %p267
      %s270 = sadd.s32 %s269, 1
      %p273 = scmp.eq.s32.totalorder %s36, 1
      %p274 = scmp.ne.s32.totalorder %s269, %s271
      %p275 = scmp.eq.s32.totalorder %s36, 0
      %p276 = por %p274, %p275
      %p277 = scmp.ne.s32.totalorder %s269, %s271
      %p278 = scmp.eq.s32.totalorder %s41, 1
      %p279 = por %p277, %p278
      %p280 = scmp.ne.s32.totalorder %s271, %s272
      %p281 = scmp.eq.s32.totalorder %s41, 0
      %p282 = por %p280, %p281
      %p283 = scmp.ne.s32.totalorder %s271, %s272
      %p284 = scmp.eq.s32.totalorder %s42, 1
      %p285 = por %p283, %p284
      %p287 = scmp.ne.s32.totalorder %s272, %s286
      %p288 = scmp.eq.s32.totalorder %s42, 0
      %p289 = por %p287, %p288
      %s291 = sadd.s32 %s290, 1
      %p294 = scmp.eq.s32.totalorder %s36, 1
      %p295 = scmp.ne.s32.totalorder %s290, %s292
      %p296 = scmp.eq.s32.totalorder %s36, 0
      %p297 = por %p295, %p296
      %p298 = scmp.ne.s32.totalorder %s290, %s292
      %p299 = scmp.eq.s32.totalorder %s41, 1
      %p300 = por %p298, %p299
      %p301 = scmp.ne.s32.totalorder %s292, %s293
      %p302 = scmp.eq.s32.totalorder %s41, 0
      %p303 = por %p301, %p302
      %p304 = scmp.ne.s32.totalorder %s292, %s293
      %p305 = scmp.eq.s32.totalorder %s42, 1
      %p306 = por %p304, %p305
      %p308 = scmp.ne.s32.totalorder %s293, %s307
      %p309 = scmp.eq.s32.totalorder %s42, 0
      %p310 = por %p308, %p309
      %s312 = sadd.s32 %s311, 1
      %p315 = scmp.eq.s32.totalorder %s36, 1
      %p316 = scmp.ne.s32.totalorder %s311, %s313
      %p317 = scmp.eq.s32.totalorder %s36, 0
      %p318 = por %p316, %p317
      %p319 = scmp.ne.s32.totalorder %s311, %s313
      %p320 = scmp.eq.s32.totalorder %s41, 1
      %p321 = por %p319, %p320
      %p322 = scmp.ne.s32.totalorder %s313, %s314
      %p323 = scmp.eq.s32.totalorder %s41, 0
      %p324 = por %p322, %p323
      %p325 = scmp.ne.s32.totalorder %s313, %s314
      %p326 = scmp.eq.s32.totalorder %s42, 1
      %p327 = por %p325, %p326
      %p329 = scmp.ne.s32.totalorder %s314, %s328
      %p330 = scmp.eq.s32.totalorder %s42, 0
      %p331 = por %p329, %p330
      %s333 = sadd.s32 %s332, 1
      %p336 = scmp.eq.s32.totalorder %s36, 1
      %p337 = scmp.ne.s32.totalorder %s332, %s334
      %p338 = scmp.eq.s32.totalorder %s36, 0
      %p339 = por %p337, %p338
      %p340 = scmp.ne.s32.totalorder %s332, %s334
      %p341 = scmp.eq.s32.totalorder %s41, 1
      %p342 = por %p340, %p341
      %p343 = scmp.ne.s32.totalorder %s334, %s335
      %p344 = scmp.eq.s32.totalorder %s41, 0
      %p345 = por %p343, %p344
      %p346 = scmp.ne.s32.totalorder %s334, %s335
      %p347 = scmp.eq.s32.totalorder %s42, 1
      %p348 = por %p346, %p347
      %p350 = scmp.ne.s32.totalorder %s335, %s349
      %p351 = scmp.eq.s32.totalorder %s42, 0
      %p352 = por %p350, %p351
      %s354 = sadd.s32 %s353, 1
      %p357 = scmp.eq.s32.totalorder %s36, 1
      %p358 = scmp.ne.s32.totalorder %s353, %s355
      %p359 = scmp.eq.s32.totalorder %s36, 0
      %p360 = por %p358, %p359
      %p361 = scmp.ne.s32.totalorder %s353, %s355
      %p362 = scmp.eq.s32.totalorder %s41, 1
      %p363 = por %p361, %p362
      %p364 = scmp.ne.s32.totalorder %s355, %s356
      %p365 = scmp.eq.s32.totalorder %s41, 0
      %p366 = por %p364, %p365
      %p367 = scmp.ne.s32.totalorder %s355, %s356
      %p368 = scmp.eq.s32.totalorder %s42, 1
      %p369 = por %p367, %p368
      %p371 = scmp.ne.s32.totalorder %s356, %s370
      %p372 = scmp.eq.s32.totalorder %s42, 0
      %p373 = por %p371, %p372
      %s375 = sadd.s32 %s374, 1
      %p378 = scmp.eq.s32.totalorder %s36, 1
      %p379 = scmp.ne.s32.totalorder %s374, %s376
      %p380 = scmp.eq.s32.totalorder %s36, 0
      %p381 = por %p379, %p380
      %p382 = scmp.ne.s32.totalorder %s374, %s376
      %p383 = scmp.eq.s32.totalorder %s41, 1
      %p384 = por %p382, %p383
      %p385 = scmp.ne.s32.totalorder %s376, %s377
      %p386 = scmp.eq.s32.totalorder %s41, 0
      %p387 = por %p385, %p386
      %p388 = scmp.ne.s32.totalorder %s376, %s377
      %p389 = scmp.eq.s32.totalorder %s42, 1
      %p390 = por %p388, %p389
      %p392 = scmp.ne.s32.totalorder %s377, %s391
      %p393 = scmp.eq.s32.totalorder %s42, 0
      %p394 = por %p392, %p393
      %s396 = sadd.s32 %s395, 1
      %p399 = scmp.eq.s32.totalorder %s36, 1
      %p400 = scmp.ne.s32.totalorder %s395, %s397
      %p401 = scmp.eq.s32.totalorder %s36, 0
      %p402 = por %p400, %p401
      %p403 = scmp.ne.s32.totalorder %s395, %s397
      %p404 = scmp.eq.s32.totalorder %s41, 1
      %p405 = por %p403, %p404
      %p406 = scmp.ne.s32.totalorder %s397, %s398
      %p407 = scmp.eq.s32.totalorder %s41, 0
      %p408 = por %p406, %p407
      %p409 = scmp.ne.s32.totalorder %s397, %s398
      %p410 = scmp.eq.s32.totalorder %s42, 1
      %p411 = por %p409, %p410
      %p413 = scmp.ne.s32.totalorder %s398, %s412
      %p414 = scmp.eq.s32.totalorder %s42, 0
      %p415 = por %p413, %p414
      %s417 = sadd.s32 %s416, 1
      %p420 = scmp.eq.s32.totalorder %s36, 1
      %p421 = scmp.ne.s32.totalorder %s416, %s418
      %p422 = scmp.eq.s32.totalorder %s36, 0
      %p423 = por %p421, %p422
      %p424 = scmp.ne.s32.totalorder %s416, %s418
      %p425 = scmp.eq.s32.totalorder %s41, 1
      %p426 = por %p424, %p425
      %p427 = scmp.ne.s32.totalorder %s418, %s419
      %p428 = scmp.eq.s32.totalorder %s41, 0
      %p429 = por %p427, %p428
      %p430 = scmp.ne.s32.totalorder %s418, %s419
      %p431 = scmp.eq.s32.totalorder %s42, 1
      %p432 = por %p430, %p431
      %p434 = scmp.ne.s32.totalorder %s419, %s433
      %p435 = scmp.eq.s32.totalorder %s42, 0
      %p436 = por %p434, %p435
      %s438 = sadd.s32 %s437, 1
      %p441 = scmp.eq.s32.totalorder %s36, 1
      %p442 = scmp.ne.s32.totalorder %s437, %s439
      %p443 = scmp.eq.s32.totalorder %s36, 0
      %p444 = por %p442, %p443
      %p445 = scmp.ne.s32.totalorder %s437, %s439
      %p446 = scmp.eq.s32.totalorder %s41, 1
      %p447 = por %p445, %p446
      %p448 = scmp.ne.s32.totalorder %s439, %s440
      %p449 = scmp.eq.s32.totalorder %s41, 0
      %p450 = por %p448, %p449
      %p451 = scmp.ne.s32.totalorder %s439, %s440
      %p452 = scmp.eq.s32.totalorder %s42, 1
      %p453 = por %p451, %p452
      %p455 = scmp.ne.s32.totalorder %s440, %s454
      %p456 = scmp.eq.s32.totalorder %s42, 0
      %p457 = por %p455, %p456
      %s458 = ssub.s32 %s43, %s55
      %s459 = ssub.s32 %s44, %s51
      %s460 = sor.u32 %s458, %s459
      %p461 = scmp.eq.s32.totalorder %s460, 0
      %s463 = sadd.s32 %s462, 1
      %s464 = scalar_select %p461, %s462, %s463
      %p467 = pneg %p461
      %p468 = scmp.eq.s32.totalorder %s36, 1
      %p469 = por %p467, %p468
      %p470 = scmp.ne.s32.totalorder %s462, %s465
      %p471 = scmp.eq.s32.totalorder %s36, 0
      %p472 = por %p470, %p471
      %p473 = scmp.ne.s32.totalorder %s462, %s465
      %p474 = scmp.eq.s32.totalorder %s41, 1
      %p475 = por %p473, %p474
      %p476 = scmp.ne.s32.totalorder %s465, %s466
      %p477 = scmp.eq.s32.totalorder %s41, 0
      %p478 = por %p476, %p477
      %p479 = scmp.ne.s32.totalorder %s465, %s466
      %p480 = scmp.eq.s32.totalorder %s42, 1
      %p481 = por %p479, %p480
      %p483 = scmp.ne.s32.totalorder %s466, %s482
      %p484 = scmp.eq.s32.totalorder %s42, 0
      %p485 = por %p483, %p484
      %p486 = scmp.le.s32.totalorder 1, %s36
      %p487 = scmp.lt.s32.totalorder %s36, 3
      %p488 = pnand %p486, %p487
      %p489 = pneg %p488
      // Predicated region
      $region9: #{tpu_custom_call.1} parent=5 // pred_check
        _
      $region10: #{tpu_custom_call.1} parent=5 // pred_check_branch
        %491 = sbr.rel (%p488) target = $region12
      $region11: #{tpu_custom_call.1} parent=5 // pred_region
        %s492 = ssub.s32 %s36, 1
        // Predicated region
        $region13: #{tpu_custom_call.1} parent=11 // pred_check
          %p493 = pneg %p177
        $region14: #{tpu_custom_call.1} parent=11 // pred_check_branch
          %495 = sbr.rel (%p493) target = $region16
        $region15: #{tpu_custom_call.1} parent=11 // pred_region
          %s497 = ssub.s32 128, 128
          %498 = vsyncadd [#allocation8], %s497
          %s499 = sshll.u32 [#allocation9], 4
          %s500 = int_to_ptr.vmem [resolvable:$true] %s499
          %505 = dma.hbm_to_vmem [thread:$0]  %s4, 128, %s500, [#allocation8], 64, 64, 4
        $region16: #{tpu_custom_call.1} parent=11 // pred_fallthru
          _
        // Predicated region
        $region17: #{tpu_custom_call.1} parent=11 // pred_check
          %p506 = pneg %p198
        $region18: #{tpu_custom_call.1} parent=11 // pred_check_branch
          %508 = sbr.rel (%p506) target = $region20
        $region19: #{tpu_custom_call.1} parent=11 // pred_region
          %s510 = ssub.s32 256, 256
          %511 = vsyncadd [#allocation11], %s510
          %s512 = sshll.u32 [#allocation10], 4
          %s513 = int_to_ptr.vmem [resolvable:$true] %s512
          %518 = dma.hbm_to_vmem [thread:$0]  %s5, 256, %s513, [#allocation11], 128, 128, 8
        $region20: #{tpu_custom_call.1} parent=11 // pred_fallthru
          _
        // Predicated region
        $region21: #{tpu_custom_call.1} parent=11 // pred_check
          %p519 = pneg %p219
        $region22: #{tpu_custom_call.1} parent=11 // pred_check_branch
          %521 = sbr.rel (%p519) target = $region24
        $region23: #{tpu_custom_call.1} parent=11 // pred_region
          %s523 = ssub.s32 256, 256
          %524 = vsyncadd [#allocation11], %s523
          %s525 = sshll.u32 [#allocation12], 4
          %s526 = int_to_ptr.vmem [resolvable:$true] %s525
          %531 = dma.hbm_to_vmem [thread:$0]  %s6, 256, %s526, [#allocation11], 64, 64, 4
        $region24: #{tpu_custom_call.1} parent=11 // pred_fallthru
          _
        // Predicated region
        $region25: #{tpu_custom_call.1} parent=11 // pred_check
          %p532 = pneg %p240
        $region26: #{tpu_custom_call.1} parent=11 // pred_check_branch
          %534 = sbr.rel (%p532) target = $region28
        $region27: #{tpu_custom_call.1} parent=11 // pred_region
          %s536 = ssub.s32 16, 16
          %537 = vsyncadd [#allocation14], %s536
          %s539 = sshll.u32 [#allocation13], 4
          %s540 = int_to_ptr.vmem [resolvable:$true] %s539
          %542 = dma.hbm_to_vmem [thread:$0]  %s7, 16, %s540, [#allocation14]
        $region28: #{tpu_custom_call.1} parent=11 // pred_fallthru
          _
        // Predicated region
        $region29: #{tpu_custom_call.1} parent=11 // pred_check
          %p543 = pneg %p261
        $region30: #{tpu_custom_call.1} parent=11 // pred_check_branch
          %545 = sbr.rel (%p543) target = $region32
        $region31: #{tpu_custom_call.1} parent=11 // pred_region
          _
        $region32: #{tpu_custom_call.1} parent=11 // pred_fallthru
          _
        // Predicated region
        $region33: #{tpu_custom_call.1} parent=11 // pred_check
          %p546 = pneg %p282
        $region34: #{tpu_custom_call.1} parent=11 // pred_check_branch
          %548 = sbr.rel (%p546) target = $region36
        $region35: #{tpu_custom_call.1} parent=11 // pred_region
          _
        $region36: #{tpu_custom_call.1} parent=11 // pred_fallthru
          _
        // Predicated region
        $region37: #{tpu_custom_call.1} parent=11 // pred_check
          %p549 = pneg %p303
        $region38: #{tpu_custom_call.1} parent=11 // pred_check_branch
          %551 = sbr.rel (%p549) target = $region40
        $region39: #{tpu_custom_call.1} parent=11 // pred_region
          %s553 = ssub.s32 256, 256
          %554 = vsyncadd [#allocation14], %s553
          %s555 = sshll.u32 [#allocation15], 4
          %s556 = int_to_ptr.vmem [resolvable:$true] %s555
          %561 = dma.hbm_to_vmem [thread:$0]  %s10, 256, %s556, [#allocation14], 64, 64, 4
        $region40: #{tpu_custom_call.1} parent=11 // pred_fallthru
          _
        // Predicated region
        $region41: #{tpu_custom_call.1} parent=11 // pred_check
          %p562 = pneg %p324
        $region42: #{tpu_custom_call.1} parent=11 // pred_check_branch
          %564 = sbr.rel (%p562) target = $region44
        $region43: #{tpu_custom_call.1} parent=11 // pred_region
          _
        $region44: #{tpu_custom_call.1} parent=11 // pred_fallthru
          _
        // Predicated region
        $region45: #{tpu_custom_call.1} parent=11 // pred_check
          %p565 = pneg %p345
        $region46: #{tpu_custom_call.1} parent=11 // pred_check_branch
          %567 = sbr.rel (%p565) target = $region48
        $region47: #{tpu_custom_call.1} parent=11 // pred_region
          %s569 = ssub.s32 256, 256
          %570 = vsyncadd [#allocation17], %s569
          %s571 = sshll.u32 [#allocation16], 4
          %s572 = int_to_ptr.vmem [resolvable:$true] %s571
          %577 = dma.hbm_to_vmem [thread:$0]  %s12, 256, %s572, [#allocation17], 64, 64, 4
        $region48: #{tpu_custom_call.1} parent=11 // pred_fallthru
          _
        // Predicated region
        $region49: #{tpu_custom_call.1} parent=11 // pred_check
          %p578 = pneg %p366
        $region50: #{tpu_custom_call.1} parent=11 // pred_check_branch
          %580 = sbr.rel (%p578) target = $region52
        $region51: #{tpu_custom_call.1} parent=11 // pred_region
          _
        $region52: #{tpu_custom_call.1} parent=11 // pred_fallthru
          _
        // Predicated region
        $region53: #{tpu_custom_call.1} parent=11 // pred_check
          %p581 = pneg %p387
        $region54: #{tpu_custom_call.1} parent=11 // pred_check_branch
          %583 = sbr.rel (%p581) target = $region56
        $region55: #{tpu_custom_call.1} parent=11 // pred_region
          _
        $region56: #{tpu_custom_call.1} parent=11 // pred_fallthru
          _
        // Predicated region
        $region57: #{tpu_custom_call.1} parent=11 // pred_check
          %p584 = pneg %p408
        $region58: #{tpu_custom_call.1} parent=11 // pred_check_branch
          %586 = sbr.rel (%p584) target = $region60
        $region59: #{tpu_custom_call.1} parent=11 // pred_region
          _
        $region60: #{tpu_custom_call.1} parent=11 // pred_fallthru
          _
        // Predicated region
        $region61: #{tpu_custom_call.1} parent=11 // pred_check
          %p587 = pneg %p429
        $region62: #{tpu_custom_call.1} parent=11 // pred_check_branch
          %589 = sbr.rel (%p587) target = $region64
        $region63: #{tpu_custom_call.1} parent=11 // pred_region
          _
        $region64: #{tpu_custom_call.1} parent=11 // pred_fallthru
          _
        // Predicated region
        $region65: #{tpu_custom_call.1} parent=11 // pred_check
          %p590 = pneg %p450
        $region66: #{tpu_custom_call.1} parent=11 // pred_check_branch
          %592 = sbr.rel (%p590) target = $region68
        $region67: #{tpu_custom_call.1} parent=11 // pred_region
          _
        $region68: #{tpu_custom_call.1} parent=11 // pred_fallthru
          _
      $region12: #{tpu_custom_call.1} parent=5 // pred_fallthru
        _
      %p593 = scmp.lt.s32.totalorder %s36, 2
      // Predicated region
      $region69: #{tpu_custom_call.1} parent=5 // pred_check
        %p594 = pneg %p593
      $region70: #{tpu_custom_call.1} parent=5 // pred_check_branch
        %596 = sbr.rel (%p594) target = $region72
      $region71: #{tpu_custom_call.1} parent=5 // pred_region
        // Predicated region
        $region73: #{tpu_custom_call.1} parent=71 // pred_check
          %p597 = pneg %p70
        $region74: #{tpu_custom_call.1} parent=71 // pred_check_branch
          %599 = sbr.rel (%p597) target = $region76
        $region75: #{tpu_custom_call.1} parent=71 // pred_region
          %s600 = smul.u32 2, %s44
          %p601 = scmp.lt.s32.totalorder %s43, 1
          %s602 = scalar_select %p601, %s43, 1
          %p603 = scmp.lt.s32.totalorder %s600, 1
          %s604 = scalar_select %p603, %s600, 1
          %s605 = smul.addr %s602, 2
          %s606 = sadd.s32 %s604, %s605
          %s607 = smul.addr %s606, 8
          %s608 = scalar_lea.vmem %s0, %s607
          %s609 = smul.u32 2, %s44
        $region76: #{tpu_custom_call.1} parent=71 // pred_fallthru
          _
        // Predicated region
        $region77: #{tpu_custom_call.1} parent=71 // pred_check
          %p610 = pneg %p96
        $region78: #{tpu_custom_call.1} parent=71 // pred_check_branch
          %612 = sbr.rel (%p610) target = $region80
        $region79: #{tpu_custom_call.1} parent=71 // pred_region
          %s613 = sand.u32 %s86, 1
          %s614 = scalar_lea.sflag [#allocation5], %s613
          %s615 = sand.u32 %s86, 1
          %s616 = smul.addr %s615, 8
          %s617 = scalar_lea.vmem [#allocation4], %s616
          %s619 = ssub.s32 128, 128
          %620 = vsyncadd %s614, %s619
          %s621 = smul.addr %s43, 2
          %s622 = smul.addr %s621, 64
          %s623 = scalar_lea.hbm %s1, %s622
          %s624 = sshll.u32 %s617, 4
          %s625 = int_to_ptr.vmem [resolvable:$true] %s624
          %630 = dma.hbm_to_vmem [thread:$0]  %s623, 128, %s625, %s614, 64, 64, 4
        $region80: #{tpu_custom_call.1} parent=71 // pred_fallthru
          _
        // Predicated region
        $region81: #{tpu_custom_call.1} parent=71 // pred_check
          %p631 = pneg %p124
        $region82: #{tpu_custom_call.1} parent=71 // pred_check_branch
          %633 = sbr.rel (%p631) target = $region84
        $region83: #{tpu_custom_call.1} parent=71 // pred_region
          %s634 = smul.u32 2, %s44
          %p635 = scmp.lt.s32.totalorder %s43, 1
          %s636 = scalar_select %p635, %s43, 1
          %p637 = scmp.lt.s32.totalorder %s634, 1
          %s638 = scalar_select %p637, %s634, 1
          %s639 = smul.addr %s636, 2
          %s640 = sadd.s32 %s638, %s639
          %s641 = smul.addr %s640, 8
          %s642 = scalar_lea.vmem %s2, %s641
          %s643 = smul.u32 2, %s44
        $region84: #{tpu_custom_call.1} parent=71 // pred_fallthru
          _
        // Predicated region
        $region85: #{tpu_custom_call.1} parent=71 // pred_check
          %p644 = pneg %p150
        $region86: #{tpu_custom_call.1} parent=71 // pred_check_branch
          %646 = sbr.rel (%p644) target = $region88
        $region87: #{tpu_custom_call.1} parent=71 // pred_region
          %s647 = sand.u32 %s36, 1
          %s648 = scalar_lea.sflag [#allocation8], %s647
          %s649 = sand.u32 %s140, 1
          %s650 = scalar_lea.vmem [#allocation7], %s649
          %s652 = ssub.s32 16, 16
          %653 = vsyncadd %s648, %s652
          %s654 = smul.addr %s43, 16
          %s655 = scalar_lea.hbm %s3, %s654
          %s657 = sshll.u32 %s650, 4
          %s658 = int_to_ptr.vmem [resolvable:$true] %s657
          %660 = dma.hbm_to_vmem [thread:$0]  %s655, 16, %s658, %s648
        $region88: #{tpu_custom_call.1} parent=71 // pred_fallthru
          _
      $region72: #{tpu_custom_call.1} parent=5 // pred_fallthru
        _
      %p661 = scmp.le.s32.totalorder 1, %s36
      %p662 = scmp.lt.s32.totalorder %s36, 3
      %p663 = pnand %p661, %p662
      %p664 = pneg %p663
      // Predicated region
      $region89: #{tpu_custom_call.1} parent=5 // pred_check
        _
      $region90: #{tpu_custom_call.1} parent=5 // pred_check_branch
        %666 = sbr.rel (%p663) target = $region92
      $region91: #{tpu_custom_call.1} parent=5 // pred_region
        %s667 = ssub.s32 %s36, 1
        %s668 = sand.u32 %s89, 1
        %s669 = scalar_lea.sflag [#allocation5], %s668
        %s670 = sand.u32 %s89, 1
        %s671 = smul.addr %s670, 8
        %s672 = scalar_lea.vmem [#allocation4], %s671
        // Predicated region
        $region93: #{tpu_custom_call.1} parent=91 // pred_check
          %p673 = pneg %p102
        $region94: #{tpu_custom_call.1} parent=91 // pred_check_branch
          %675 = sbr.rel (%p673) target = $region96
        $region95: #{tpu_custom_call.1} parent=91 // pred_region
          %676 = dma.done %s669, 128
        $region96: #{tpu_custom_call.1} parent=91 // pred_fallthru
          _
        %s677 = sand.u32 %s41, 1
        %s678 = scalar_lea.sflag [#allocation8], %s677
        %s679 = sand.u32 %s143, 1
        %s680 = scalar_lea.vmem [#allocation7], %s679
        // Predicated region
        $region97: #{tpu_custom_call.1} parent=91 // pred_check
          %p681 = pneg %p156
        $region98: #{tpu_custom_call.1} parent=91 // pred_check_branch
          %683 = sbr.rel (%p681) target = $region100
        $region99: #{tpu_custom_call.1} parent=91 // pred_region
          %684 = dma.done %s678, 16
        $region100: #{tpu_custom_call.1} parent=91 // pred_fallthru
          _
        // Predicated region
        $region101: #{tpu_custom_call.1} parent=91 // pred_check
          %p685 = pneg %p177
        $region102: #{tpu_custom_call.1} parent=91 // pred_check_branch
          %687 = sbr.rel (%p685) target = $region104
        $region103: #{tpu_custom_call.1} parent=91 // pred_region
          %688 = dma.done [#allocation8], 128
        $region104: #{tpu_custom_call.1} parent=91 // pred_fallthru
          _
        // Predicated region
        $region105: #{tpu_custom_call.1} parent=91 // pred_check
          %p689 = pneg %p198
        $region106: #{tpu_custom_call.1} parent=91 // pred_check_branch
          %691 = sbr.rel (%p689) target = $region108
        $region107: #{tpu_custom_call.1} parent=91 // pred_region
          %692 = dma.done [#allocation11], 256
        $region108: #{tpu_custom_call.1} parent=91 // pred_fallthru
          _
        // Predicated region
        $region109: #{tpu_custom_call.1} parent=91 // pred_check
          %p693 = pneg %p219
        $region110: #{tpu_custom_call.1} parent=91 // pred_check_branch
          %695 = sbr.rel (%p693) target = $region112
        $region111: #{tpu_custom_call.1} parent=91 // pred_region
          %696 = dma.done [#allocation11], 256
        $region112: #{tpu_custom_call.1} parent=91 // pred_fallthru
          _
        // Predicated region
        $region113: #{tpu_custom_call.1} parent=91 // pred_check
          %p697 = pneg %p240
        $region114: #{tpu_custom_call.1} parent=91 // pred_check_branch
          %699 = sbr.rel (%p697) target = $region116
        $region115: #{tpu_custom_call.1} parent=91 // pred_region
          %700 = dma.done [#allocation14], 16
        $region116: #{tpu_custom_call.1} parent=91 // pred_fallthru
          _
        // Predicated region
        $region117: #{tpu_custom_call.1} parent=91 // pred_check
          %p701 = pneg %p303
        $region118: #{tpu_custom_call.1} parent=91 // pred_check_branch
          %703 = sbr.rel (%p701) target = $region120
        $region119: #{tpu_custom_call.1} parent=91 // pred_region
          %704 = dma.done [#allocation14], 256
        $region120: #{tpu_custom_call.1} parent=91 // pred_fallthru
          _
        // Predicated region
        $region121: #{tpu_custom_call.1} parent=91 // pred_check
          %p705 = pneg %p345
        $region122: #{tpu_custom_call.1} parent=91 // pred_check_branch
          %707 = sbr.rel (%p705) target = $region124
        $region123: #{tpu_custom_call.1} parent=91 // pred_region
          %708 = dma.done [#allocation17], 256
        $region124: #{tpu_custom_call.1} parent=91 // pred_fallthru
          _
        %s709 = smul.u32 2, %s46
        %p710 = scmp.lt.s32.totalorder %s45, 1
        %s711 = scalar_select %p710, %s45, 1
        %p712 = scmp.lt.s32.totalorder %s709, 1
        %s713 = scalar_select %p712, %s709, 1
        %s714 = smul.addr %s711, 2
        %s715 = sadd.s32 %s713, %s714
        %s716 = smul.addr %s715, 8
        %s717 = scalar_lea.vmem %s0, %s716
        %p718 = pneg %p76
        %p719 = pneg %p73
        %s720 = sand.u32 %s89, 1
        %s721 = scalar_lea.sflag [#allocation5], %s720
        %s722 = sand.u32 %s89, 1
        %s723 = smul.addr %s722, 8
        %s724 = scalar_lea.vmem [#allocation4], %s723
        %p725 = pneg %p102
        %p726 = pneg %p99
        %s727 = smul.u32 2, %s46
        %p728 = scmp.lt.s32.totalorder %s45, 1
        %s729 = scalar_select %p728, %s45, 1
        %p730 = scmp.lt.s32.totalorder %s727, 1
        %s731 = scalar_select %p730, %s727, 1
        %s732 = smul.addr %s729, 2
        %s733 = sadd.s32 %s731, %s732
        %s734 = smul.addr %s733, 8
        %s735 = scalar_lea.vmem %s2, %s734
        %p736 = pneg %p130
        %p737 = pneg %p127
        %s738 = sand.u32 %s41, 1
        %s739 = scalar_lea.sflag [#allocation8], %s738
        %s740 = sand.u32 %s143, 1
        %s741 = scalar_lea.vmem [#allocation7], %s740
        %p742 = pneg %p156
        %p743 = pneg %p153
        %p744 = pneg %p177
        %p745 = pneg %p174
        %p746 = pneg %p198
        %p747 = pneg %p195
        %p748 = pneg %p219
        %p749 = pneg %p216
        %p750 = pneg %p240
        %p751 = pneg %p237
        %p752 = pneg %p261
        %p753 = pneg %p258
        %p754 = pneg %p282
        %p755 = pneg %p279
        %p756 = pneg %p303
        %p757 = pneg %p300
        %p758 = pneg %p324
        %p759 = pneg %p321
        %p760 = pneg %p345
        %p761 = pneg %p342
        %p762 = pneg %p366
        %p763 = pneg %p363
        %p764 = pneg %p387
        %p765 = pneg %p384
        %p766 = pneg %p408
        %p767 = pneg %p405
        %p768 = pneg %p429
        %p769 = pneg %p426
        %p770 = pneg %p450
        %p771 = pneg %p447
        %p772 = pneg %p478
        %p773 = pneg %p475
        %s774 = sand.u32 %s465, 1
        %s775 = scalar_lea.sflag [#allocation6], %s774
        %s776 = sand.u32 %s465, 1
        %s777 = smul.addr %s776, 16
        %s778 = scalar_lea.vmem [#allocation18], %s777
        %s779 = smul.u32 2, %s46
        %p780 = scmp.lt.s32.totalorder %s45, 1
        %s781 = scalar_select %p780, %s45, 1
        %p782 = scmp.lt.s32.totalorder %s779, 1
        %s783 = scalar_select %p782, %s779, 1
        %s784 = smul.addr %s781, 2
        %s785 = sadd.s32 %s783, %s784
        %s786 = smul.addr %s785, 8
        %s787 = scalar_lea.vmem %s0, %s786
        %s788 = smul.u32 2, %s46
        %s789 = smul.u32 2, %s46
        %p790 = scmp.lt.s32.totalorder %s45, 1
        %s791 = scalar_select %p790, %s45, 1
        %p792 = scmp.lt.s32.totalorder %s789, 1
        %s793 = scalar_select %p792, %s789, 1
        %s794 = smul.addr %s791, 2
        %s795 = sadd.s32 %s793, %s794
        %s796 = smul.addr %s795, 8
        %s797 = scalar_lea.vmem %s2, %s796
        %s798 = smul.u32 2, %s46
        %s799 = smul.u32 2, %s46
        %v801 = vld [vmem:[%s787] sm:$0xff]
        %v802 = vld [vmem:[%s787 + $0x8] sm:$0xff]
        %v803 = vld [vmem:[%s797] sm:$0xff]
        %v804 = vld [vmem:[%s797 + $0x8] sm:$0xff]
        %v805 = vld [vmem:[%s680] sm:$0x1]
        %p806 = scmp.eq.s32.totalorder %s46, 0
        // Predicated region
        $region125: #{tpu_custom_call.1} parent=91 // pred_check
          %p807 = pneg %p806
        $region126: #{tpu_custom_call.1} parent=91 // pred_check_branch
          %809 = sbr.rel (%p807) target = $region128
        $region127: #{tpu_custom_call.1} parent=91 // pred_region
          %v810 = vld [vmem:[%s672] sm:$0xf]
          %v811 = vld [vmem:[%s672 + $0x4] sm:$0xf]
          %v812 = vld [vmem:[%s8] sm:$0xf]
          %v813 = vld [vmem:[%s8 + $0x4] sm:$0xf]
          %v814 = vld [vmem:[%s8 + $0x8] sm:$0xf]
          %v815 = vld [vmem:[%s8 + $0xc] sm:$0xf]
          %v816 = vld [vmem:[%s9] sm:$0x1]
          %v818 = vlaneseq
          %v819 = vshrl.u32 %v818, 7
          %v820 = vsub.s32 0, %v819
          %v821 = vrot.slane %v816, %v820
          %v825 = vunpack.c.l.b16 %v810
          %v826 = vunpack.c.l.b16 %v811
          %v827 = vpack.c.b16 %v826, %v825
          %v832 = vunpack.c.l.b16 %v812
          %v833 = vunpack.c.l.b16 %v813
          %v834 = vunpack.c.l.b16 %v814
          %v835 = vunpack.c.l.b16 %v815
          %v836 = vpack.c.b16 %v833, %v832
          %v837 = vpack.c.b16 %v835, %v834
          %vm840 = vcmask 261120
          %v842 = vsel %vm840, %v827, 0
          %844 = vmatprep.subr.bf16.mxu0 0
          %845 = vmatpush1.bf16.msra.mxu0 0
          %846 = vmatprep.subr.bf16.mxu0 0
          %847 = vmatpush1.bf16.msra.mxu0 0
          %848 = vmatprep.subr.bf16.mxu0 0
          %849 = vmatpush1.bf16.msra.mxu0 0
          %850 = vmatprep.subr.bf16.mxu0 0
          %851 = vmatpush1.bf16.msra.mxu0 0
          %852 = vmatprep.subr.bf16.mxu0 0
          %853 = vmatpush1.bf16.msra.mxu0 0
          %854 = vmatprep.subr.bf16.mxu0 0
          %855 = vmatpush1.bf16.msra.mxu0 0
          %856 = vmatprep.subr.bf16.mxu0 0
          %857 = vmatpush1.bf16.msra.mxu0 %v837
          %858 = vmatprep.subr.bf16.mxu0 0
          %859 = vmatpush1.bf16.msra.mxu0 %v836
          %860 = vmatprep.subr.bf16.mxu0 0
          %861 = vmatpush2.bf16.msra.mxu0 0
          %862 = vmatprep.subr.bf16.mxu0 0
          %863 = vmatpush2.bf16.msra.mxu0 0
          %864 = vmatprep.subr.bf16.mxu0 0
          %865 = vmatpush2.bf16.msra.mxu0 0
          %866 = vmatprep.subr.bf16.mxu0 0
          %867 = vmatpush2.bf16.msra.mxu0 0
          %868 = vmatprep.subr.bf16.mxu0 0
          %869 = vmatpush2.bf16.msra.mxu0 0
          %870 = vmatprep.subr.bf16.mxu0 0
          %871 = vmatpush2.bf16.msra.mxu0 0
          %872 = vmatprep.subr.bf16.mxu0 0
          %873 = vmatpush2.bf16.msra.mxu0 0
          %874 = vmatprep.subr.bf16.mxu0 0
          %875 = vmatpush2.bf16.msra.mxu0 0
          %876 = vmatprep.mubr.bf16.mxu0 0
          %877 = vmatmul.mubr.bf16.gmra.mxu0 %v842
          %v878 = vpop.f32.mrf.mxu0
          %v879 = vadd.f32 %v821, %v878
          %v880 = vpop.f32.mrf.mxu0
          %v881 = vpop.f32.mrf.mxu0
          %v882 = vadd.f32 %v821, %v881
          %v883 = vpop.f32.mrf.mxu0
          %884 = vdwg.mxu0
          %v885 = vld [vmem:[#allocation15] sm:$0xf]
          %v886 = vld [vmem:[#allocation15 + $0x4] sm:$0xf]
          %v887 = vld [vmem:[#allocation15 + $0x8] sm:$0xf]
          %v888 = vld [vmem:[#allocation15 + $0xc] sm:$0xf]
          %v889 = vld [vmem:[%s11] sm:$0x1]
          %v891 = vlaneseq
          %v892 = vshrl.u32 %v891, 7
          %v893 = vsub.s32 0, %v892
          %v894 = vrot.slane %v889, %v893
          %v900 = vunpack.c.l.b16 %v885
          %v901 = vunpack.c.l.b16 %v886
          %v902 = vunpack.c.l.b16 %v887
          %v903 = vunpack.c.l.b16 %v888
          %v904 = vpack.c.b16 %v901, %v900
          %v905 = vpack.c.b16 %v903, %v902
          %908 = vmatprep.subr.bf16.mxu0 0
          %909 = vmatpush1.bf16.msra.mxu0 0
          %910 = vmatprep.subr.bf16.mxu0 0
          %911 = vmatpush1.bf16.msra.mxu0 0
          %912 = vmatprep.subr.bf16.mxu0 0
          %913 = vmatpush1.bf16.msra.mxu0 0
          %914 = vmatprep.subr.bf16.mxu0 0
          %915 = vmatpush1.bf16.msra.mxu0 0
          %916 = vmatprep.subr.bf16.mxu0 0
          %917 = vmatpush1.bf16.msra.mxu0 0
          %918 = vmatprep.subr.bf16.mxu0 0
          %919 = vmatpush1.bf16.msra.mxu0 0
          %920 = vmatprep.subr.bf16.mxu0 0
          %921 = vmatpush1.bf16.msra.mxu0 %v905
          %922 = vmatprep.subr.bf16.mxu0 0
          %923 = vmatpush1.bf16.msra.mxu0 %v904
          %924 = vmatprep.subr.bf16.mxu0 0
          %925 = vmatpush2.bf16.msra.mxu0 0
          %926 = vmatprep.subr.bf16.mxu0 0
          %927 = vmatpush2.bf16.msra.mxu0 0
          %928 = vmatprep.subr.bf16.mxu0 0
          %929 = vmatpush2.bf16.msra.mxu0 0
          %930 = vmatprep.subr.bf16.mxu0 0
          %931 = vmatpush2.bf16.msra.mxu0 0
          %932 = vmatprep.subr.bf16.mxu0 0
          %933 = vmatpush2.bf16.msra.mxu0 0
          %934 = vmatprep.subr.bf16.mxu0 0
          %935 = vmatpush2.bf16.msra.mxu0 0
          %936 = vmatprep.subr.bf16.mxu0 0
          %937 = vmatpush2.bf16.msra.mxu0 0
          %938 = vmatprep.subr.bf16.mxu0 0
          %939 = vmatpush2.bf16.msra.mxu0 0
          %940 = vmatprep.mubr.bf16.mxu0 0
          %941 = vmatmul.mubr.bf16.gmra.mxu0 %v842
          %v942 = vpop.f32.mrf.mxu0
          %v943 = vadd.f32 %v894, %v942
          %v944 = vpop.f32.mrf.mxu0
          %v945 = vpop.f32.mrf.mxu0
          %v946 = vadd.f32 %v894, %v945
          %v947 = vpop.f32.mrf.mxu0
          %948 = vdwg.mxu0
          %951 = vrot.lane.b32.xlu0 %v879, 112
          %v952 = vpop.permute.xlu0 %951
          %953 = vrot.lane.b32.xlu0 %v882, 112
          %v954 = vpop.permute.xlu0 %953
          %v957 = vpack.c.bf16 %v882, %v879
          %v958 = vpack.c.bf16 %v954, %v952
          %v961 = vunpack.c.l.b16 %v957
          %v962 = vunpack.c.h.b16 %v957
          %v963 = vunpack.c.l.b16 %v958
          %v964 = vunpack.c.h.b16 %v958
          %v965 = vpack.c.b16 %v961, %v961
          %v966 = vpack.c.b16 %v962, %v962
          %v967 = vpack.c.b16 %v963, %v963
          %v968 = vpack.c.b16 %v964, %v964
          %vm973 = vcmask 125952
          %974 = vst.msk [vmem:[#allocation2] sm:$0xf] %vm973, %v965
          %975 = vst.msk [vmem:[#allocation2 + $0x4] sm:$0xf] %vm973, %v966
          %976 = vst.msk [vmem:[#allocation2 + $0x8] sm:$0xf] %vm973, %v967
          %977 = vst.msk [vmem:[#allocation2 + $0xc] sm:$0xf] %vm973, %v968
          %980 = vrot.lane.b32.xlu0 %v943, 112
          %v981 = vpop.permute.xlu0 %980
          %982 = vrot.lane.b32.xlu0 %v946, 112
          %v983 = vpop.permute.xlu0 %982
          %v986 = vpack.c.bf16 %v946, %v943
          %v987 = vpack.c.bf16 %v983, %v981
          %v990 = vunpack.c.l.b16 %v986
          %v991 = vunpack.c.h.b16 %v986
          %v992 = vunpack.c.l.b16 %v987
          %v993 = vunpack.c.h.b16 %v987
          %v994 = vpack.c.b16 %v990, %v990
          %v995 = vpack.c.b16 %v991, %v991
          %v996 = vpack.c.b16 %v992, %v992
          %v997 = vpack.c.b16 %v993, %v993
          %1002 = vst.msk [vmem:[#allocation3] sm:$0xf] %vm973, %v994
          %1003 = vst.msk [vmem:[#allocation3 + $0x4] sm:$0xf] %vm973, %v995
          %1004 = vst.msk [vmem:[#allocation3 + $0x8] sm:$0xf] %vm973, %v996
          %1005 = vst.msk [vmem:[#allocation3 + $0xc] sm:$0xf] %vm973, %v997
        $region128: #{tpu_custom_call.1} parent=91 // pred_fallthru
          _
        %v1006 = vld [vmem:[#allocation2] sm:$0xf]
        %v1007 = vld [vmem:[#allocation2 + $0x4] sm:$0xf]
        %v1008 = vld [vmem:[#allocation2 + $0x8] sm:$0xf]
        %v1009 = vld [vmem:[#allocation2 + $0xc] sm:$0xf]
        %v1010 = vld [vmem:[#allocation3] sm:$0xf]
        %v1011 = vld [vmem:[#allocation3 + $0x4] sm:$0xf]
        %v1012 = vld [vmem:[#allocation3 + $0x8] sm:$0xf]
        %v1013 = vld [vmem:[#allocation3 + $0xc] sm:$0xf]
        %v1014 = vpack.c.bf16 %v802, %v801
        %v1015 = vld [vmem:[#allocation12] sm:$0xf]
        %v1016 = vld [vmem:[#allocation12 + $0x4] sm:$0xf]
        %v1017 = vld [vmem:[#allocation12 + $0x8] sm:$0xf]
        %v1018 = vld [vmem:[#allocation12 + $0xc] sm:$0xf]
        %v1019 = vld [vmem:[#allocation13] sm:$0x1]
        %v1021 = vlaneseq
        %v1022 = vshrl.u32 %v1021, 7
        %v1023 = vsub.s32 0, %v1022
        %v1024 = vrot.slane %v1019, %v1023
        %v1030 = vunpack.c.l.b16 %v1015
        %v1031 = vunpack.c.l.b16 %v1016
        %v1032 = vunpack.c.l.b16 %v1017
        %v1033 = vunpack.c.l.b16 %v1018
        %v1034 = vpack.c.b16 %v1031, %v1030
        %v1035 = vpack.c.b16 %v1033, %v1032
        %vm1038 = vcmask 261120
        %v1040 = vsel %vm1038, %v1014, 0
        %1042 = vmatprep.subr.bf16.mxu0 0
        %1043 = vmatpush1.bf16.msra.mxu0 0
        %1044 = vmatprep.subr.bf16.mxu0 0
        %1045 = vmatpush1.bf16.msra.mxu0 0
        %1046 = vmatprep.subr.bf16.mxu0 0
        %1047 = vmatpush1.bf16.msra.mxu0 0
        %1048 = vmatprep.subr.bf16.mxu0 0
        %1049 = vmatpush1.bf16.msra.mxu0 0
        %1050 = vmatprep.subr.bf16.mxu0 0
        %1051 = vmatpush1.bf16.msra.mxu0 0
        %1052 = vmatprep.subr.bf16.mxu0 0
        %1053 = vmatpush1.bf16.msra.mxu0 0
        %1054 = vmatprep.subr.bf16.mxu0 0
        %1055 = vmatpush1.bf16.msra.mxu0 %v1035
        %1056 = vmatprep.subr.bf16.mxu0 0
        %1057 = vmatpush1.bf16.msra.mxu0 %v1034
        %1058 = vmatprep.subr.bf16.mxu0 0
        %1059 = vmatpush2.bf16.msra.mxu0 0
        %1060 = vmatprep.subr.bf16.mxu0 0
        %1061 = vmatpush2.bf16.msra.mxu0 0
        %1062 = vmatprep.subr.bf16.mxu0 0
        %1063 = vmatpush2.bf16.msra.mxu0 0
        %1064 = vmatprep.subr.bf16.mxu0 0
        %1065 = vmatpush2.bf16.msra.mxu0 0
        %1066 = vmatprep.subr.bf16.mxu0 0
        %1067 = vmatpush2.bf16.msra.mxu0 0
        %1068 = vmatprep.subr.bf16.mxu0 0
        %1069 = vmatpush2.bf16.msra.mxu0 0
        %1070 = vmatprep.subr.bf16.mxu0 0
        %1071 = vmatpush2.bf16.msra.mxu0 0
        %1072 = vmatprep.subr.bf16.mxu0 0
        %1073 = vmatpush2.bf16.msra.mxu0 0
        %1074 = vmatprep.mubr.bf16.mxu0 0
        %1075 = vmatmul.mubr.bf16.gmra.mxu0 %v1040
        %v1076 = vpop.f32.mrf.mxu0
        %v1077 = vadd.f32 %v1024, %v1076
        %v1078 = vpop.f32.mrf.mxu0
        %v1079 = vpop.f32.mrf.mxu0
        %v1080 = vadd.f32 %v1024, %v1079
        %v1081 = vpop.f32.mrf.mxu0
        %1082 = vdwg.mxu0
        %1085 = vrot.lane.b32.xlu0 %v1077, 112
        %v1086 = vpop.permute.xlu0 %1085
        %1087 = vrot.lane.b32.xlu0 %v1080, 112
        %v1088 = vpop.permute.xlu0 %1087
        %v1091 = vpack.c.bf16 %v1080, %v1077
        %v1092 = vpack.c.bf16 %v1088, %v1086
        %v1093 = vld [vmem:[#allocation9] sm:$0xf]
        %v1094 = vld [vmem:[#allocation9 + $0x4] sm:$0x1]
        %v1097 = vunpack.c.l.b16 %v1093
        %v1098 = vunpack.c.l.b16 %v1094
        %v1099 = vpack.c.b16 %v1098, %v1097
        %vm1100 = vcmask 130048
        %v1102 = vsel %vm1100, %v1091, 0
        %v1105 = vsel %vm1100, %v1099, 0
        %1107 = vmatprep.subr.bf16.mxu0 0
        %1108 = vmatpush1.bf16.xpose.msra.mxu0 0
        %1109 = vmatprep.subr.bf16.mxu0 0
        %1110 = vmatpush1.bf16.xpose.msra.mxu0 0
        %1111 = vmatprep.subr.bf16.mxu0 0
        %1112 = vmatpush1.bf16.xpose.msra.mxu0 0
        %1113 = vmatprep.subr.bf16.mxu0 0
        %1114 = vmatpush1.bf16.xpose.msra.mxu0 0
        %1115 = vmatprep.subr.bf16.mxu0 0
        %1116 = vmatpush1.bf16.xpose.msra.mxu0 0
        %1117 = vmatprep.subr.bf16.mxu0 0
        %1118 = vmatpush1.bf16.xpose.msra.mxu0 0
        %1119 = vmatprep.subr.bf16.mxu0 0
        %1120 = vmatpush1.bf16.xpose.msra.mxu0 0
        %1121 = vmatprep.subr.bf16.mxu0 0
        %1122 = vmatpush1.bf16.xpose.msra.mxu0 %v1105
        %1123 = vmatprep.subr.bf16.mxu0 0
        %1124 = vmatpush2.bf16.xpose.msra.mxu0 0
        %1125 = vmatprep.subr.bf16.mxu0 0
        %1126 = vmatpush2.bf16.xpose.msra.mxu0 0
        %1127 = vmatprep.subr.bf16.mxu0 0
        %1128 = vmatpush2.bf16.xpose.msra.mxu0 0
        %1129 = vmatprep.subr.bf16.mxu0 0
        %1130 = vmatpush2.bf16.xpose.msra.mxu0 0
        %1131 = vmatprep.subr.bf16.mxu0 0
        %1132 = vmatpush2.bf16.xpose.msra.mxu0 0
        %1133 = vmatprep.subr.bf16.mxu0 0
        %1134 = vmatpush2.bf16.xpose.msra.mxu0 0
        %1135 = vmatprep.subr.bf16.mxu0 0
        %1136 = vmatpush2.bf16.xpose.msra.mxu0 0
        %1137 = vmatprep.subr.bf16.mxu0 0
        %1138 = vmatpush2.bf16.xpose.msra.mxu0 0
        %1139 = vmatprep.mubr.bf16.mxu0 0
        %1140 = vmatmul.mubr.bf16.gmra.mxu0 %v1102
        %v1141 = vpop.f32.mrf.mxu0
        %v1142 = vadd.f32 0.0, %v1141
        %v1143 = vpop.f32.mrf.mxu0
        %v1144 = vpop.f32.mrf.mxu0
        %v1145 = vadd.f32 0.0, %v1144
        %v1146 = vpop.f32.mrf.mxu0
        %1147 = vdwg.mxu0
        %v1149 = vsel %vm1100, %v1092, 0
        %1151 = vmatprep.subr.bf16.mxu0 0
        %1152 = vmatpush1.bf16.xpose.msra.mxu0 0
        %1153 = vmatprep.subr.bf16.mxu0 0
        %1154 = vmatpush1.bf16.xpose.msra.mxu0 0
        %1155 = vmatprep.subr.bf16.mxu0 0
        %1156 = vmatpush1.bf16.xpose.msra.mxu0 0
        %1157 = vmatprep.subr.bf16.mxu0 0
        %1158 = vmatpush1.bf16.xpose.msra.mxu0 0
        %1159 = vmatprep.subr.bf16.mxu0 0
        %1160 = vmatpush1.bf16.xpose.msra.mxu0 0
        %1161 = vmatprep.subr.bf16.mxu0 0
        %1162 = vmatpush1.bf16.xpose.msra.mxu0 0
        %1163 = vmatprep.subr.bf16.mxu0 0
        %1164 = vmatpush1.bf16.xpose.msra.mxu0 0
        %1165 = vmatprep.subr.bf16.mxu0 0
        %1166 = vmatpush1.bf16.xpose.msra.mxu0 %v1105
        %1167 = vmatprep.subr.bf16.mxu0 0
        %1168 = vmatpush2.bf16.xpose.msra.mxu0 0
        %1169 = vmatprep.subr.bf16.mxu0 0
        %1170 = vmatpush2.bf16.xpose.msra.mxu0 0
        %1171 = vmatprep.subr.bf16.mxu0 0
        %1172 = vmatpush2.bf16.xpose.msra.mxu0 0
        %1173 = vmatprep.subr.bf16.mxu0 0
        %1174 = vmatpush2.bf16.xpose.msra.mxu0 0
        %1175 = vmatprep.subr.bf16.mxu0 0
        %1176 = vmatpush2.bf16.xpose.msra.mxu0 0
        %1177 = vmatprep.subr.bf16.mxu0 0
        %1178 = vmatpush2.bf16.xpose.msra.mxu0 0
        %1179 = vmatprep.subr.bf16.mxu0 0
        %1180 = vmatpush2.bf16.xpose.msra.mxu0 0
        %1181 = vmatprep.subr.bf16.mxu0 0
        %1182 = vmatpush2.bf16.xpose.msra.mxu0 0
        %1183 = vmatprep.mubr.bf16.mxu0 0
        %1184 = vmatmul.mubr.bf16.gmra.mxu0 %v1149
        %v1185 = vpop.f32.mrf.mxu0
        %v1186 = vadd.f32 0.0, %v1185
        %v1187 = vpop.f32.mrf.mxu0
        %v1188 = vpop.f32.mrf.mxu0
        %v1189 = vadd.f32 0.0, %v1188
        %v1190 = vpop.f32.mrf.mxu0
        %1191 = vdwg.mxu0
        %s1192 = smul.u32 %s46, 16
        %v1193 = vlaneseq
        %v1194 = vshrl.u32 %v1193, 7
        %v1195 = vadd.s32 %v1194, 8
        %v1196 = vstv %s1192
        %v1197 = vadd.s32 %v1196, %v1194
        %v1198 = vadd.s32 %v1196, %v1195
        %v1199 = vlaneseq
        %v1200 = vand.u32 %v1199, 127
        %v1201 = vsub.s32 %v1200, %v1197
        %v1202 = vsub.s32 %v1200, %v1198
        %vm1203 = vcmp.eq.s32.totalorder %v1201, 4294967292
        %vm1204 = vcmp.eq.s32.totalorder %v1202, 4294967292
        %vm1205 = vcmp.eq.s32.totalorder %v1201, 4294967293
        %vm1206 = vcmp.eq.s32.totalorder %v1202, 4294967293
        %vm1207 = vcmp.eq.s32.totalorder %v1201, 4294967294
        %vm1208 = vcmp.eq.s32.totalorder %v1202, 4294967294
        %vm1209 = vcmp.eq.s32.totalorder %v1201, 4294967295
        %vm1210 = vcmp.eq.s32.totalorder %v1202, 4294967295
        %vm1211 = vcmp.eq.s32.totalorder %v1201, 0
        %vm1212 = vcmp.eq.s32.totalorder %v1202, 0
        %vm1213 = vcmp.eq.s32.totalorder %v1201, 1
        %vm1214 = vcmp.eq.s32.totalorder %v1202, 1
        %vm1215 = vcmp.eq.s32.totalorder %v1201, 2
        %vm1216 = vcmp.eq.s32.totalorder %v1202, 2
        %vm1217 = vcmp.eq.s32.totalorder %v1201, 3
        %vm1218 = vcmp.eq.s32.totalorder %v1202, 3
        %vm1219 = vcmp.eq.s32.totalorder %v1201, 4
        %vm1220 = vcmp.eq.s32.totalorder %v1202, 4
        %v1221 = vsel %vm1203, 1, 0
        %v1222 = vsel %vm1204, 1, 0
        %vm1223 = vcmp.eq.s32.totalorder %v1221, 1
        %vm1224 = vcmp.eq.s32.totalorder %v1222, 1
        %1226 = vset.pattern.permute.xlu0 0
        %1227 = vperm.xlu0 %1226, %v1142
        %v1228 = vpop.permute.xlu0 %1227
        %1231 = vset.pattern.permute.xlu0 0
        %1232 = vperm.xlu0 %1231, %v1145
        %v1233 = vpop.permute.xlu0 %1232
        %1236 = vset.pattern.permute.xlu0 0
        %1237 = vperm.xlu0 %1236, %v1186
        %v1238 = vpop.permute.xlu0 %1237
        %1241 = vset.pattern.permute.xlu0 0
        %1242 = vperm.xlu0 %1241, %v1189
        %v1243 = vpop.permute.xlu0 %1242
        %v1245 = vsel %vm1223, %v1228, 0.0
        %v1246 = vsel %vm1224, %v1233, 0.0
        %v1247 = vsel %vm1223, %v1238, 0.0
        %v1248 = vsel %vm1224, %v1243, 0.0
        %v1251 = vunpack.c.l.b16 %v1006
        %v1252 = vunpack.c.l.b16 %v1007
        %v1253 = vpack.c.b16 %v1252, %v1251
        %v1255 = vsel %vm1100, %v1253, 0
        %1257 = vmatprep.subr.bf16.mxu0 0
        %1258 = vmatpush1.bf16.xpose.msra.mxu0 0
        %1259 = vmatprep.subr.bf16.mxu0 0
        %1260 = vmatpush1.bf16.xpose.msra.mxu0 0
        %1261 = vmatprep.subr.bf16.mxu0 0
        %1262 = vmatpush1.bf16.xpose.msra.mxu0 0
        %1263 = vmatprep.subr.bf16.mxu0 0
        %1264 = vmatpush1.bf16.xpose.msra.mxu0 0
        %1265 = vmatprep.subr.bf16.mxu0 0
        %1266 = vmatpush1.bf16.xpose.msra.mxu0 0
        %1267 = vmatprep.subr.bf16.mxu0 0
        %1268 = vmatpush1.bf16.xpose.msra.mxu0 0
        %1269 = vmatprep.subr.bf16.mxu0 0
        %1270 = vmatpush1.bf16.xpose.msra.mxu0 0
        %1271 = vmatprep.subr.bf16.mxu0 0
        %1272 = vmatpush1.bf16.xpose.msra.mxu0 %v1255
        %1273 = vmatprep.subr.bf16.mxu0 0
        %1274 = vmatpush2.bf16.xpose.msra.mxu0 0
        %1275 = vmatprep.subr.bf16.mxu0 0
        %1276 = vmatpush2.bf16.xpose.msra.mxu0 0
        %1277 = vmatprep.subr.bf16.mxu0 0
        %1278 = vmatpush2.bf16.xpose.msra.mxu0 0
        %1279 = vmatprep.subr.bf16.mxu0 0
        %1280 = vmatpush2.bf16.xpose.msra.mxu0 0
        %1281 = vmatprep.subr.bf16.mxu0 0
        %1282 = vmatpush2.bf16.xpose.msra.mxu0 0
        %1283 = vmatprep.subr.bf16.mxu0 0
        %1284 = vmatpush2.bf16.xpose.msra.mxu0 0
        %1285 = vmatprep.subr.bf16.mxu0 0
        %1286 = vmatpush2.bf16.xpose.msra.mxu0 0
        %1287 = vmatprep.subr.bf16.mxu0 0
        %1288 = vmatpush2.bf16.xpose.msra.mxu0 0
        %1289 = vmatprep.mubr.bf16.mxu0 0
        %1290 = vmatmul.mubr.bf16.gmra.mxu0 %v1102
        %v1291 = vpop.f32.mrf.mxu0
        %v1292 = vadd.f32 %v1245, %v1291
        %v1293 = vpop.f32.mrf.mxu0
        %v1294 = vpop.f32.mrf.mxu0
        %v1295 = vadd.f32 %v1246, %v1294
        %v1296 = vpop.f32.mrf.mxu0
        %1297 = vdwg.mxu0
        %v1300 = vunpack.c.l.b16 %v1008
        %v1301 = vunpack.c.l.b16 %v1009
        %v1302 = vpack.c.b16 %v1301, %v1300
        %v1304 = vsel %vm1100, %v1302, 0
        %1306 = vmatprep.subr.bf16.mxu0 0
        %1307 = vmatpush1.bf16.xpose.msra.mxu0 0
        %1308 = vmatprep.subr.bf16.mxu0 0
        %1309 = vmatpush1.bf16.xpose.msra.mxu0 0
        %1310 = vmatprep.subr.bf16.mxu0 0
        %1311 = vmatpush1.bf16.xpose.msra.mxu0 0
        %1312 = vmatprep.subr.bf16.mxu0 0
        %1313 = vmatpush1.bf16.xpose.msra.mxu0 0
        %1314 = vmatprep.subr.bf16.mxu0 0
        %1315 = vmatpush1.bf16.xpose.msra.mxu0 0
        %1316 = vmatprep.subr.bf16.mxu0 0
        %1317 = vmatpush1.bf16.xpose.msra.mxu0 0
        %1318 = vmatprep.subr.bf16.mxu0 0
        %1319 = vmatpush1.bf16.xpose.msra.mxu0 0
        %1320 = vmatprep.subr.bf16.mxu0 0
        %1321 = vmatpush1.bf16.xpose.msra.mxu0 %v1304
        %1322 = vmatprep.subr.bf16.mxu0 0
        %1323 = vmatpush2.bf16.xpose.msra.mxu0 0
        %1324 = vmatprep.subr.bf16.mxu0 0
        %1325 = vmatpush2.bf16.xpose.msra.mxu0 0
        %1326 = vmatprep.subr.bf16.mxu0 0
        %1327 = vmatpush2.bf16.xpose.msra.mxu0 0
        %1328 = vmatprep.subr.bf16.mxu0 0
        %1329 = vmatpush2.bf16.xpose.msra.mxu0 0
        %1330 = vmatprep.subr.bf16.mxu0 0
        %1331 = vmatpush2.bf16.xpose.msra.mxu0 0
        %1332 = vmatprep.subr.bf16.mxu0 0
        %1333 = vmatpush2.bf16.xpose.msra.mxu0 0
        %1334 = vmatprep.subr.bf16.mxu0 0
        %1335 = vmatpush2.bf16.xpose.msra.mxu0 0
        %1336 = vmatprep.subr.bf16.mxu0 0
        %1337 = vmatpush2.bf16.xpose.msra.mxu0 0
        %1338 = vmatprep.mubr.bf16.mxu0 0
        %1339 = vmatmul.mubr.bf16.gmra.mxu0 %v1149
        %v1340 = vpop.f32.mrf.mxu0
        %v1341 = vadd.f32 %v1247, %v1340
        %v1342 = vpop.f32.mrf.mxu0
        %v1343 = vpop.f32.mrf.mxu0
        %v1344 = vadd.f32 %v1248, %v1343
        %v1345 = vpop.f32.mrf.mxu0
        %1346 = vdwg.mxu0
        %v1347 = vsel %vm1205, 1, 0
        %v1348 = vsel %vm1206, 1, 0
        %vm1349 = vcmp.eq.s32.totalorder %v1347, 1
        %vm1350 = vcmp.eq.s32.totalorder %v1348, 1
        %1351 = vset.pattern.permute.xlu0 1
        %1352 = vperm.xlu0 %1351, %v1142
        %v1353 = vpop.permute.xlu0 %1352
        %1355 = vset.pattern.permute.xlu0 1
        %1356 = vperm.xlu0 %1355, %v1145
        %v1357 = vpop.permute.xlu0 %1356
        %1359 = vset.pattern.permute.xlu0 1
        %1360 = vperm.xlu0 %1359, %v1186
        %v1361 = vpop.permute.xlu0 %1360
        %1363 = vset.pattern.permute.xlu0 1
        %1364 = vperm.xlu0 %1363, %v1189
        %v1365 = vpop.permute.xlu0 %1364
        %v1367 = vsel %vm1349, %v1353, 0.0
        %v1368 = vsel %vm1350, %v1357, 0.0
        %v1369 = vsel %vm1349, %v1361, 0.0
        %v1370 = vsel %vm1350, %v1365, 0.0
        %v1371 = vadd.f32 %v1292, %v1367
        %v1372 = vadd.f32 %v1295, %v1368
        %v1373 = vadd.f32 %v1341, %v1369
        %v1374 = vadd.f32 %v1344, %v1370
        %v1375 = vsel %vm1207, 1, 0
        %v1376 = vsel %vm1208, 1, 0
        %vm1377 = vcmp.eq.s32.totalorder %v1375, 1
        %vm1378 = vcmp.eq.s32.totalorder %v1376, 1
        %1379 = vset.pattern.permute.xlu0 2
        %1380 = vperm.xlu0 %1379, %v1142
        %v1381 = vpop.permute.xlu0 %1380
        %1383 = vset.pattern.permute.xlu0 2
        %1384 = vperm.xlu0 %1383, %v1145
        %v1385 = vpop.permute.xlu0 %1384
        %1387 = vset.pattern.permute.xlu0 2
        %1388 = vperm.xlu0 %1387, %v1186
        %v1389 = vpop.permute.xlu0 %1388
        %1391 = vset.pattern.permute.xlu0 2
        %1392 = vperm.xlu0 %1391, %v1189
        %v1393 = vpop.permute.xlu0 %1392
        %v1395 = vsel %vm1377, %v1381, 0.0
        %v1396 = vsel %vm1378, %v1385, 0.0
        %v1397 = vsel %vm1377, %v1389, 0.0
        %v1398 = vsel %vm1378, %v1393, 0.0
        %v1399 = vadd.f32 %v1371, %v1395
        %v1400 = vadd.f32 %v1372, %v1396
        %v1401 = vadd.f32 %v1373, %v1397
        %v1402 = vadd.f32 %v1374, %v1398
        %v1403 = vsel %vm1209, 1, 0
        %v1404 = vsel %vm1210, 1, 0
        %vm1405 = vcmp.eq.s32.totalorder %v1403, 1
        %vm1406 = vcmp.eq.s32.totalorder %v1404, 1
        %1407 = vset.pattern.permute.xlu0 3
        %1408 = vperm.xlu0 %1407, %v1142
        %v1409 = vpop.permute.xlu0 %1408
        %1411 = vset.pattern.permute.xlu0 3
        %1412 = vperm.xlu0 %1411, %v1145
        %v1413 = vpop.permute.xlu0 %1412
        %1415 = vset.pattern.permute.xlu0 3
        %1416 = vperm.xlu0 %1415, %v1186
        %v1417 = vpop.permute.xlu0 %1416
        %1419 = vset.pattern.permute.xlu0 3
        %1420 = vperm.xlu0 %1419, %v1189
        %v1421 = vpop.permute.xlu0 %1420
        %v1423 = vsel %vm1405, %v1409, 0.0
        %v1424 = vsel %vm1406, %v1413, 0.0
        %v1425 = vsel %vm1405, %v1417, 0.0
        %v1426 = vsel %vm1406, %v1421, 0.0
        %v1427 = vadd.f32 %v1399, %v1423
        %v1428 = vadd.f32 %v1400, %v1424
        %v1429 = vadd.f32 %v1401, %v1425
        %v1430 = vadd.f32 %v1402, %v1426
        %v1431 = vsel %vm1211, 1, 0
        %v1432 = vsel %vm1212, 1, 0
        %vm1433 = vcmp.eq.s32.totalorder %v1431, 1
        %vm1434 = vcmp.eq.s32.totalorder %v1432, 1
        %1435 = vset.pattern.permute.xlu0 4
        %1436 = vperm.xlu0 %1435, %v1142
        %v1437 = vpop.permute.xlu0 %1436
        %1439 = vset.pattern.permute.xlu0 4
        %1440 = vperm.xlu0 %1439, %v1145
        %v1441 = vpop.permute.xlu0 %1440
        %1443 = vset.pattern.permute.xlu0 4
        %1444 = vperm.xlu0 %1443, %v1186
        %v1445 = vpop.permute.xlu0 %1444
        %1447 = vset.pattern.permute.xlu0 4
        %1448 = vperm.xlu0 %1447, %v1189
        %v1449 = vpop.permute.xlu0 %1448
        %v1451 = vsel %vm1433, %v1437, 0.0
        %v1452 = vsel %vm1434, %v1441, 0.0
        %v1453 = vsel %vm1433, %v1445, 0.0
        %v1454 = vsel %vm1434, %v1449, 0.0
        %v1455 = vadd.f32 %v1427, %v1451
        %v1456 = vadd.f32 %v1428, %v1452
        %v1457 = vadd.f32 %v1429, %v1453
        %v1458 = vadd.f32 %v1430, %v1454
        %v1459 = vsel %vm1213, 1, 0
        %v1460 = vsel %vm1214, 1, 0
        %vm1461 = vcmp.eq.s32.totalorder %v1459, 1
        %vm1462 = vcmp.eq.s32.totalorder %v1460, 1
        %1463 = vset.pattern.permute.xlu0 5
        %1464 = vperm.xlu0 %1463, %v1142
        %v1465 = vpop.permute.xlu0 %1464
        %1467 = vset.pattern.permute.xlu0 5
        %1468 = vperm.xlu0 %1467, %v1145
        %v1469 = vpop.permute.xlu0 %1468
        %1471 = vset.pattern.permute.xlu0 5
        %1472 = vperm.xlu0 %1471, %v1186
        %v1473 = vpop.permute.xlu0 %1472
        %1475 = vset.pattern.permute.xlu0 5
        %1476 = vperm.xlu0 %1475, %v1189
        %v1477 = vpop.permute.xlu0 %1476
        %v1479 = vsel %vm1461, %v1465, 0.0
        %v1480 = vsel %vm1462, %v1469, 0.0
        %v1481 = vsel %vm1461, %v1473, 0.0
        %v1482 = vsel %vm1462, %v1477, 0.0
        %v1483 = vadd.f32 %v1455, %v1479
        %v1484 = vadd.f32 %v1456, %v1480
        %v1485 = vadd.f32 %v1457, %v1481
        %v1486 = vadd.f32 %v1458, %v1482
        %v1487 = vsel %vm1215, 1, 0
        %v1488 = vsel %vm1216, 1, 0
        %vm1489 = vcmp.eq.s32.totalorder %v1487, 1
        %vm1490 = vcmp.eq.s32.totalorder %v1488, 1
        %1491 = vset.pattern.permute.xlu0 6
        %1492 = vperm.xlu0 %1491, %v1142
        %v1493 = vpop.permute.xlu0 %1492
        %1495 = vset.pattern.permute.xlu0 6
        %1496 = vperm.xlu0 %1495, %v1145
        %v1497 = vpop.permute.xlu0 %1496
        %1499 = vset.pattern.permute.xlu0 6
        %1500 = vperm.xlu0 %1499, %v1186
        %v1501 = vpop.permute.xlu0 %1500
        %1503 = vset.pattern.permute.xlu0 6
        %1504 = vperm.xlu0 %1503, %v1189
        %v1505 = vpop.permute.xlu0 %1504
        %v1507 = vsel %vm1489, %v1493, 0.0
        %v1508 = vsel %vm1490, %v1497, 0.0
        %v1509 = vsel %vm1489, %v1501, 0.0
        %v1510 = vsel %vm1490, %v1505, 0.0
        %v1511 = vadd.f32 %v1483, %v1507
        %v1512 = vadd.f32 %v1484, %v1508
        %v1513 = vadd.f32 %v1485, %v1509
        %v1514 = vadd.f32 %v1486, %v1510
        %v1515 = vsel %vm1217, 1, 0
        %v1516 = vsel %vm1218, 1, 0
        %vm1517 = vcmp.eq.s32.totalorder %v1515, 1
        %vm1518 = vcmp.eq.s32.totalorder %v1516, 1
        %1519 = vset.pattern.permute.xlu0 7
        %1520 = vperm.xlu0 %1519, %v1142
        %v1521 = vpop.permute.xlu0 %1520
        %1523 = vset.pattern.permute.xlu0 7
        %1524 = vperm.xlu0 %1523, %v1145
        %v1525 = vpop.permute.xlu0 %1524
        %1527 = vset.pattern.permute.xlu0 7
        %1528 = vperm.xlu0 %1527, %v1186
        %v1529 = vpop.permute.xlu0 %1528
        %1531 = vset.pattern.permute.xlu0 7
        %1532 = vperm.xlu0 %1531, %v1189
        %v1533 = vpop.permute.xlu0 %1532
        %v1535 = vsel %vm1517, %v1521, 0.0
        %v1536 = vsel %vm1518, %v1525, 0.0
        %v1537 = vsel %vm1517, %v1529, 0.0
        %v1538 = vsel %vm1518, %v1533, 0.0
        %v1539 = vadd.f32 %v1511, %v1535
        %v1540 = vadd.f32 %v1512, %v1536
        %v1541 = vadd.f32 %v1513, %v1537
        %v1542 = vadd.f32 %v1514, %v1538
        %v1543 = vsel %vm1219, 1, 0
        %v1544 = vsel %vm1220, 1, 0
        %vm1545 = vcmp.eq.s32.totalorder %v1543, 1
        %vm1546 = vcmp.eq.s32.totalorder %v1544, 1
        %1547 = vset.pattern.permute.xlu0 8
        %1548 = vperm.xlu0 %1547, %v1142
        %v1549 = vpop.permute.xlu0 %1548
        %1551 = vset.pattern.permute.xlu0 8
        %1552 = vperm.xlu0 %1551, %v1145
        %v1553 = vpop.permute.xlu0 %1552
        %1555 = vset.pattern.permute.xlu0 8
        %1556 = vperm.xlu0 %1555, %v1186
        %v1557 = vpop.permute.xlu0 %1556
        %1559 = vset.pattern.permute.xlu0 8
        %1560 = vperm.xlu0 %1559, %v1189
        %v1561 = vpop.permute.xlu0 %1560
        %v1563 = vsel %vm1545, %v1549, 0.0
        %v1564 = vsel %vm1546, %v1553, 0.0
        %v1565 = vsel %vm1545, %v1557, 0.0
        %v1566 = vsel %vm1546, %v1561, 0.0
        %v1567 = vadd.f32 %v1539, %v1563
        %v1568 = vadd.f32 %v1540, %v1564
        %v1569 = vadd.f32 %v1541, %v1565
        %v1570 = vadd.f32 %v1542, %v1566
        %vm1571 = vcmp.ne.f32.partialorder %v803, 0.0
        %vm1572 = vcmp.ne.f32.partialorder %v804, 0.0
        %vm1573 = vcmp.ne.f32.partialorder %v805, 0.0
        %v1574 = vsel %vm1571, 1, 0
        %v1575 = vsel %vm1572, 1, 0
        %1576 = vset.pattern.permute.xlu0 0
        %1577 = vperm.xlu0 %1576, %v1574
        %v1578 = vpop.permute.xlu0 %1577
        %1579 = vset.pattern.permute.xlu0 0
        %1580 = vperm.xlu0 %1579, %v1575
        %v1581 = vpop.permute.xlu0 %1580
        %vm1582 = vcmp.eq.s32.totalorder %v1578, 1
        %vm1583 = vcmp.eq.s32.totalorder %v1581, 1
        %v1584 = vsel %vm1573, 1, 0
        %v1585 = vlaneseq
        %v1586 = vshrl.u32 %v1585, 7
        %v1587 = vsub.s32 0, %v1586
        %v1588 = vrot.slane %v1584, %v1587
        %vm1589 = vcmp.eq.s32.totalorder %v1588, 1
        %vm1590 = vmand %vm1582, %vm1589
        %vm1591 = vmand %vm1583, %vm1589
        %v1592 = vsel %vm1590, 1, 0
        %v1593 = vsel %vm1591, 1, 0
        %vm1594 = vcmp.eq.s32.totalorder %v1592, 1
        %vm1595 = vcmp.eq.s32.totalorder %v1593, 1
        %v1596 = vsel %vm1594, %v1567, -10000.0
        %v1597 = vsel %vm1595, %v1568, -10000.0
        %v1598 = vsel %vm1594, %v1569, -10000.0
        %v1599 = vsel %vm1595, %v1570, -10000.0
        %v1600 = vsel %vm1100, %v1596, -inf
        %1601 = vmax.xlane.f32.xlu0 %v1600
        %v1602 = vpop.xlane.xlu0 %1601
        %v1603 = vsel %vm1100, %v1597, -inf
        %1604 = vmax.xlane.f32.xlu0 %v1603
        %v1605 = vpop.xlane.xlu0 %1604
        %v1606 = vsel %vm1100, %v1598, -inf
        %1607 = vmax.xlane.f32.xlu0 %v1606
        %v1608 = vpop.xlane.xlu0 %1607
        %v1609 = vsel %vm1100, %v1599, -inf
        %1610 = vmax.xlane.f32.xlu0 %v1609
        %v1611 = vpop.xlane.xlu0 %1610
        %v1612 = vsub.f32 %v1596, %v1602
        %v1613 = vsub.f32 %v1597, %v1605
        %v1614 = vsub.f32 %v1598, %v1608
        %v1615 = vsub.f32 %v1599, %v1611
        %v1616 = vmul.f32 %v1612, 1.442695
        %v1617 = vpow.pop %v1616
        %v1618 = vmul.f32 %v1613, 1.442695
        %v1619 = vpow.pop %v1618
        %v1620 = vmul.f32 %v1614, 1.442695
        %v1621 = vpow.pop %v1620
        %v1622 = vmul.f32 %v1615, 1.442695
        %v1623 = vpow.pop %v1622
        %v1624 = vsel %vm1100, %v1617, 0.0
        %1625 = vadd.xlane.f32.xlu0 %v1624
        %v1626 = vpop.xlane.xlu0 %1625
        %v1627 = vsel %vm1100, %v1619, 0.0
        %1628 = vadd.xlane.f32.xlu0 %v1627
        %v1629 = vpop.xlane.xlu0 %1628
        %v1630 = vsel %vm1100, %v1621, 0.0
        %1631 = vadd.xlane.f32.xlu0 %v1630
        %v1632 = vpop.xlane.xlu0 %1631
        %v1633 = vsel %vm1100, %v1623, 0.0
        %1634 = vadd.xlane.f32.xlu0 %v1633
        %v1635 = vpop.xlane.xlu0 %1634
        %v1636 = vrcp.pop %v1626
        %v1637 = vrcp.pop %v1629
        %v1638 = vrcp.pop %v1632
        %v1639 = vrcp.pop %v1635
        %v1640 = vmul.f32 %v1617, %v1636
        %v1641 = vmul.f32 %v1619, %v1637
        %v1642 = vmul.f32 %v1621, %v1638
        %v1643 = vmul.f32 %v1623, %v1639
        %v1644 = vpack.c.bf16 %v1641, %v1640
        %v1645 = vpack.c.bf16 %v1643, %v1642
        %v1646 = vld [vmem:[#allocation10] sm:$0xff]
        %v1647 = vld [vmem:[#allocation10 + $0x8] sm:$0x1]
        %v1648 = vsel %vm1223, %v1640, 0.0
        %v1649 = vsel %vm1224, %v1641, 0.0
        %v1650 = vsel %vm1223, %v1642, 0.0
        %v1651 = vsel %vm1224, %v1643, 0.0
        %v1652 = vsel %vm1100, %v1648, 0.0
        %1653 = vadd.xlane.f32.xlu0 %v1652
        %v1654 = vpop.xlane.xlu0 %1653
        %v1655 = vsel %vm1100, %v1649, 0.0
        %1656 = vadd.xlane.f32.xlu0 %v1655
        %v1657 = vpop.xlane.xlu0 %1656
        %v1658 = vsel %vm1100, %v1650, 0.0
        %1659 = vadd.xlane.f32.xlu0 %v1658
        %v1660 = vpop.xlane.xlu0 %1659
        %v1661 = vsel %vm1100, %v1651, 0.0
        %1662 = vadd.xlane.f32.xlu0 %v1661
        %v1663 = vpop.xlane.xlu0 %1662
        %v1664 = vlaneseq
        %v1665 = vshrl.u32 %v1664, 7
        %v1666 = vsub.s32 0, %v1665
        %v1667 = vrot.slane %v1646, %v1666
        %v1668 = vmul.f32 %v1654, %v1667
        %v1669 = vmul.f32 %v1657, %v1667
        %v1670 = vmul.f32 %v1660, %v1667
        %v1671 = vmul.f32 %v1663, %v1667
        %v1674 = vunpack.c.l.b16 %v1010
        %v1675 = vunpack.c.l.b16 %v1011
        %v1676 = vpack.c.b16 %v1675, %v1674
        %v1679 = vsel %vm1100, %v1644, 0
        %1681 = vmatprep.subr.bf16.mxu0 0
        %1682 = vmatpush1.bf16.msra.mxu0 0
        %1683 = vmatprep.subr.bf16.mxu0 0
        %1684 = vmatpush1.bf16.msra.mxu0 0
        %1685 = vmatprep.subr.bf16.mxu0 0
        %1686 = vmatpush1.bf16.msra.mxu0 0
        %1687 = vmatprep.subr.bf16.mxu0 0
        %1688 = vmatpush1.bf16.msra.mxu0 0
        %1689 = vmatprep.subr.bf16.mxu0 0
        %1690 = vmatpush1.bf16.msra.mxu0 0
        %1691 = vmatprep.subr.bf16.mxu0 0
        %1692 = vmatpush1.bf16.msra.mxu0 0
        %1693 = vmatprep.subr.bf16.mxu0 0
        %1694 = vmatpush1.bf16.msra.mxu0 0
        %1695 = vmatprep.subr.bf16.mxu0 0
        %1696 = vmatpush1.bf16.msra.mxu0 %v1676
        %1697 = vmatprep.subr.bf16.mxu0 0
        %1698 = vmatpush2.bf16.msra.mxu0 0
        %1699 = vmatprep.subr.bf16.mxu0 0
        %1700 = vmatpush2.bf16.msra.mxu0 0
        %1701 = vmatprep.subr.bf16.mxu0 0
        %1702 = vmatpush2.bf16.msra.mxu0 0
        %1703 = vmatprep.subr.bf16.mxu0 0
        %1704 = vmatpush2.bf16.msra.mxu0 0
        %1705 = vmatprep.subr.bf16.mxu0 0
        %1706 = vmatpush2.bf16.msra.mxu0 0
        %1707 = vmatprep.subr.bf16.mxu0 0
        %1708 = vmatpush2.bf16.msra.mxu0 0
        %1709 = vmatprep.subr.bf16.mxu0 0
        %1710 = vmatpush2.bf16.msra.mxu0 0
        %1711 = vmatprep.subr.bf16.mxu0 0
        %1712 = vmatpush2.bf16.msra.mxu0 0
        %1713 = vmatprep.mubr.bf16.mxu0 0
        %1714 = vmatmul.mubr.bf16.gmra.mxu0 %v1679
        %v1715 = vpop.f32.mrf.mxu0
        %v1716 = vadd.f32 %v1668, %v1715
        %v1717 = vpop.f32.mrf.mxu0
        %v1718 = vpop.f32.mrf.mxu0
        %v1719 = vadd.f32 %v1669, %v1718
        %v1720 = vpop.f32.mrf.mxu0
        %1721 = vdwg.mxu0
        %v1724 = vunpack.c.l.b16 %v1012
        %v1725 = vunpack.c.l.b16 %v1013
        %v1726 = vpack.c.b16 %v1725, %v1724
        %v1729 = vsel %vm1100, %v1645, 0
        %1731 = vmatprep.subr.bf16.mxu0 0
        %1732 = vmatpush1.bf16.msra.mxu0 0
        %1733 = vmatprep.subr.bf16.mxu0 0
        %1734 = vmatpush1.bf16.msra.mxu0 0
        %1735 = vmatprep.subr.bf16.mxu0 0
        %1736 = vmatpush1.bf16.msra.mxu0 0
        %1737 = vmatprep.subr.bf16.mxu0 0
        %1738 = vmatpush1.bf16.msra.mxu0 0
        %1739 = vmatprep.subr.bf16.mxu0 0
        %1740 = vmatpush1.bf16.msra.mxu0 0
        %1741 = vmatprep.subr.bf16.mxu0 0
        %1742 = vmatpush1.bf16.msra.mxu0 0
        %1743 = vmatprep.subr.bf16.mxu0 0
        %1744 = vmatpush1.bf16.msra.mxu0 0
        %1745 = vmatprep.subr.bf16.mxu0 0
        %1746 = vmatpush1.bf16.msra.mxu0 %v1726
        %1747 = vmatprep.subr.bf16.mxu0 0
        %1748 = vmatpush2.bf16.msra.mxu0 0
        %1749 = vmatprep.subr.bf16.mxu0 0
        %1750 = vmatpush2.bf16.msra.mxu0 0
        %1751 = vmatprep.subr.bf16.mxu0 0
        %1752 = vmatpush2.bf16.msra.mxu0 0
        %1753 = vmatprep.subr.bf16.mxu0 0
        %1754 = vmatpush2.bf16.msra.mxu0 0
        %1755 = vmatprep.subr.bf16.mxu0 0
        %1756 = vmatpush2.bf16.msra.mxu0 0
        %1757 = vmatprep.subr.bf16.mxu0 0
        %1758 = vmatpush2.bf16.msra.mxu0 0
        %1759 = vmatprep.subr.bf16.mxu0 0
        %1760 = vmatpush2.bf16.msra.mxu0 0
        %1761 = vmatprep.subr.bf16.mxu0 0
        %1762 = vmatpush2.bf16.msra.mxu0 0
        %1763 = vmatprep.mubr.bf16.mxu0 0
        %1764 = vmatmul.mubr.bf16.gmra.mxu0 %v1729
        %v1765 = vpop.f32.mrf.mxu0
        %v1766 = vadd.f32 %v1670, %v1765
        %v1767 = vpop.f32.mrf.mxu0
        %v1768 = vpop.f32.mrf.mxu0
        %v1769 = vadd.f32 %v1671, %v1768
        %v1770 = vpop.f32.mrf.mxu0
        %1771 = vdwg.mxu0
        %v1772 = vsel %vm1349, %v1640, 0.0
        %v1773 = vsel %vm1350, %v1641, 0.0
        %v1774 = vsel %vm1349, %v1642, 0.0
        %v1775 = vsel %vm1350, %v1643, 0.0
        %v1776 = vsel %vm1100, %v1772, 0.0
        %1777 = vadd.xlane.f32.xlu0 %v1776
        %v1778 = vpop.xlane.xlu0 %1777
        %v1779 = vsel %vm1100, %v1773, 0.0
        %1780 = vadd.xlane.f32.xlu0 %v1779
        %v1781 = vpop.xlane.xlu0 %1780
        %v1782 = vsel %vm1100, %v1774, 0.0
        %1783 = vadd.xlane.f32.xlu0 %v1782
        %v1784 = vpop.xlane.xlu0 %1783
        %v1785 = vsel %vm1100, %v1775, 0.0
        %1786 = vadd.xlane.f32.xlu0 %v1785
        %v1787 = vpop.xlane.xlu0 %1786
        %v1788 = vlaneseq
        %v1789 = vshrl.u32 %v1788, 7
        %v1790 = vsub.s32 1, %v1789
        %v1791 = vrot.slane %v1646, %v1790
        %v1792 = vmul.f32 %v1778, %v1791
        %v1793 = vmul.f32 %v1781, %v1791
        %v1794 = vmul.f32 %v1784, %v1791
        %v1795 = vmul.f32 %v1787, %v1791
        %v1796 = vadd.f32 %v1716, %v1792
        %v1797 = vadd.f32 %v1719, %v1793
        %v1798 = vadd.f32 %v1766, %v1794
        %v1799 = vadd.f32 %v1769, %v1795
        %v1800 = vsel %vm1377, %v1640, 0.0
        %v1801 = vsel %vm1378, %v1641, 0.0
        %v1802 = vsel %vm1377, %v1642, 0.0
        %v1803 = vsel %vm1378, %v1643, 0.0
        %v1804 = vsel %vm1100, %v1800, 0.0
        %1805 = vadd.xlane.f32.xlu0 %v1804
        %v1806 = vpop.xlane.xlu0 %1805
        %v1807 = vsel %vm1100, %v1801, 0.0
        %1808 = vadd.xlane.f32.xlu0 %v1807
        %v1809 = vpop.xlane.xlu0 %1808
        %v1810 = vsel %vm1100, %v1802, 0.0
        %1811 = vadd.xlane.f32.xlu0 %v1810
        %v1812 = vpop.xlane.xlu0 %1811
        %v1813 = vsel %vm1100, %v1803, 0.0
        %1814 = vadd.xlane.f32.xlu0 %v1813
        %v1815 = vpop.xlane.xlu0 %1814
        %v1816 = vlaneseq
        %v1817 = vshrl.u32 %v1816, 7
        %v1818 = vsub.s32 2, %v1817
        %v1819 = vrot.slane %v1646, %v1818
        %v1820 = vmul.f32 %v1806, %v1819
        %v1821 = vmul.f32 %v1809, %v1819
        %v1822 = vmul.f32 %v1812, %v1819
        %v1823 = vmul.f32 %v1815, %v1819
        %v1824 = vadd.f32 %v1796, %v1820
        %v1825 = vadd.f32 %v1797, %v1821
        %v1826 = vadd.f32 %v1798, %v1822
        %v1827 = vadd.f32 %v1799, %v1823
        %v1828 = vsel %vm1405, %v1640, 0.0
        %v1829 = vsel %vm1406, %v1641, 0.0
        %v1830 = vsel %vm1405, %v1642, 0.0
        %v1831 = vsel %vm1406, %v1643, 0.0
        %v1832 = vsel %vm1100, %v1828, 0.0
        %1833 = vadd.xlane.f32.xlu0 %v1832
        %v1834 = vpop.xlane.xlu0 %1833
        %v1835 = vsel %vm1100, %v1829, 0.0
        %1836 = vadd.xlane.f32.xlu0 %v1835
        %v1837 = vpop.xlane.xlu0 %1836
        %v1838 = vsel %vm1100, %v1830, 0.0
        %1839 = vadd.xlane.f32.xlu0 %v1838
        %v1840 = vpop.xlane.xlu0 %1839
        %v1841 = vsel %vm1100, %v1831, 0.0
        %1842 = vadd.xlane.f32.xlu0 %v1841
        %v1843 = vpop.xlane.xlu0 %1842
        %v1844 = vlaneseq
        %v1845 = vshrl.u32 %v1844, 7
        %v1846 = vsub.s32 3, %v1845
        %v1847 = vrot.slane %v1646, %v1846
        %v1848 = vmul.f32 %v1834, %v1847
        %v1849 = vmul.f32 %v1837, %v1847
        %v1850 = vmul.f32 %v1840, %v1847
        %v1851 = vmul.f32 %v1843, %v1847
        %v1852 = vadd.f32 %v1824, %v1848
        %v1853 = vadd.f32 %v1825, %v1849
        %v1854 = vadd.f32 %v1826, %v1850
        %v1855 = vadd.f32 %v1827, %v1851
        %v1856 = vsel %vm1433, %v1640, 0.0
        %v1857 = vsel %vm1434, %v1641, 0.0
        %v1858 = vsel %vm1433, %v1642, 0.0
        %v1859 = vsel %vm1434, %v1643, 0.0
        %v1860 = vsel %vm1100, %v1856, 0.0
        %1861 = vadd.xlane.f32.xlu0 %v1860
        %v1862 = vpop.xlane.xlu0 %1861
        %v1863 = vsel %vm1100, %v1857, 0.0
        %1864 = vadd.xlane.f32.xlu0 %v1863
        %v1865 = vpop.xlane.xlu0 %1864
        %v1866 = vsel %vm1100, %v1858, 0.0
        %1867 = vadd.xlane.f32.xlu0 %v1866
        %v1868 = vpop.xlane.xlu0 %1867
        %v1869 = vsel %vm1100, %v1859, 0.0
        %1870 = vadd.xlane.f32.xlu0 %v1869
        %v1871 = vpop.xlane.xlu0 %1870
        %v1872 = vlaneseq
        %v1873 = vshrl.u32 %v1872, 7
        %v1874 = vsub.s32 4, %v1873
        %v1875 = vrot.slane %v1646, %v1874
        %v1876 = vmul.f32 %v1862, %v1875
        %v1877 = vmul.f32 %v1865, %v1875
        %v1878 = vmul.f32 %v1868, %v1875
        %v1879 = vmul.f32 %v1871, %v1875
        %v1880 = vadd.f32 %v1852, %v1876
        %v1881 = vadd.f32 %v1853, %v1877
        %v1882 = vadd.f32 %v1854, %v1878
        %v1883 = vadd.f32 %v1855, %v1879
        %v1884 = vsel %vm1461, %v1640, 0.0
        %v1885 = vsel %vm1462, %v1641, 0.0
        %v1886 = vsel %vm1461, %v1642, 0.0
        %v1887 = vsel %vm1462, %v1643, 0.0
        %v1888 = vsel %vm1100, %v1884, 0.0
        %1889 = vadd.xlane.f32.xlu0 %v1888
        %v1890 = vpop.xlane.xlu0 %1889
        %v1891 = vsel %vm1100, %v1885, 0.0
        %1892 = vadd.xlane.f32.xlu0 %v1891
        %v1893 = vpop.xlane.xlu0 %1892
        %v1894 = vsel %vm1100, %v1886, 0.0
        %1895 = vadd.xlane.f32.xlu0 %v1894
        %v1896 = vpop.xlane.xlu0 %1895
        %v1897 = vsel %vm1100, %v1887, 0.0
        %1898 = vadd.xlane.f32.xlu0 %v1897
        %v1899 = vpop.xlane.xlu0 %1898
        %v1900 = vlaneseq
        %v1901 = vshrl.u32 %v1900, 7
        %v1902 = vsub.s32 5, %v1901
        %v1903 = vrot.slane %v1646, %v1902
        %v1904 = vmul.f32 %v1890, %v1903
        %v1905 = vmul.f32 %v1893, %v1903
        %v1906 = vmul.f32 %v1896, %v1903
        %v1907 = vmul.f32 %v1899, %v1903
        %v1908 = vadd.f32 %v1880, %v1904
        %v1909 = vadd.f32 %v1881, %v1905
        %v1910 = vadd.f32 %v1882, %v1906
        %v1911 = vadd.f32 %v1883, %v1907
        %v1912 = vsel %vm1489, %v1640, 0.0
        %v1913 = vsel %vm1490, %v1641, 0.0
        %v1914 = vsel %vm1489, %v1642, 0.0
        %v1915 = vsel %vm1490, %v1643, 0.0
        %v1916 = vsel %vm1100, %v1912, 0.0
        %1917 = vadd.xlane.f32.xlu0 %v1916
        %v1918 = vpop.xlane.xlu0 %1917
        %v1919 = vsel %vm1100, %v1913, 0.0
        %1920 = vadd.xlane.f32.xlu0 %v1919
        %v1921 = vpop.xlane.xlu0 %1920
        %v1922 = vsel %vm1100, %v1914, 0.0
        %1923 = vadd.xlane.f32.xlu0 %v1922
        %v1924 = vpop.xlane.xlu0 %1923
        %v1925 = vsel %vm1100, %v1915, 0.0
        %1926 = vadd.xlane.f32.xlu0 %v1925
        %v1927 = vpop.xlane.xlu0 %1926
        %v1928 = vlaneseq
        %v1929 = vshrl.u32 %v1928, 7
        %v1930 = vsub.s32 6, %v1929
        %v1931 = vrot.slane %v1646, %v1930
        %v1932 = vmul.f32 %v1918, %v1931
        %v1933 = vmul.f32 %v1921, %v1931
        %v1934 = vmul.f32 %v1924, %v1931
        %v1935 = vmul.f32 %v1927, %v1931
        %v1936 = vadd.f32 %v1908, %v1932
        %v1937 = vadd.f32 %v1909, %v1933
        %v1938 = vadd.f32 %v1910, %v1934
        %v1939 = vadd.f32 %v1911, %v1935
        %v1940 = vsel %vm1517, %v1640, 0.0
        %v1941 = vsel %vm1518, %v1641, 0.0
        %v1942 = vsel %vm1517, %v1642, 0.0
        %v1943 = vsel %vm1518, %v1643, 0.0
        %v1944 = vsel %vm1100, %v1940, 0.0
        %1945 = vadd.xlane.f32.xlu0 %v1944
        %v1946 = vpop.xlane.xlu0 %1945
        %v1947 = vsel %vm1100, %v1941, 0.0
        %1948 = vadd.xlane.f32.xlu0 %v1947
        %v1949 = vpop.xlane.xlu0 %1948
        %v1950 = vsel %vm1100, %v1942, 0.0
        %1951 = vadd.xlane.f32.xlu0 %v1950
        %v1952 = vpop.xlane.xlu0 %1951
        %v1953 = vsel %vm1100, %v1943, 0.0
        %1954 = vadd.xlane.f32.xlu0 %v1953
        %v1955 = vpop.xlane.xlu0 %1954
        %v1956 = vlaneseq
        %v1957 = vshrl.u32 %v1956, 7
        %v1958 = vsub.s32 7, %v1957
        %v1959 = vrot.slane %v1646, %v1958
        %v1960 = vmul.f32 %v1946, %v1959
        %v1961 = vmul.f32 %v1949, %v1959
        %v1962 = vmul.f32 %v1952, %v1959
        %v1963 = vmul.f32 %v1955, %v1959
        %v1964 = vadd.f32 %v1936, %v1960
        %v1965 = vadd.f32 %v1937, %v1961
        %v1966 = vadd.f32 %v1938, %v1962
        %v1967 = vadd.f32 %v1939, %v1963
        %v1968 = vsel %vm1545, %v1640, 0.0
        %v1969 = vsel %vm1546, %v1641, 0.0
        %v1970 = vsel %vm1545, %v1642, 0.0
        %v1971 = vsel %vm1546, %v1643, 0.0
        %v1972 = vsel %vm1100, %v1968, 0.0
        %1973 = vadd.xlane.f32.xlu0 %v1972
        %v1974 = vpop.xlane.xlu0 %1973
        %v1975 = vsel %vm1100, %v1969, 0.0
        %1976 = vadd.xlane.f32.xlu0 %v1975
        %v1977 = vpop.xlane.xlu0 %1976
        %v1978 = vsel %vm1100, %v1970, 0.0
        %1979 = vadd.xlane.f32.xlu0 %v1978
        %v1980 = vpop.xlane.xlu0 %1979
        %v1981 = vsel %vm1100, %v1971, 0.0
        %1982 = vadd.xlane.f32.xlu0 %v1981
        %v1983 = vpop.xlane.xlu0 %1982
        %v1984 = vlaneseq
        %v1985 = vshrl.u32 %v1984, 7
        %v1986 = vsub.s32 0, %v1985
        %v1987 = vrot.slane %v1647, %v1986
        %v1988 = vmul.f32 %v1974, %v1987
        %v1989 = vmul.f32 %v1977, %v1987
        %v1990 = vmul.f32 %v1980, %v1987
        %v1991 = vmul.f32 %v1983, %v1987
        %v1992 = vadd.f32 %v1964, %v1988
        %v1993 = vadd.f32 %v1965, %v1989
        %v1994 = vadd.f32 %v1966, %v1990
        %v1995 = vadd.f32 %v1967, %v1991
        %v1996 = vpack.c.bf16 %v1993, %v1992
        %v1997 = vpack.c.bf16 %v1995, %v1994
        %v1998 = vld [vmem:[#allocation16] sm:$0xf]
        %v1999 = vld [vmem:[#allocation16 + $0x4] sm:$0xf]
        %s2000 = scalar_lea.vmem [#allocation16], 8
        %v2001 = vld [vmem:[%s2000] sm:$0xf]
        %v2002 = vld [vmem:[%s2000 + $0x4] sm:$0xf]
        %v2005 = vunpack.c.l.b16 %v2001
        %v2006 = vunpack.c.l.b16 %v2002
        %v2007 = vpack.c.b16 %v2006, %v2005
        %v2010 = vsel %vm1100, %v1997, 0
        %2012 = vmatprep.subr.bf16.mxu0 0
        %2013 = vmatpush1.bf16.msra.mxu0 0
        %2014 = vmatprep.subr.bf16.mxu0 0
        %2015 = vmatpush1.bf16.msra.mxu0 0
        %2016 = vmatprep.subr.bf16.mxu0 0
        %2017 = vmatpush1.bf16.msra.mxu0 0
        %2018 = vmatprep.subr.bf16.mxu0 0
        %2019 = vmatpush1.bf16.msra.mxu0 0
        %2020 = vmatprep.subr.bf16.mxu0 0
        %2021 = vmatpush1.bf16.msra.mxu0 0
        %2022 = vmatprep.subr.bf16.mxu0 0
        %2023 = vmatpush1.bf16.msra.mxu0 0
        %2024 = vmatprep.subr.bf16.mxu0 0
        %2025 = vmatpush1.bf16.msra.mxu0 0
        %2026 = vmatprep.subr.bf16.mxu0 0
        %2027 = vmatpush1.bf16.msra.mxu0 %v2007
        %2028 = vmatprep.subr.bf16.mxu0 0
        %2029 = vmatpush2.bf16.msra.mxu0 0
        %2030 = vmatprep.subr.bf16.mxu0 0
        %2031 = vmatpush2.bf16.msra.mxu0 0
        %2032 = vmatprep.subr.bf16.mxu0 0
        %2033 = vmatpush2.bf16.msra.mxu0 0
        %2034 = vmatprep.subr.bf16.mxu0 0
        %2035 = vmatpush2.bf16.msra.mxu0 0
        %2036 = vmatprep.subr.bf16.mxu0 0
        %2037 = vmatpush2.bf16.msra.mxu0 0
        %2038 = vmatprep.subr.bf16.mxu0 0
        %2039 = vmatpush2.bf16.msra.mxu0 0
        %2040 = vmatprep.subr.bf16.mxu0 0
        %2041 = vmatpush2.bf16.msra.mxu0 0
        %2042 = vmatprep.subr.bf16.mxu0 0
        %2043 = vmatpush2.bf16.msra.mxu0 0
        %2044 = vmatprep.mubr.bf16.mxu0 0
        %2045 = vmatmul.mubr.bf16.gmra.mxu0 %v2010
        %v2046 = vpop.f32.mrf.mxu0
        %v2047 = vadd.f32 0.0, %v2046
        %v2048 = vpop.f32.mrf.mxu0
        %v2049 = vpop.f32.mrf.mxu0
        %v2050 = vadd.f32 0.0, %v2049
        %v2051 = vpop.f32.mrf.mxu0
        %2052 = vdwg.mxu0
        %v2055 = vunpack.c.l.b16 %v1998
        %v2056 = vunpack.c.l.b16 %v1999
        %v2057 = vpack.c.b16 %v2056, %v2055
        %v2060 = vsel %vm1100, %v1996, 0
        %2062 = vmatprep.subr.bf16.mxu0 0
        %2063 = vmatpush1.bf16.msra.mxu0 0
        %2064 = vmatprep.subr.bf16.mxu0 0
        %2065 = vmatpush1.bf16.msra.mxu0 0
        %2066 = vmatprep.subr.bf16.mxu0 0
        %2067 = vmatpush1.bf16.msra.mxu0 0
        %2068 = vmatprep.subr.bf16.mxu0 0
        %2069 = vmatpush1.bf16.msra.mxu0 0
        %2070 = vmatprep.subr.bf16.mxu0 0
        %2071 = vmatpush1.bf16.msra.mxu0 0
        %2072 = vmatprep.subr.bf16.mxu0 0
        %2073 = vmatpush1.bf16.msra.mxu0 0
        %2074 = vmatprep.subr.bf16.mxu0 0
        %2075 = vmatpush1.bf16.msra.mxu0 0
        %2076 = vmatprep.subr.bf16.mxu0 0
        %2077 = vmatpush1.bf16.msra.mxu0 %v2057
        %2078 = vmatprep.subr.bf16.mxu0 0
        %2079 = vmatpush2.bf16.msra.mxu0 0
        %2080 = vmatprep.subr.bf16.mxu0 0
        %2081 = vmatpush2.bf16.msra.mxu0 0
        %2082 = vmatprep.subr.bf16.mxu0 0
        %2083 = vmatpush2.bf16.msra.mxu0 0
        %2084 = vmatprep.subr.bf16.mxu0 0
        %2085 = vmatpush2.bf16.msra.mxu0 0
        %2086 = vmatprep.subr.bf16.mxu0 0
        %2087 = vmatpush2.bf16.msra.mxu0 0
        %2088 = vmatprep.subr.bf16.mxu0 0
        %2089 = vmatpush2.bf16.msra.mxu0 0
        %2090 = vmatprep.subr.bf16.mxu0 0
        %2091 = vmatpush2.bf16.msra.mxu0 0
        %2092 = vmatprep.subr.bf16.mxu0 0
        %2093 = vmatpush2.bf16.msra.mxu0 0
        %2094 = vmatprep.mubr.bf16.mxu0 0
        %2095 = vmatmul.mubr.bf16.gmra.mxu0 %v2060
        %v2096 = vpop.f32.mrf.mxu0
        %v2097 = vadd.f32 %v2047, %v2096
        %v2098 = vpop.f32.mrf.mxu0
        %v2099 = vpop.f32.mrf.mxu0
        %v2100 = vadd.f32 %v2050, %v2099
        %v2101 = vpop.f32.mrf.mxu0
        %2102 = vdwg.mxu0
        %v2103 = vld [vmem:[%s13] sm:$0x1]
        %v2105 = vlaneseq
        %v2106 = vshrl.u32 %v2105, 7
        %v2107 = vsub.s32 0, %v2106
        %v2108 = vrot.slane %v2103, %v2107
        %v2110 = vadd.f32 %v2097, %v2108
        %v2111 = vadd.f32 %v2100, %v2108
        %v2112 = vadd.f32 %v801, %v2110
        %v2113 = vadd.f32 %v802, %v2111
        %v2114 = vsel %vm1038, %v2112, 0.0
        %2115 = vadd.xlane.f32.xlu0 %v2114
        %v2116 = vpop.xlane.xlu0 %2115
        %v2117 = vsel %vm1038, %v2113, 0.0
        %2118 = vadd.xlane.f32.xlu0 %v2117
        %v2119 = vpop.xlane.xlu0 %2118
        %v2120 = vrcp.pop 32.0
        %v2121 = vmul.f32 %v2116, %v2120
        %v2122 = vmul.f32 %v2119, %v2120
        %v2123 = vsub.f32 %v2112, %v2121
        %v2124 = vsub.f32 %v2113, %v2122
        %v2125 = vmul.f32 %v2123, %v2123
        %v2126 = vmul.f32 %v2124, %v2124
        %v2127 = vsel %vm1038, %v2125, 0.0
        %2128 = vadd.xlane.f32.xlu0 %v2127
        %v2129 = vpop.xlane.xlu0 %2128
        %v2130 = vsel %vm1038, %v2126, 0.0
        %2131 = vadd.xlane.f32.xlu0 %v2130
        %v2132 = vpop.xlane.xlu0 %2131
        %v2133 = vmul.f32 %v2129, %v2120
        %v2134 = vmul.f32 %v2132, %v2120
        %v2135 = vadd.f32 %v2133, 1e-05
        %v2136 = vadd.f32 %v2134, 1e-05
        %v2137 = vrsqrt.pop %v2135
        %v2138 = vrsqrt.pop %v2136
        %v2139 = vmul.f32 %v2123, %v2137
        %v2140 = vmul.f32 %v2124, %v2138
        %v2141 = vld [vmem:[%s14] sm:$0x1]
        %v2143 = vlaneseq
        %v2144 = vshrl.u32 %v2143, 7
        %v2145 = vsub.s32 0, %v2144
        %v2146 = vrot.slane %v2141, %v2145
        %v2148 = vmul.f32 %v2139, %v2146
        %v2149 = vmul.f32 %v2140, %v2146
        %v2150 = vld [vmem:[%s15] sm:$0x1]
        %v2152 = vlaneseq
        %v2153 = vshrl.u32 %v2152, 7
        %v2154 = vsub.s32 0, %v2153
        %v2155 = vrot.slane %v2150, %v2154
        %v2157 = vadd.f32 %v2148, %v2155
        %v2158 = vadd.f32 %v2149, %v2155
        %v2159 = vadd.f32 %v2157, %v2157
        %v2160 = vadd.f32 %v2158, %v2158
        %v2161 = vsel %vm1038, %v2159, 0.0
        %2162 = vadd.xlane.f32.xlu0 %v2161
        %v2163 = vpop.xlane.xlu0 %2162
        %v2164 = vsel %vm1038, %v2160, 0.0
        %2165 = vadd.xlane.f32.xlu0 %v2164
        %v2166 = vpop.xlane.xlu0 %2165
        %v2167 = vmul.f32 %v2163, %v2120
        %v2168 = vmul.f32 %v2166, %v2120
        %v2169 = vsub.f32 %v2159, %v2167
        %v2170 = vsub.f32 %v2160, %v2168
        %v2171 = vmul.f32 %v2169, %v2169
        %v2172 = vmul.f32 %v2170, %v2170
        %v2173 = vsel %vm1038, %v2171, 0.0
        %2174 = vadd.xlane.f32.xlu0 %v2173
        %v2175 = vpop.xlane.xlu0 %2174
        %v2176 = vsel %vm1038, %v2172, 0.0
        %2177 = vadd.xlane.f32.xlu0 %v2176
        %v2178 = vpop.xlane.xlu0 %2177
        %v2179 = vmul.f32 %v2175, %v2120
        %v2180 = vmul.f32 %v2178, %v2120
        %v2181 = vadd.f32 %v2179, 1e-05
        %v2182 = vadd.f32 %v2180, 1e-05
        %v2183 = vrsqrt.pop %v2181
        %v2184 = vrsqrt.pop %v2182
        %v2185 = vmul.f32 %v2169, %v2183
        %v2186 = vmul.f32 %v2170, %v2184
        %v2187 = vld [vmem:[%s16] sm:$0x1]
        %v2189 = vlaneseq
        %v2190 = vshrl.u32 %v2189, 7
        %v2191 = vsub.s32 0, %v2190
        %v2192 = vrot.slane %v2187, %v2191
        %v2194 = vmul.f32 %v2185, %v2192
        %v2195 = vmul.f32 %v2186, %v2192
        %v2196 = vld [vmem:[%s17] sm:$0x1]
        %v2198 = vlaneseq
        %v2199 = vshrl.u32 %v2198, 7
        %v2200 = vsub.s32 0, %v2199
        %v2201 = vrot.slane %v2196, %v2200
        %v2203 = vadd.f32 %v2194, %v2201
        %v2204 = vadd.f32 %v2195, %v2201
        %2205 = vst.msk [vmem:[%s778] sm:$0xff] %vm1038, %v2203
        %2206 = vst.msk [vmem:[%s778 + $0x8] sm:$0xff] %vm1038, %v2204
        %s2207 = sand.u32 %s465, 1
        %s2208 = scalar_lea.sflag [#allocation6], %s2207
        %s2209 = sand.u32 %s465, 1
        %s2210 = smul.addr %s2209, 16
        %s2211 = scalar_lea.vmem [#allocation18], %s2210
        // Predicated region
        $region129: #{tpu_custom_call.1} parent=91 // pred_check
          %p2212 = pneg %p475
        $region130: #{tpu_custom_call.1} parent=91 // pred_check_branch
          %2214 = sbr.rel (%p2212) target = $region132
        $region131: #{tpu_custom_call.1} parent=91 // pred_region
          %s2215 = smul.u32 2, %s46
          %s2217 = ssub.s32 256, 256
          %2218 = vsyncadd %s2208, %s2217
          %s2219 = smul.addr %s45, 2
          %s2220 = sadd.s32 %s2215, %s2219
          %s2221 = smul.addr %s2220, 128
          %s2222 = scalar_lea.hbm %s18, %s2221
          %s2223 = sshll.u32 %s2211, 4
          %s2224 = int_to_ptr.vmem [resolvable:$true] %s2223
          %2229 = dma.vmem_to_hbm [thread:$0]  %s2224, 256, %s2222, %s2208, 128, 128, 8
        $region132: #{tpu_custom_call.1} parent=91 // pred_fallthru
          _
      $region92: #{tpu_custom_call.1} parent=5 // pred_fallthru
        _
      %p2230 = scmp.le.s32.totalorder 2, %s36
      // Predicated region
      $region133: #{tpu_custom_call.1} parent=5 // pred_check
        %p2231 = pneg %p2230
      $region134: #{tpu_custom_call.1} parent=5 // pred_check_branch
        %2233 = sbr.rel (%p2231) target = $region136
      $region135: #{tpu_custom_call.1} parent=5 // pred_region
        %s2234 = ssub.s32 %s36, 2
        // Predicated region
        $region137: #{tpu_custom_call.1} parent=135 // pred_check
          %p2235 = pneg %p481
        $region138: #{tpu_custom_call.1} parent=135 // pred_check_branch
          %2237 = sbr.rel (%p2235) target = $region140
        $region139: #{tpu_custom_call.1} parent=135 // pred_region
          %s2238 = sand.u32 %s466, 1
          %s2239 = scalar_lea.sflag [#allocation6], %s2238
          %s2240 = sand.u32 %s466, 1
          %s2241 = smul.addr %s2240, 16
          %s2242 = scalar_lea.vmem [#allocation18], %s2241
          %2243 = dma.done %s2239, 256
        $region140: #{tpu_custom_call.1} parent=135 // pred_fallthru
          _
      $region136: #{tpu_custom_call.1} parent=5 // pred_fallthru
        _
    $region6: #{tpu_custom_call.1} parent=1 // loop_footer
      %s40 = sadd.s32 1, %s36
    $region7: #{tpu_custom_call.1} parent=1 // loop_footer_branch
      %35 = sbr.rel target = $region3
    $region8: #{tpu_custom_call.1} parent=1 // loop_exit
      _
    %2244 = vsyncpa [#allocation5], 1
    %s2245 = scalar_lea.sflag [#allocation5], 1
    %2246 = vsyncpa %s2245, 1
    %2247 = vsyncpa [#allocation8], 1
    %s2248 = scalar_lea.sflag [#allocation8], 1
    %2249 = vsyncpa %s2248, 1
    %2250 = vsyncpa [#allocation11], 1
    %2251 = vsyncpa [#allocation14], 1
    %2252 = vsyncpa [#allocation17], 1
    %2253 = vsyncpa [#allocation6], 1
    %s2254 = scalar_lea.sflag [#allocation6], 1
    %2255 = vsyncpa %s2254, 1

</llo_original>
